<compile_context>
chip_gen: v5e
topology: v5e:2x2
jax: 0.10.0
libtpu: 0.0.40
codegen_flags: <defaults>
</compile_context>

<pallas_src>
import functools

import jax
import jax.numpy as jnp
from jax.experimental import pallas as pl
from jax.experimental.pallas import tpu as pltpu

BN_EPS = 1e-5


# ----------------------------- fused Pallas kernel ---------------------------

def _decoder_kernel(z_ref, y_ref,
                    wz_ref, wy_ref, fb_ref, fs_ref, ft_ref,
                    wdec_ref, sdec_ref, tdec_ref,
                    wct1_ref, sct1_ref, tct1_ref,
                    wct2_ref, sct2_ref, tct2_ref,
                    wfin_ref, bfin_ref,
                    o_ref, *, H, W8):
    """One batch element per grid step; everything VMEM resident."""
    f32 = jnp.float32

    # ---- fc: Linear + BatchNorm1d(eval) + ReLU (Dropout(eval) = identity) ---
    h = jnp.dot(z_ref[0], wz_ref[...], preferred_element_type=f32)
    h = h + jnp.dot(y_ref[0], wy_ref[...], preferred_element_type=f32)
    h = jnp.maximum((h + fb_ref[...]) * fs_ref[...] + ft_ref[...], 0.0)  # (1, H*W8*64)

    # FC columns were pre-permuted to (ih, iw, c) order -> build the NHWC map
    # with 64-lane slices + a sublane concat (avoids lane-splitting reshapes).
    rows = [h[:, p * 64:(p + 1) * 64] for p in range(H * W8)]
    x = jnp.concatenate(rows, axis=0).reshape(H, W8, 64)                 # (H, W8, 64)

    def pad_hw(a, ph, pw):
        hh, wc, c = a.shape
        zw = jnp.zeros((hh, pw, c), f32)
        a = jnp.concatenate([zw, a, zw], axis=1)
        zh = jnp.zeros((ph, wc + 2 * pw, c), f32)
        return jnp.concatenate([zh, a, zh], axis=0)

    def im2col(a, kh, kw):
        hh, wc, c = a.shape
        ho, wo = hh - kh + 1, wc - kw + 1
        cols = [a[i:i + ho, j:j + wo, :] for i in range(kh) for j in range(kw)]
        col = jnp.concatenate(cols, axis=-1)                             # (ho, wo, kh*kw*c)
        return col.reshape(ho * wo, kh * kw * c), ho, wo

    def up_conv(a, w_ref, s_ref, t_ref):
        # ConvTranspose2d(k=(3,5), stride=(1,2), pad=(1,2), out_pad=(0,1))
        # + BN2d(eval) + ReLU, phase-combined into a single 3x3 stride-1 conv
        # with 2*Cout channels, followed by an even/odd width interleave.
        col, ho, wo = im2col(pad_hw(a, 1, 1), 3, 3)
        yv = jnp.dot(col, w_ref[...], preferred_element_type=f32)        # (ho*wo, 2*Cout)
        yv = jnp.maximum(yv * s_ref[...] + t_ref[...], 0.0)
        cout = yv.shape[-1] // 2
        even = yv[:, :cout].reshape(ho, wo, cout)                        # output cols 0,2,..
        odd = yv[:, cout:].reshape(ho, wo, cout)                         # output cols 1,3,..
        return jnp.stack([even, odd], axis=2).reshape(ho, 2 * wo, cout)

    x = up_conv(x, wdec_ref, sdec_ref, tdec_ref)      # (H, W//4, 128)
    x = up_conv(x, wct1_ref, sct1_ref, tct1_ref)      # (H, W//2, 64)  [aud32 | sei32]
    x = up_conv(x, wct2_ref, sct2_ref, tct2_ref)      # (H, W,    32)  [aud16 | sei16]

    # ---- final Conv2d(16->1, (3,5), 'same'), both branches fused to Cout=2,
    # written lane-dense as (2, H*W).
    col, _, _ = im2col(pad_hw(x, 1, 2), 3, 5)                            # (H*W, 15*32)
    out = jnp.dot(wfin_ref[...], col.T, preferred_element_type=f32)      # (2, H*W)
    o_ref[0] = out + bfin_ref[...]


# --------------------------- weight preprocessing ----------------------------

def _phase_combine_convT(wt):
    """ConvTranspose2d weight (Cin, Cout, 3, 5) with stride (1,2), pad (1,2),
    out_pad (0,1) -> flat (3*3*Cin, 2*Cout) weight of the equivalent stride-1
    3x3 conv on the (1,1)-padded un-upsampled input.  Output columns
    [:Cout] -> even output columns, [Cout:] -> odd output columns."""
    cin, cout, kh, _ = wt.shape
    wf = jnp.flip(wt, axis=(2, 3)).transpose(2, 3, 0, 1)         # (3, 5, Cin, Cout)
    even = wf[:, 0::2]                                           # taps kw = 0, 2, 4
    odd = jnp.concatenate(
        [jnp.zeros((kh, 1, cin, cout), wf.dtype), wf[:, 1::2]], axis=1)  # -, 1, 3
    wc = jnp.concatenate([even, odd], axis=-1)                   # (3, 3, Cin, 2*Cout)
    return wc.reshape(kh * 3 * cin, 2 * cout)


def _block_diag_convT(wa, wb):
    """Fuse two ConvTranspose2d weights (Cin, Cout, kh, kw) into one
    block-diagonal (2Cin, 2Cout, kh, kw) weight (aud first, then sei)."""
    z = jnp.zeros_like(wa)
    return jnp.concatenate([jnp.concatenate([wa, z], axis=1),
                            jnp.concatenate([z, wb], axis=1)], axis=0)


def _fuse_final_conv(wa, wb):
    """Fuse the two Conv2d(16->1,(3,5)) weights (1,16,3,5) into a (2, 15*32)
    matrix laid out for the lane-dense (2, H*W) output matmul."""
    z = jnp.zeros_like(wa)
    w = jnp.concatenate([jnp.concatenate([wa, z], axis=1),
                         jnp.concatenate([z, wb], axis=1)], axis=0)      # (2, 32, 3, 5)
    wflat = w.transpose(2, 3, 1, 0).reshape(-1, 2)                       # rows: (kh, kw, ci)
    return wflat.T                                                       # (2, 480)


# ----------------------------- forward pass ----------------------------------

def decoder_forward(params, z, y, spect_shape):
    # TODO(synk): train-mode Dropout(p=0.3) and batch-statistics BatchNorm have
    # no deterministic Pallas equivalent here; eval-mode semantics implemented.
    H, W = spect_shape
    W8 = W // 8
    B, nhid = z.shape
    ncond = y.shape[1]

    # -- trace-time parameter folding (tiny XLA ops on the weights only) ------
    def perm_cols(w):    # permute FC output columns from (c, ih, iw) to NHWC
        return w.reshape(-1, 64, H, W8).transpose(0, 2, 3, 1).reshape(w.shape[0], -1)

    def perm_vec(v):
        return v.reshape(64, H, W8).transpose(1, 2, 0).reshape(1, -1)

    fc_w = perm_cols(params['fc_w'])
    wz, wy = fc_w[:nhid], fc_w[nhid:]
    fb, fs, ft = (perm_vec(params['fc_b']), perm_vec(params['fc_scale']),
                  perm_vec(params['fc_shift']))

    def dup(v):          # BN vec for a phase-combined layer: (C,) -> (1, 2C)
        return jnp.concatenate([v, v]).reshape(1, -1)

    wdec = _phase_combine_convT(params['dec_w'])                         # (576, 256)
    sdec, tdec = dup(params['dec_scale']), dup(params['dec_shift'])

    aud, sei = params['aud'], params['sei']
    wct1 = _phase_combine_convT(_block_diag_convT(aud['ct1_w'], sei['ct1_w']))  # (1152, 128)
    sct1 = dup(jnp.concatenate([aud['ct1_scale'], sei['ct1_scale']]))
    tct1 = dup(jnp.concatenate([aud['ct1_shift'], sei['ct1_shift']]))

    wct2 = _phase_combine_convT(_block_diag_convT(aud['ct2_w'], sei['ct2_w']))  # (576, 64)
    sct2 = dup(jnp.concatenate([aud['ct2_scale'], sei['ct2_scale']]))
    tct2 = dup(jnp.concatenate([aud['ct2_shift'], sei['ct2_shift']]))

    wfin = _fuse_final_conv(aud['conv_w'], sei['conv_w'])                # (2, 480)
    bfin = jnp.concatenate([aud['conv_b'], sei['conv_b']]).reshape(2, 1)

    weights = [wz, wy, fb, fs, ft, wdec, sdec, tdec,
               wct1, sct1, tct1, wct2, sct2, tct2, wfin, bfin]

    z3 = z.reshape(B, 1, nhid)
    y3 = y.reshape(B, 1, ncond)

    kernel = functools.partial(_decoder_kernel, H=H, W8=W8)
    out = pl.pallas_call(
        kernel,
        out_shape=jax.ShapeDtypeStruct((B, 2, H * W), jnp.float32),
        grid=(B,),
        in_specs=[pl.BlockSpec((1, 1, nhid), lambda b: (b, 0, 0)),
                  pl.BlockSpec((1, 1, ncond), lambda b: (b, 0, 0))]
                 + [pl.BlockSpec(w.shape, lambda b: (0, 0)) for w in weights],
        out_specs=pl.BlockSpec((1, 2, H * W), lambda b: (b, 0, 0)),
        compiler_params=pltpu.CompilerParams(
            dimension_semantics=("parallel",),
            vmem_limit_bytes=32 * 1024 * 1024),
    )(z3, y3, *weights)
    return out.reshape(B, 2, H, W)


# ----------------------------- parameters -----------------------------------

def _bn_fold(gamma, beta, mean, var):
    scale = gamma * jax.lax.rsqrt(var + BN_EPS)
    return scale, beta - mean * scale


def init_decoder_params(key, spect_shape, nhid, ncond):
    H, W = spect_shape
    d_fc = 64 * H * W // 8
    ks = iter(jax.random.split(key, 40))

    def nrm(shape, s=0.05):
        return (s * jax.random.normal(next(ks), shape)).astype(jnp.float32)

    def bn(c):
        gamma = 1.0 + nrm((c,))
        beta = nrm((c,))
        mean = nrm((c,))
        var = 1.0 + jnp.abs(nrm((c,)))
        return _bn_fold(gamma, beta, mean, var)

    p = {
        'fc_w': nrm((ncond + nhid, d_fc)),            # Linear weight (Din, Dout)
        'fc_b': nrm((d_fc,)),
        'dec_w': nrm((64, 128, 3, 5)),                # ConvTranspose2d (Cin,Cout,kH,kW)
    }
    p['fc_scale'], p['fc_shift'] = bn(d_fc)
    p['dec_scale'], p['dec_shift'] = bn(128)
    for name in ('aud', 'sei'):
        q = {
            'ct1_w': nrm((64, 32, 3, 5)),
            'ct2_w': nrm((32, 16, 3, 5)),
            'conv_w': nrm((1, 16, 3, 5)),             # Conv2d (Cout,Cin,kH,kW)
            'conv_b': nrm((1,)),
        }
        q['ct1_scale'], q['ct1_shift'] = bn(32)
        q['ct2_scale'], q['ct2_shift'] = bn(16)
        p[name] = q
    return p


# ----------------------- pure-JAX reference (self check) ---------------------

def _ref_decoder(params, z, y, spect_shape):
    """XLA reference mirroring the verified zero-insertion formulation."""
    HI = jax.lax.Precision.HIGHEST
    H, W = spect_shape
    B = z.shape[0]

    def convT(x, wt, scale, shift):                   # x: NHWC
        Bn, Hh, Wc, _ = x.shape
        _, Cout, KH, KW = wt.shape
        up = jnp.zeros((Bn, Hh, 2 * Wc, x.shape[-1]), x.dtype).at[:, :, 0::2, :].set(x)
        xp = jnp.pad(up, ((0, 0), (1, 1), (2, 2), (0, 0)))
        wf = jnp.flip(wt, axis=(2, 3)).transpose(2, 3, 0, 1)
        acc = jnp.zeros((Bn, Hh, 2 * Wc, Cout), jnp.float32)
        for kh in range(KH):
            for kw in range(KW):
                acc += jnp.einsum('bhwc,cd->bhwd', xp[:, kh:kh + Hh, kw:kw + 2 * Wc, :],
                                  wf[kh, kw], precision=HI)
        return jnp.maximum(acc * scale + shift, 0.0)

    def conv_same(x, w_oihw, bias):
        Bn, Hh, Wc, _ = x.shape
        Cout, _, KH, KW = w_oihw.shape
        xp = jnp.pad(x, ((0, 0), (1, 1), (2, 2), (0, 0)))
        wf = w_oihw.transpose(2, 3, 1, 0)
        acc = jnp.zeros((Bn, Hh, Wc, Cout), jnp.float32)
        for kh in range(KH):
            for kw in range(KW):
                acc += jnp.einsum('bhwc,cd->bhwd', xp[:, kh:kh + Hh, kw:kw + Wc, :],
                                  wf[kh, kw], precision=HI)
        return acc + bias

    zy = jnp.concatenate([z, y], axis=1)
    h = jnp.dot(zy, params['fc_w'], precision=HI) + params['fc_b']
    h = jnp.maximum(h * params['fc_scale'] + params['fc_shift'], 0.0)
    h = h.reshape(B, 64, H, W // 8).transpose(0, 2, 3, 1)
    h = convT(h, params['dec_w'], params['dec_scale'], params['dec_shift'])
    za, zs = h[..., :64], h[..., 64:]

    def branch(x, q):
        x = convT(x, q['ct1_w'], q['ct1_scale'], q['ct1_shift'])
        x = convT(x, q['ct2_w'], q['ct2_scale'], q['ct2_shift'])
        return conv_same(x, q['conv_w'], q['conv_b'])

    a = branch(za, params['aud'])
    s = branch(zs, params['sei'])
    return jnp.concatenate([a, s], axis=-1).transpose(0, 3, 1, 2)


# ----------------------------- main ------------------------------------------

if __name__ == "__main__":
    spect_shape = (8, 16)      # (H, W); W divisible by 8; H*W = 128 lanes
    nhid, ncond, batch = 32, 16, 2

    key = jax.random.PRNGKey(0)
    kp, kz, ky = jax.random.split(key, 3)
    params = init_decoder_params(kp, spect_shape, nhid, ncond)
    z = jax.random.normal(kz, (batch, nhid), jnp.float32)
    y = jax.random.normal(ky, (batch, ncond), jnp.float32)

    fwd = jax.jit(functools.partial(decoder_forward, spect_shape=spect_shape))
    out = jax.block_until_ready(fwd(params, z, y))

    assert out.shape == (batch, 2, spect_shape[0], spect_shape[1]), out.shape
    assert out.dtype == jnp.float32
    assert bool(jnp.all(jnp.isfinite(out)))

    ref = _ref_decoder(params, z, y, spect_shape)
    assert bool(jnp.allclose(out, ref, atol=3e-3, rtol=3e-2)), \
        float(jnp.max(jnp.abs(out - ref)))

    print("KERNEL_OK")
</pallas_src>

<mosaic_0001>
module attributes {stable_mosaic.version = 11 : i64} {
  func.func @_decoder_kernel(%arg0: i32, %arg1: memref<1x1x32xf32, #tpu.memory_space<vmem>>, %arg2: memref<1x1x16xf32, #tpu.memory_space<vmem>>, %arg3: memref<32x1024xf32, #tpu.memory_space<vmem>>, %arg4: memref<16x1024xf32, #tpu.memory_space<vmem>>, %arg5: memref<1x1024xf32, #tpu.memory_space<vmem>>, %arg6: memref<1x1024xf32, #tpu.memory_space<vmem>>, %arg7: memref<1x1024xf32, #tpu.memory_space<vmem>>, %arg8: memref<576x256xf32, #tpu.memory_space<vmem>>, %arg9: memref<1x256xf32, #tpu.memory_space<vmem>>, %arg10: memref<1x256xf32, #tpu.memory_space<vmem>>, %arg11: memref<1152x128xf32, #tpu.memory_space<vmem>>, %arg12: memref<1x128xf32, #tpu.memory_space<vmem>>, %arg13: memref<1x128xf32, #tpu.memory_space<vmem>>, %arg14: memref<576x64xf32, #tpu.memory_space<vmem>>, %arg15: memref<1x64xf32, #tpu.memory_space<vmem>>, %arg16: memref<1x64xf32, #tpu.memory_space<vmem>>, %arg17: memref<2x480xf32, #tpu.memory_space<vmem>>, %arg18: memref<2x1xf32, #tpu.memory_space<vmem>>, %arg19: memref<1x2x128xf32, #tpu.memory_space<vmem>>) attributes {dimension_semantics = [#tpu.dimension_semantics<parallel>], iteration_bounds = array<i64: 2>, scalar_prefetch = 0 : i64, scratch_operands = 0 : i64, tpu.core_type = #tpu.core_type<tc>, window_params = [{transform_indices = @transform_0, window_bounds = array<i64: 1, 1, 32>}, {transform_indices = @transform_1, window_bounds = array<i64: 1, 1, 16>}, {pipeline_mode = #tpu.pipeline_mode<synchronous>, transform_indices = @transform_2, window_bounds = array<i64: 32, 1024>}, {pipeline_mode = #tpu.pipeline_mode<synchronous>, transform_indices = @transform_3, window_bounds = array<i64: 16, 1024>}, {pipeline_mode = #tpu.pipeline_mode<synchronous>, transform_indices = @transform_4, window_bounds = array<i64: 1, 1024>}, {pipeline_mode = #tpu.pipeline_mode<synchronous>, transform_indices = @transform_5, window_bounds = array<i64: 1, 1024>}, {pipeline_mode = #tpu.pipeline_mode<synchronous>, transform_indices = @transform_6, window_bounds = array<i64: 1, 1024>}, {pipeline_mode = #tpu.pipeline_mode<synchronous>, transform_indices = @transform_7, window_bounds = array<i64: 576, 256>}, {pipeline_mode = #tpu.pipeline_mode<synchronous>, transform_indices = @transform_8, window_bounds = array<i64: 1, 256>}, {pipeline_mode = #tpu.pipeline_mode<synchronous>, transform_indices = @transform_9, window_bounds = array<i64: 1, 256>}, {pipeline_mode = #tpu.pipeline_mode<synchronous>, transform_indices = @transform_10, window_bounds = array<i64: 1152, 128>}, {pipeline_mode = #tpu.pipeline_mode<synchronous>, transform_indices = @transform_11, window_bounds = array<i64: 1, 128>}, {pipeline_mode = #tpu.pipeline_mode<synchronous>, transform_indices = @transform_12, window_bounds = array<i64: 1, 128>}, {pipeline_mode = #tpu.pipeline_mode<synchronous>, transform_indices = @transform_13, window_bounds = array<i64: 576, 64>}, {pipeline_mode = #tpu.pipeline_mode<synchronous>, transform_indices = @transform_14, window_bounds = array<i64: 1, 64>}, {pipeline_mode = #tpu.pipeline_mode<synchronous>, transform_indices = @transform_15, window_bounds = array<i64: 1, 64>}, {pipeline_mode = #tpu.pipeline_mode<synchronous>, transform_indices = @transform_16, window_bounds = array<i64: 2, 480>}, {pipeline_mode = #tpu.pipeline_mode<synchronous>, transform_indices = @transform_17, window_bounds = array<i64: 2, 1>}, {transform_indices = @transform_18, window_bounds = array<i64: 1, 2, 128>}]} {
    %c0 = arith.constant 0 : index
    %c0_0 = arith.constant 0 : index
    %c0_1 = arith.constant 0 : index
    %0 = vector.load %arg1[%c0, %c0_0, %c0_1] : memref<1x1x32xf32, #tpu.memory_space<vmem>>, vector<1x1x32xf32>
    %1 = vector.shape_cast %0 : vector<1x1x32xf32> to vector<1x32xf32>
    %c0_2 = arith.constant 0 : index
    %c0_3 = arith.constant 0 : index
    %2 = vector.load %arg3[%c0_2, %c0_3] : memref<32x1024xf32, #tpu.memory_space<vmem>>, vector<32x1024xf32>
    %cst = arith.constant dense<0.000000e+00> : vector<1x1024xf32>
    %3 = tpu.matmul %1, %2, %cst {dimension_numbers = #tpu.dot_dimension_numbers<[1], [0], [0], [1], [0, 0, 1, 1], [], []>} : vector<1x32xf32>, vector<32x1024xf32>, vector<1x1024xf32> -> vector<1x1024xf32>
    %c0_4 = arith.constant 0 : index
    %c0_5 = arith.constant 0 : index
    %c0_6 = arith.constant 0 : index
    %4 = vector.load %arg2[%c0_4, %c0_5, %c0_6] : memref<1x1x16xf32, #tpu.memory_space<vmem>>, vector<1x1x16xf32>
    %5 = vector.shape_cast %4 : vector<1x1x16xf32> to vector<1x16xf32>
    %c0_7 = arith.constant 0 : index
    %c0_8 = arith.constant 0 : index
    %6 = vector.load %arg4[%c0_7, %c0_8] : memref<16x1024xf32, #tpu.memory_space<vmem>>, vector<16x1024xf32>
    %cst_9 = arith.constant dense<0.000000e+00> : vector<1x1024xf32>
    %7 = tpu.matmul %5, %6, %cst_9 {dimension_numbers = #tpu.dot_dimension_numbers<[1], [0], [0], [1], [0, 0, 1, 1], [], []>} : vector<1x16xf32>, vector<16x1024xf32>, vector<1x1024xf32> -> vector<1x1024xf32>
    %8 = arith.addf %3, %7 : vector<1x1024xf32>
    %c0_10 = arith.constant 0 : index
    %c0_11 = arith.constant 0 : index
    %9 = vector.load %arg5[%c0_10, %c0_11] : memref<1x1024xf32, #tpu.memory_space<vmem>>, vector<1x1024xf32>
    %10 = arith.addf %8, %9 : vector<1x1024xf32>
    %c0_12 = arith.constant 0 : index
    %c0_13 = arith.constant 0 : index
    %11 = vector.load %arg6[%c0_12, %c0_13] : memref<1x1024xf32, #tpu.memory_space<vmem>>, vector<1x1024xf32>
    %12 = arith.mulf %10, %11 : vector<1x1024xf32>
    %c0_14 = arith.constant 0 : index
    %c0_15 = arith.constant 0 : index
    %13 = vector.load %arg7[%c0_14, %c0_15] : memref<1x1024xf32, #tpu.memory_space<vmem>>, vector<1x1024xf32>
    %14 = arith.addf %12, %13 : vector<1x1024xf32>
    %cst_16 = arith.constant 0.000000e+00 : f32
    %15 = vector.broadcast %cst_16 : f32 to vector<1x1024xf32>
    %16 = arith.maximumf %14, %15 : vector<1x1024xf32>
    %17 = vector.extract_strided_slice %16 {offsets = [0, 0], sizes = [1, 64], strides = [1, 1]} : vector<1x1024xf32> to vector<1x64xf32>
    %18 = vector.extract_strided_slice %16 {offsets = [0, 64], sizes = [1, 64], strides = [1, 1]} : vector<1x1024xf32> to vector<1x64xf32>
    %19 = vector.extract_strided_slice %16 {offsets = [0, 128], sizes = [1, 64], strides = [1, 1]} : vector<1x1024xf32> to vector<1x64xf32>
    %20 = vector.extract_strided_slice %16 {offsets = [0, 192], sizes = [1, 64], strides = [1, 1]} : vector<1x1024xf32> to vector<1x64xf32>
    %21 = vector.extract_strided_slice %16 {offsets = [0, 256], sizes = [1, 64], strides = [1, 1]} : vector<1x1024xf32> to vector<1x64xf32>
    %22 = vector.extract_strided_slice %16 {offsets = [0, 320], sizes = [1, 64], strides = [1, 1]} : vector<1x1024xf32> to vector<1x64xf32>
    %23 = vector.extract_strided_slice %16 {offsets = [0, 384], sizes = [1, 64], strides = [1, 1]} : vector<1x1024xf32> to vector<1x64xf32>
    %24 = vector.extract_strided_slice %16 {offsets = [0, 448], sizes = [1, 64], strides = [1, 1]} : vector<1x1024xf32> to vector<1x64xf32>
    %25 = vector.extract_strided_slice %16 {offsets = [0, 512], sizes = [1, 64], strides = [1, 1]} : vector<1x1024xf32> to vector<1x64xf32>
    %26 = vector.extract_strided_slice %16 {offsets = [0, 576], sizes = [1, 64], strides = [1, 1]} : vector<1x1024xf32> to vector<1x64xf32>
    %27 = vector.extract_strided_slice %16 {offsets = [0, 640], sizes = [1, 64], strides = [1, 1]} : vector<1x1024xf32> to vector<1x64xf32>
    %28 = vector.extract_strided_slice %16 {offsets = [0, 704], sizes = [1, 64], strides = [1, 1]} : vector<1x1024xf32> to vector<1x64xf32>
    %29 = vector.extract_strided_slice %16 {offsets = [0, 768], sizes = [1, 64], strides = [1, 1]} : vector<1x1024xf32> to vector<1x64xf32>
    %30 = vector.extract_strided_slice %16 {offsets = [0, 832], sizes = [1, 64], strides = [1, 1]} : vector<1x1024xf32> to vector<1x64xf32>
    %31 = vector.extract_strided_slice %16 {offsets = [0, 896], sizes = [1, 64], strides = [1, 1]} : vector<1x1024xf32> to vector<1x64xf32>
    %32 = vector.extract_strided_slice %16 {offsets = [0, 960], sizes = [1, 64], strides = [1, 1]} : vector<1x1024xf32> to vector<1x64xf32>
    %33 = tpu.concatenate %17, %18, %19, %20, %21, %22, %23, %24, %25, %26, %27, %28, %29, %30, %31, %32 in 0 : vector<1x64xf32>, vector<1x64xf32>, vector<1x64xf32>, vector<1x64xf32>, vector<1x64xf32>, vector<1x64xf32>, vector<1x64xf32>, vector<1x64xf32>, vector<1x64xf32>, vector<1x64xf32>, vector<1x64xf32>, vector<1x64xf32>, vector<1x64xf32>, vector<1x64xf32>, vector<1x64xf32>, vector<1x64xf32> -> vector<16x64xf32>
    %34 = vector.shape_cast %33 : vector<16x64xf32> to vector<8x2x64xf32>
    %cst_17 = arith.constant 0.000000e+00 : f32
    %35 = vector.broadcast %cst_17 : f32 to vector<8x1x64xf32>
    %36 = tpu.concatenate %35, %34, %35 in 1 : vector<8x1x64xf32>, vector<8x2x64xf32>, vector<8x1x64xf32> -> vector<8x4x64xf32>
    %cst_18 = arith.constant 0.000000e+00 : f32
    %37 = vector.broadcast %cst_18 : f32 to vector<1x4x64xf32>
    %38 = tpu.concatenate %37, %36, %37 in 0 : vector<1x4x64xf32>, vector<8x4x64xf32>, vector<1x4x64xf32> -> vector<10x4x64xf32>
    %39 = vector.extract_strided_slice %38 {offsets = [0, 0, 0], sizes = [8, 2, 64], strides = [1, 1, 1]} : vector<10x4x64xf32> to vector<8x2x64xf32>
    %40 = vector.extract_strided_slice %38 {offsets = [0, 1, 0], sizes = [8, 2, 64], strides = [1, 1, 1]} : vector<10x4x64xf32> to vector<8x2x64xf32>
    %41 = vector.extract_strided_slice %38 {offsets = [0, 2, 0], sizes = [8, 2, 64], strides = [1, 1, 1]} : vector<10x4x64xf32> to vector<8x2x64xf32>
    %42 = vector.extract_strided_slice %38 {offsets = [1, 0, 0], sizes = [8, 2, 64], strides = [1, 1, 1]} : vector<10x4x64xf32> to vector<8x2x64xf32>
    %43 = vector.extract_strided_slice %38 {offsets = [1, 1, 0], sizes = [8, 2, 64], strides = [1, 1, 1]} : vector<10x4x64xf32> to vector<8x2x64xf32>
    %44 = vector.extract_strided_slice %38 {offsets = [1, 2, 0], sizes = [8, 2, 64], strides = [1, 1, 1]} : vector<10x4x64xf32> to vector<8x2x64xf32>
    %45 = vector.extract_strided_slice %38 {offsets = [2, 0, 0], sizes = [8, 2, 64], strides = [1, 1, 1]} : vector<10x4x64xf32> to vector<8x2x64xf32>
    %46 = vector.extract_strided_slice %38 {offsets = [2, 1, 0], sizes = [8, 2, 64], strides = [1, 1, 1]} : vector<10x4x64xf32> to vector<8x2x64xf32>
    %47 = vector.extract_strided_slice %38 {offsets = [2, 2, 0], sizes = [8, 2, 64], strides = [1, 1, 1]} : vector<10x4x64xf32> to vector<8x2x64xf32>
    %48 = tpu.concatenate %39, %40, %41, %42, %43, %44, %45, %46, %47 in 2 : vector<8x2x64xf32>, vector<8x2x64xf32>, vector<8x2x64xf32>, vector<8x2x64xf32>, vector<8x2x64xf32>, vector<8x2x64xf32>, vector<8x2x64xf32>, vector<8x2x64xf32>, vector<8x2x64xf32> -> vector<8x2x576xf32>
    %49 = vector.shape_cast %48 : vector<8x2x576xf32> to vector<16x576xf32>
    %c0_19 = arith.constant 0 : index
    %c0_20 = arith.constant 0 : index
    %50 = vector.load %arg8[%c0_19, %c0_20] : memref<576x256xf32, #tpu.memory_space<vmem>>, vector<576x256xf32>
    %cst_21 = arith.constant dense<0.000000e+00> : vector<16x256xf32>
    %51 = tpu.matmul %49, %50, %cst_21 {dimension_numbers = #tpu.dot_dimension_numbers<[1], [0], [0], [1], [0, 0, 1, 1], [], []>} : vector<16x576xf32>, vector<576x256xf32>, vector<16x256xf32> -> vector<16x256xf32>
    %c0_22 = arith.constant 0 : index
    %c0_23 = arith.constant 0 : index
    %52 = vector.load %arg9[%c0_22, %c0_23] : memref<1x256xf32, #tpu.memory_space<vmem>>, vector<1x256xf32>
    %53 = vector.broadcast %52 : vector<1x256xf32> to vector<16x256xf32>
    %54 = arith.mulf %51, %53 : vector<16x256xf32>
    %c0_24 = arith.constant 0 : index
    %c0_25 = arith.constant 0 : index
    %55 = vector.load %arg10[%c0_24, %c0_25] : memref<1x256xf32, #tpu.memory_space<vmem>>, vector<1x256xf32>
    %56 = vector.broadcast %55 : vector<1x256xf32> to vector<16x256xf32>
    %57 = arith.addf %54, %56 : vector<16x256xf32>
    %cst_26 = arith.constant 0.000000e+00 : f32
    %58 = vector.broadcast %cst_26 : f32 to vector<16x256xf32>
    %59 = arith.maximumf %57, %58 : vector<16x256xf32>
    %60 = vector.extract_strided_slice %59 {offsets = [0, 0], sizes = [16, 128], strides = [1, 1]} : vector<16x256xf32> to vector<16x128xf32>
    %61 = vector.shape_cast %60 : vector<16x128xf32> to vector<8x2x128xf32>
    %62 = vector.extract_strided_slice %59 {offsets = [0, 128], sizes = [16, 128], strides = [1, 1]} : vector<16x256xf32> to vector<16x128xf32>
    %63 = vector.shape_cast %62 : vector<16x128xf32> to vector<8x2x128xf32>
    %64 = vector.shape_cast %61 : vector<8x2x128xf32> to vector<8x2x1x128xf32>
    %65 = vector.shape_cast %63 : vector<8x2x128xf32> to vector<8x2x1x128xf32>
    %66 = tpu.concatenate %64, %65 in 2 : vector<8x2x1x128xf32>, vector<8x2x1x128xf32> -> vector<8x2x2x128xf32>
    %67 = vector.shape_cast %66 : vector<8x2x2x128xf32> to vector<8x4x128xf32>
    %cst_27 = arith.constant 0.000000e+00 : f32
    %68 = vector.broadcast %cst_27 : f32 to vector<8x1x128xf32>
    %69 = tpu.concatenate %68, %67, %68 in 1 : vector<8x1x128xf32>, vector<8x4x128xf32>, vector<8x1x128xf32> -> vector<8x6x128xf32>
    %cst_28 = arith.constant 0.000000e+00 : f32
    %70 = vector.broadcast %cst_28 : f32 to vector<1x6x128xf32>
    %71 = tpu.concatenate %70, %69, %70 in 0 : vector<1x6x128xf32>, vector<8x6x128xf32>, vector<1x6x128xf32> -> vector<10x6x128xf32>
    %72 = vector.extract_strided_slice %71 {offsets = [0, 0, 0], sizes = [8, 4, 128], strides = [1, 1, 1]} : vector<10x6x128xf32> to vector<8x4x128xf32>
    %73 = vector.extract_strided_slice %71 {offsets = [0, 1, 0], sizes = [8, 4, 128], strides = [1, 1, 1]} : vector<10x6x128xf32> to vector<8x4x128xf32>
    %74 = vector.extract_strided_slice %71 {offsets = [0, 2, 0], sizes = [8, 4, 128], strides = [1, 1, 1]} : vector<10x6x128xf32> to vector<8x4x128xf32>
    %75 = vector.extract_strided_slice %71 {offsets = [1, 0, 0], sizes = [8, 4, 128], strides = [1, 1, 1]} : vector<10x6x128xf32> to vector<8x4x128xf32>
    %76 = vector.extract_strided_slice %71 {offsets = [1, 1, 0], sizes = [8, 4, 128], strides = [1, 1, 1]} : vector<10x6x128xf32> to vector<8x4x128xf32>
    %77 = vector.extract_strided_slice %71 {offsets = [1, 2, 0], sizes = [8, 4, 128], strides = [1, 1, 1]} : vector<10x6x128xf32> to vector<8x4x128xf32>
    %78 = vector.extract_strided_slice %71 {offsets = [2, 0, 0], sizes = [8, 4, 128], strides = [1, 1, 1]} : vector<10x6x128xf32> to vector<8x4x128xf32>
    %79 = vector.extract_strided_slice %71 {offsets = [2, 1, 0], sizes = [8, 4, 128], strides = [1, 1, 1]} : vector<10x6x128xf32> to vector<8x4x128xf32>
    %80 = vector.extract_strided_slice %71 {offsets = [2, 2, 0], sizes = [8, 4, 128], strides = [1, 1, 1]} : vector<10x6x128xf32> to vector<8x4x128xf32>
    %81 = tpu.concatenate %72, %73, %74, %75, %76, %77, %78, %79, %80 in 2 : vector<8x4x128xf32>, vector<8x4x128xf32>, vector<8x4x128xf32>, vector<8x4x128xf32>, vector<8x4x128xf32>, vector<8x4x128xf32>, vector<8x4x128xf32>, vector<8x4x128xf32>, vector<8x4x128xf32> -> vector<8x4x1152xf32>
    %82 = vector.shape_cast %81 : vector<8x4x1152xf32> to vector<32x1152xf32>
    %c0_29 = arith.constant 0 : index
    %c0_30 = arith.constant 0 : index
    %83 = vector.load %arg11[%c0_29, %c0_30] : memref<1152x128xf32, #tpu.memory_space<vmem>>, vector<1152x128xf32>
    %cst_31 = arith.constant dense<0.000000e+00> : vector<32x128xf32>
    %84 = tpu.matmul %82, %83, %cst_31 {dimension_numbers = #tpu.dot_dimension_numbers<[1], [0], [0], [1], [0, 0, 1, 1], [], []>} : vector<32x1152xf32>, vector<1152x128xf32>, vector<32x128xf32> -> vector<32x128xf32>
    %c0_32 = arith.constant 0 : index
    %c0_33 = arith.constant 0 : index
    %85 = vector.load %arg12[%c0_32, %c0_33] : memref<1x128xf32, #tpu.memory_space<vmem>>, vector<1x128xf32>
    %86 = vector.broadcast %85 : vector<1x128xf32> to vector<32x128xf32>
    %87 = arith.mulf %84, %86 : vector<32x128xf32>
    %c0_34 = arith.constant 0 : index
    %c0_35 = arith.constant 0 : index
    %88 = vector.load %arg13[%c0_34, %c0_35] : memref<1x128xf32, #tpu.memory_space<vmem>>, vector<1x128xf32>
    %89 = vector.broadcast %88 : vector<1x128xf32> to vector<32x128xf32>
    %90 = arith.addf %87, %89 : vector<32x128xf32>
    %cst_36 = arith.constant 0.000000e+00 : f32
    %91 = vector.broadcast %cst_36 : f32 to vector<32x128xf32>
    %92 = arith.maximumf %90, %91 : vector<32x128xf32>
    %93 = vector.extract_strided_slice %92 {offsets = [0, 0], sizes = [32, 64], strides = [1, 1]} : vector<32x128xf32> to vector<32x64xf32>
    %94 = vector.shape_cast %93 : vector<32x64xf32> to vector<8x4x64xf32>
    %95 = vector.extract_strided_slice %92 {offsets = [0, 64], sizes = [32, 64], strides = [1, 1]} : vector<32x128xf32> to vector<32x64xf32>
    %96 = vector.shape_cast %95 : vector<32x64xf32> to vector<8x4x64xf32>
    %97 = vector.shape_cast %94 : vector<8x4x64xf32> to vector<8x4x1x64xf32>
    %98 = vector.shape_cast %96 : vector<8x4x64xf32> to vector<8x4x1x64xf32>
    %99 = tpu.concatenate %97, %98 in 2 : vector<8x4x1x64xf32>, vector<8x4x1x64xf32> -> vector<8x4x2x64xf32>
    %100 = vector.shape_cast %99 : vector<8x4x2x64xf32> to vector<8x8x64xf32>
    %cst_37 = arith.constant 0.000000e+00 : f32
    %101 = vector.broadcast %cst_37 : f32 to vector<8x1x64xf32>
    %102 = tpu.concatenate %101, %100, %101 in 1 : vector<8x1x64xf32>, vector<8x8x64xf32>, vector<8x1x64xf32> -> vector<8x10x64xf32>
    %cst_38 = arith.constant 0.000000e+00 : f32
    %103 = vector.broadcast %cst_38 : f32 to vector<1x10x64xf32>
    %104 = tpu.concatenate %103, %102, %103 in 0 : vector<1x10x64xf32>, vector<8x10x64xf32>, vector<1x10x64xf32> -> vector<10x10x64xf32>
    %105 = vector.extract_strided_slice %104 {offsets = [0, 0, 0], sizes = [8, 8, 64], strides = [1, 1, 1]} : vector<10x10x64xf32> to vector<8x8x64xf32>
    %106 = vector.extract_strided_slice %104 {offsets = [0, 1, 0], sizes = [8, 8, 64], strides = [1, 1, 1]} : vector<10x10x64xf32> to vector<8x8x64xf32>
    %107 = vector.extract_strided_slice %104 {offsets = [0, 2, 0], sizes = [8, 8, 64], strides = [1, 1, 1]} : vector<10x10x64xf32> to vector<8x8x64xf32>
    %108 = vector.extract_strided_slice %104 {offsets = [1, 0, 0], sizes = [8, 8, 64], strides = [1, 1, 1]} : vector<10x10x64xf32> to vector<8x8x64xf32>
    %109 = vector.extract_strided_slice %104 {offsets = [1, 1, 0], sizes = [8, 8, 64], strides = [1, 1, 1]} : vector<10x10x64xf32> to vector<8x8x64xf32>
    %110 = vector.extract_strided_slice %104 {offsets = [1, 2, 0], sizes = [8, 8, 64], strides = [1, 1, 1]} : vector<10x10x64xf32> to vector<8x8x64xf32>
    %111 = vector.extract_strided_slice %104 {offsets = [2, 0, 0], sizes = [8, 8, 64], strides = [1, 1, 1]} : vector<10x10x64xf32> to vector<8x8x64xf32>
    %112 = vector.extract_strided_slice %104 {offsets = [2, 1, 0], sizes = [8, 8, 64], strides = [1, 1, 1]} : vector<10x10x64xf32> to vector<8x8x64xf32>
    %113 = vector.extract_strided_slice %104 {offsets = [2, 2, 0], sizes = [8, 8, 64], strides = [1, 1, 1]} : vector<10x10x64xf32> to vector<8x8x64xf32>
    %114 = tpu.concatenate %105, %106, %107, %108, %109, %110, %111, %112, %113 in 2 : vector<8x8x64xf32>, vector<8x8x64xf32>, vector<8x8x64xf32>, vector<8x8x64xf32>, vector<8x8x64xf32>, vector<8x8x64xf32>, vector<8x8x64xf32>, vector<8x8x64xf32>, vector<8x8x64xf32> -> vector<8x8x576xf32>
    %115 = vector.shape_cast %114 : vector<8x8x576xf32> to vector<64x576xf32>
    %c0_39 = arith.constant 0 : index
    %c0_40 = arith.constant 0 : index
    %116 = vector.load %arg14[%c0_39, %c0_40] : memref<576x64xf32, #tpu.memory_space<vmem>>, vector<576x64xf32>
    %cst_41 = arith.constant dense<0.000000e+00> : vector<64x64xf32>
    %117 = tpu.matmul %115, %116, %cst_41 {dimension_numbers = #tpu.dot_dimension_numbers<[1], [0], [0], [1], [0, 0, 1, 1], [], []>} : vector<64x576xf32>, vector<576x64xf32>, vector<64x64xf32> -> vector<64x64xf32>
    %c0_42 = arith.constant 0 : index
    %c0_43 = arith.constant 0 : index
    %118 = vector.load %arg15[%c0_42, %c0_43] : memref<1x64xf32, #tpu.memory_space<vmem>>, vector<1x64xf32>
    %119 = vector.broadcast %118 : vector<1x64xf32> to vector<64x64xf32>
    %120 = arith.mulf %117, %119 : vector<64x64xf32>
    %c0_44 = arith.constant 0 : index
    %c0_45 = arith.constant 0 : index
    %121 = vector.load %arg16[%c0_44, %c0_45] : memref<1x64xf32, #tpu.memory_space<vmem>>, vector<1x64xf32>
    %122 = vector.broadcast %121 : vector<1x64xf32> to vector<64x64xf32>
    %123 = arith.addf %120, %122 : vector<64x64xf32>
    %cst_46 = arith.constant 0.000000e+00 : f32
    %124 = vector.broadcast %cst_46 : f32 to vector<64x64xf32>
    %125 = arith.maximumf %123, %124 : vector<64x64xf32>
    %126 = vector.extract_strided_slice %125 {offsets = [0, 0], sizes = [64, 32], strides = [1, 1]} : vector<64x64xf32> to vector<64x32xf32>
    %127 = vector.shape_cast %126 : vector<64x32xf32> to vector<8x8x32xf32>
    %128 = vector.extract_strided_slice %125 {offsets = [0, 32], sizes = [64, 32], strides = [1, 1]} : vector<64x64xf32> to vector<64x32xf32>
    %129 = vector.shape_cast %128 : vector<64x32xf32> to vector<8x8x32xf32>
    %130 = vector.shape_cast %127 : vector<8x8x32xf32> to vector<8x8x1x32xf32>
    %131 = vector.shape_cast %129 : vector<8x8x32xf32> to vector<8x8x1x32xf32>
    %132 = tpu.concatenate %130, %131 in 2 : vector<8x8x1x32xf32>, vector<8x8x1x32xf32> -> vector<8x8x2x32xf32>
    %133 = vector.shape_cast %132 : vector<8x8x2x32xf32> to vector<8x16x32xf32>
    %cst_47 = arith.constant 0.000000e+00 : f32
    %134 = vector.broadcast %cst_47 : f32 to vector<8x2x32xf32>
    %135 = tpu.concatenate %134, %133, %134 in 1 : vector<8x2x32xf32>, vector<8x16x32xf32>, vector<8x2x32xf32> -> vector<8x20x32xf32>
    %cst_48 = arith.constant 0.000000e+00 : f32
    %136 = vector.broadcast %cst_48 : f32 to vector<1x20x32xf32>
    %137 = tpu.concatenate %136, %135, %136 in 0 : vector<1x20x32xf32>, vector<8x20x32xf32>, vector<1x20x32xf32> -> vector<10x20x32xf32>
    %138 = vector.extract_strided_slice %137 {offsets = [0, 0, 0], sizes = [8, 16, 32], strides = [1, 1, 1]} : vector<10x20x32xf32> to vector<8x16x32xf32>
    %139 = vector.extract_strided_slice %137 {offsets = [0, 1, 0], sizes = [8, 16, 32], strides = [1, 1, 1]} : vector<10x20x32xf32> to vector<8x16x32xf32>
    %140 = vector.extract_strided_slice %137 {offsets = [0, 2, 0], sizes = [8, 16, 32], strides = [1, 1, 1]} : vector<10x20x32xf32> to vector<8x16x32xf32>
    %141 = vector.extract_strided_slice %137 {offsets = [0, 3, 0], sizes = [8, 16, 32], strides = [1, 1, 1]} : vector<10x20x32xf32> to vector<8x16x32xf32>
    %142 = vector.extract_strided_slice %137 {offsets = [0, 4, 0], sizes = [8, 16, 32], strides = [1, 1, 1]} : vector<10x20x32xf32> to vector<8x16x32xf32>
    %143 = vector.extract_strided_slice %137 {offsets = [1, 0, 0], sizes = [8, 16, 32], strides = [1, 1, 1]} : vector<10x20x32xf32> to vector<8x16x32xf32>
    %144 = vector.extract_strided_slice %137 {offsets = [1, 1, 0], sizes = [8, 16, 32], strides = [1, 1, 1]} : vector<10x20x32xf32> to vector<8x16x32xf32>
    %145 = vector.extract_strided_slice %137 {offsets = [1, 2, 0], sizes = [8, 16, 32], strides = [1, 1, 1]} : vector<10x20x32xf32> to vector<8x16x32xf32>
    %146 = vector.extract_strided_slice %137 {offsets = [1, 3, 0], sizes = [8, 16, 32], strides = [1, 1, 1]} : vector<10x20x32xf32> to vector<8x16x32xf32>
    %147 = vector.extract_strided_slice %137 {offsets = [1, 4, 0], sizes = [8, 16, 32], strides = [1, 1, 1]} : vector<10x20x32xf32> to vector<8x16x32xf32>
    %148 = vector.extract_strided_slice %137 {offsets = [2, 0, 0], sizes = [8, 16, 32], strides = [1, 1, 1]} : vector<10x20x32xf32> to vector<8x16x32xf32>
    %149 = vector.extract_strided_slice %137 {offsets = [2, 1, 0], sizes = [8, 16, 32], strides = [1, 1, 1]} : vector<10x20x32xf32> to vector<8x16x32xf32>
    %150 = vector.extract_strided_slice %137 {offsets = [2, 2, 0], sizes = [8, 16, 32], strides = [1, 1, 1]} : vector<10x20x32xf32> to vector<8x16x32xf32>
    %151 = vector.extract_strided_slice %137 {offsets = [2, 3, 0], sizes = [8, 16, 32], strides = [1, 1, 1]} : vector<10x20x32xf32> to vector<8x16x32xf32>
    %152 = vector.extract_strided_slice %137 {offsets = [2, 4, 0], sizes = [8, 16, 32], strides = [1, 1, 1]} : vector<10x20x32xf32> to vector<8x16x32xf32>
    %153 = tpu.concatenate %138, %139, %140, %141, %142, %143, %144, %145, %146, %147, %148, %149, %150, %151, %152 in 2 : vector<8x16x32xf32>, vector<8x16x32xf32>, vector<8x16x32xf32>, vector<8x16x32xf32>, vector<8x16x32xf32>, vector<8x16x32xf32>, vector<8x16x32xf32>, vector<8x16x32xf32>, vector<8x16x32xf32>, vector<8x16x32xf32>, vector<8x16x32xf32>, vector<8x16x32xf32>, vector<8x16x32xf32>, vector<8x16x32xf32>, vector<8x16x32xf32> -> vector<8x16x480xf32>
    %154 = vector.shape_cast %153 : vector<8x16x480xf32> to vector<128x480xf32>
    %c0_49 = arith.constant 0 : index
    %c0_50 = arith.constant 0 : index
    %155 = vector.load %arg17[%c0_49, %c0_50] : memref<2x480xf32, #tpu.memory_space<vmem>>, vector<2x480xf32>
    %156 = tpu.transpose %154, [1, 0] : vector<128x480xf32> -> vector<480x128xf32>
    %cst_51 = arith.constant dense<0.000000e+00> : vector<2x128xf32>
    %157 = tpu.matmul %155, %156, %cst_51 {dimension_numbers = #tpu.dot_dimension_numbers<[1], [0], [0], [1], [0, 0, 1, 1], [], []>} : vector<2x480xf32>, vector<480x128xf32>, vector<2x128xf32> -> vector<2x128xf32>
    %c0_52 = arith.constant 0 : index
    %c0_53 = arith.constant 0 : index
    %158 = vector.load %arg18[%c0_52, %c0_53] : memref<2x1xf32, #tpu.memory_space<vmem>>, vector<2x1xf32>
    %159 = vector.broadcast %158 : vector<2x1xf32> to vector<2x128xf32>
    %160 = arith.addf %157, %159 : vector<2x128xf32>
    %c0_54 = arith.constant 0 : index
    %c0_55 = arith.constant 0 : index
    %c0_56 = arith.constant 0 : index
    %161 = vector.load %arg19[%c0_54, %c0_55, %c0_56] : memref<1x2x128xf32, #tpu.memory_space<vmem>>, vector<1x2x128xf32>
    %162 = vector.shape_cast %161 : vector<1x2x128xf32> to vector<2x128xf32>
    %163 = vector.shape_cast %160 : vector<2x128xf32> to vector<1x2x128xf32>
    tpu.vector_store %arg19[%c0_54, %c0_55, %c0_56], %163 {strides = array<i32>} : memref<1x2x128xf32, #tpu.memory_space<vmem>>, vector<1x2x128xf32>,
    return
  }
  func.func @transform_0(%arg0: i32) -> (i32, i32, i32) {
    %c0_i32 = arith.constant 0 : i32
    %c0_i32_0 = arith.constant 0 : i32
    %c0_i32_1 = arith.constant 0 : i32
    return %arg0, %c0_i32, %c0_i32_0 : i32, i32, i32
  }
  func.func @transform_1(%arg0: i32) -> (i32, i32, i32) {
    %c0_i32 = arith.constant 0 : i32
    %c0_i32_0 = arith.constant 0 : i32
    %c0_i32_1 = arith.constant 0 : i32
    return %arg0, %c0_i32, %c0_i32_0 : i32, i32, i32
  }
  func.func @transform_2(%arg0: i32) -> (i32, i32) {
    %c0_i32 = arith.constant 0 : i32
    %c0_i32_0 = arith.constant 0 : i32
    %c0_i32_1 = arith.constant 0 : i32
    return %c0_i32, %c0_i32_0 : i32, i32
  }
  func.func @transform_3(%arg0: i32) -> (i32, i32) {
    %c0_i32 = arith.constant 0 : i32
    %c0_i32_0 = arith.constant 0 : i32
    %c0_i32_1 = arith.constant 0 : i32
    return %c0_i32, %c0_i32_0 : i32, i32
  }
  func.func @transform_4(%arg0: i32) -> (i32, i32) {
    %c0_i32 = arith.constant 0 : i32
    %c0_i32_0 = arith.constant 0 : i32
    %c0_i32_1 = arith.constant 0 : i32
    return %c0_i32, %c0_i32_0 : i32, i32
  }
  func.func @transform_5(%arg0: i32) -> (i32, i32) {
    %c0_i32 = arith.constant 0 : i32
    %c0_i32_0 = arith.constant 0 : i32
    %c0_i32_1 = arith.constant 0 : i32
    return %c0_i32, %c0_i32_0 : i32, i32
  }
  func.func @transform_6(%arg0: i32) -> (i32, i32) {
    %c0_i32 = arith.constant 0 : i32
    %c0_i32_0 = arith.constant 0 : i32
    %c0_i32_1 = arith.constant 0 : i32
    return %c0_i32, %c0_i32_0 : i32, i32
  }
  func.func @transform_7(%arg0: i32) -> (i32, i32) {
    %c0_i32 = arith.constant 0 : i32
    %c0_i32_0 = arith.constant 0 : i32
    %c0_i32_1 = arith.constant 0 : i32
    return %c0_i32, %c0_i32_0 : i32, i32
  }
  func.func @transform_8(%arg0: i32) -> (i32, i32) {
    %c0_i32 = arith.constant 0 : i32
    %c0_i32_0 = arith.constant 0 : i32
    %c0_i32_1 = arith.constant 0 : i32
    return %c0_i32, %c0_i32_0 : i32, i32
  }
  func.func @transform_9(%arg0: i32) -> (i32, i32) {
    %c0_i32 = arith.constant 0 : i32
    %c0_i32_0 = arith.constant 0 : i32
    %c0_i32_1 = arith.constant 0 : i32
    return %c0_i32, %c0_i32_0 : i32, i32
  }
  func.func @transform_10(%arg0: i32) -> (i32, i32) {
    %c0_i32 = arith.constant 0 : i32
    %c0_i32_0 = arith.constant 0 : i32
    %c0_i32_1 = arith.constant 0 : i32
    return %c0_i32, %c0_i32_0 : i32, i32
  }
  func.func @transform_11(%arg0: i32) -> (i32, i32) {
    %c0_i32 = arith.constant 0 : i32
    %c0_i32_0 = arith.constant 0 : i32
    %c0_i32_1 = arith.constant 0 : i32
    return %c0_i32, %c0_i32_0 : i32, i32
  }
  func.func @transform_12(%arg0: i32) -> (i32, i32) {
    %c0_i32 = arith.constant 0 : i32
    %c0_i32_0 = arith.constant 0 : i32
    %c0_i32_1 = arith.constant 0 : i32
    return %c0_i32, %c0_i32_0 : i32, i32
  }
  func.func @transform_13(%arg0: i32) -> (i32, i32) {
    %c0_i32 = arith.constant 0 : i32
    %c0_i32_0 = arith.constant 0 : i32
    %c0_i32_1 = arith.constant 0 : i32
    return %c0_i32, %c0_i32_0 : i32, i32
  }
  func.func @transform_14(%arg0: i32) -> (i32, i32) {
    %c0_i32 = arith.constant 0 : i32
    %c0_i32_0 = arith.constant 0 : i32
    %c0_i32_1 = arith.constant 0 : i32
    return %c0_i32, %c0_i32_0 : i32, i32
  }
  func.func @transform_15(%arg0: i32) -> (i32, i32) {
    %c0_i32 = arith.constant 0 : i32
    %c0_i32_0 = arith.constant 0 : i32
    %c0_i32_1 = arith.constant 0 : i32
    return %c0_i32, %c0_i32_0 : i32, i32
  }
  func.func @transform_16(%arg0: i32) -> (i32, i32) {
    %c0_i32 = arith.constant 0 : i32
    %c0_i32_0 = arith.constant 0 : i32
    %c0_i32_1 = arith.constant 0 : i32
    return %c0_i32, %c0_i32_0 : i32, i32
  }
  func.func @transform_17(%arg0: i32) -> (i32, i32) {
    %c0_i32 = arith.constant 0 : i32
    %c0_i32_0 = arith.constant 0 : i32
    %c0_i32_1 = arith.constant 0 : i32
    return %c0_i32, %c0_i32_0 : i32, i32
  }
  func.func @transform_18(%arg0: i32) -> (i32, i32, i32) {
    %c0_i32 = arith.constant 0 : i32
    %c0_i32_0 = arith.constant 0 : i32
    %c0_i32_1 = arith.constant 0 : i32
    return %arg0, %c0_i32, %c0_i32_0 : i32, i32, i32
  }
}

</mosaic_0001>

<llo_original>
// kernel: decoder_forward.1
$region0: #{decoder_forward.1}
  #allocation0 [shape = 'u32[]', space=smem, size = 0x4, offset = 0x4, fixed_abs, tag = 'smem constant byte address 0x4 - core index']
  #allocation1 [shape = 'u32[72,128]{1,0:T(1,128)}', space=vmem, size = 0x9000, scoped, tag = 'internal scratch']
  %s0 = inlined_call_operand.vmem [shape: f32[2,1,32], index: 0, kind: input, shape index: {}]
  %s1 = inlined_call_operand.vmem [shape: f32[2,1,16], index: 1, kind: input, shape index: {}]
  %s2 = inlined_call_operand.vmem [shape: f32[32,1024], index: 2, kind: input, shape index: {}]
  %s3 = inlined_call_operand.vmem [shape: f32[16,1024], index: 3, kind: input, shape index: {}]
  %s4 = inlined_call_operand.vmem [shape: f32[1,1024], index: 4, kind: input, shape index: {}]
  %s5 = inlined_call_operand.vmem [shape: f32[1,1024], index: 5, kind: input, shape index: {}]
  %s6 = inlined_call_operand.vmem [shape: f32[1,1024], index: 6, kind: input, shape index: {}]
  %s7 = inlined_call_operand.vmem [shape: f32[576,256], index: 7, kind: input, shape index: {}]
  %s8 = inlined_call_operand.vmem [shape: f32[1,256], index: 8, kind: input, shape index: {}]
  %s9 = inlined_call_operand.vmem [shape: f32[1,256], index: 9, kind: input, shape index: {}]
  %s10 = inlined_call_operand.vmem [shape: f32[1152,128], index: 10, kind: input, shape index: {}]
  %s11 = inlined_call_operand.vmem [shape: f32[1,128], index: 11, kind: input, shape index: {}]
  %s12 = inlined_call_operand.vmem [shape: f32[1,128], index: 12, kind: input, shape index: {}]
  %s13 = inlined_call_operand.vmem [shape: f32[576,64], index: 13, kind: input, shape index: {}]
  %s14 = inlined_call_operand.vmem [shape: f32[1,64], index: 14, kind: input, shape index: {}]
  %s15 = inlined_call_operand.vmem [shape: f32[1,64], index: 15, kind: input, shape index: {}]
  %s16 = inlined_call_operand.vmem [shape: f32[2,480], index: 16, kind: input, shape index: {}]
  %s17 = inlined_call_operand.vmem [shape: f32[2,1], index: 17, kind: input, shape index: {}]
  %s18 = inlined_call_operand.vmem [shape: f32[2,2,128], index: 18, kind: output, shape index: {}]
  %s19 = sld [smem:[#allocation0]]
  $region105: #{decoder_forward.1} parent=0
    _
  %s21 = ssub.s32 1, %s19
  %s22 = scalar_select 0, %s21, %s19
  loop: start=0, step=1, limit=4
  $region2: #{decoder_forward.1} parent=0 // loop_pre_header
    _
  $region3: #{decoder_forward.1} parent=0 // loop_header
    %s24 = sphi 0, %s28
    %p25 = scmp.ge.s32.totalorder %s24, 4
    %s34 = sphi 0, %s36
    %s37 = sphi 0, %s34
    %s38 = sphi 0, %s37
    %s54 = sphi 0, %s38
    %s60 = sphi 0, %s62
    %s63 = sphi 0, %s60
    %s64 = sphi 0, %s63
    %s80 = sphi 0, %s64
    %s84 = sphi 0, %s84
    %s86 = sphi 0, %s84
    %s87 = sphi 0, %s86
    %s101 = sphi 0, %s87
    %s105 = sphi 0, %s105
    %s107 = sphi 0, %s105
    %s108 = sphi 0, %s107
    %s122 = sphi 0, %s108
    %s126 = sphi 0, %s126
    %s128 = sphi 0, %s126
    %s129 = sphi 0, %s128
    %s143 = sphi 0, %s129
    %s147 = sphi 0, %s147
    %s149 = sphi 0, %s147
    %s150 = sphi 0, %s149
    %s164 = sphi 0, %s150
    %s168 = sphi 0, %s168
    %s170 = sphi 0, %s168
    %s171 = sphi 0, %s170
    %s185 = sphi 0, %s171
    %s189 = sphi 0, %s189
    %s191 = sphi 0, %s189
    %s192 = sphi 0, %s191
    %s206 = sphi 0, %s192
    %s210 = sphi 0, %s210
    %s212 = sphi 0, %s210
    %s213 = sphi 0, %s212
    %s227 = sphi 0, %s213
    %s231 = sphi 0, %s231
    %s233 = sphi 0, %s231
    %s234 = sphi 0, %s233
    %s248 = sphi 0, %s234
    %s252 = sphi 0, %s252
    %s254 = sphi 0, %s252
    %s255 = sphi 0, %s254
    %s269 = sphi 0, %s255
    %s273 = sphi 0, %s273
    %s275 = sphi 0, %s273
    %s276 = sphi 0, %s275
    %s290 = sphi 0, %s276
    %s294 = sphi 0, %s294
    %s296 = sphi 0, %s294
    %s297 = sphi 0, %s296
    %s311 = sphi 0, %s297
    %s315 = sphi 0, %s315
    %s317 = sphi 0, %s315
    %s318 = sphi 0, %s317
    %s332 = sphi 0, %s318
    %s336 = sphi 0, %s336
    %s338 = sphi 0, %s336
    %s339 = sphi 0, %s338
    %s353 = sphi 0, %s339
    %s357 = sphi 0, %s357
    %s359 = sphi 0, %s357
    %s360 = sphi 0, %s359
    %s374 = sphi 0, %s360
    %s378 = sphi 0, %s378
    %s380 = sphi 0, %s378
    %s381 = sphi 0, %s380
    %s395 = sphi 0, %s381
    %s399 = sphi 0, %s399
    %s401 = sphi 0, %s399
    %s402 = sphi 0, %s401
    %s416 = sphi 0, %s402
    %s422 = sphi 0, %s424
    %s425 = sphi 0, %s422
    %s426 = sphi 0, %s425
    %s442 = sphi 0, %s426
  $region4: #{decoder_forward.1} parent=0 // loop_header_branch
    %27 = sbr.rel (%p25) target = $region8
  $region5: #{decoder_forward.1} parent=0 // loop_body
    %s29 = ssub.s32 %s24, 1
    %s30 = ssub.s32 %s24, 2
    %s31 = sadd.s32 %s24, 1
    %s32 = ssub.s32 %s24, %s31
    %p33 = scmp.eq.s32.totalorder %s32, 0
    %s35 = sadd.s32 %s34, 1
    %s36 = scalar_select %p33, %s34, %s35
    %p39 = pneg %p33
    %p40 = scmp.eq.s32.totalorder %s24, 1
    %p41 = por %p39, %p40
    %p42 = scmp.ne.s32.totalorder %s34, %s37
    %p43 = scmp.eq.s32.totalorder %s24, 0
    %p44 = por %p42, %p43
    %p45 = scmp.ne.s32.totalorder %s34, %s37
    %p46 = scmp.eq.s32.totalorder %s29, 1
    %p47 = por %p45, %p46
    %p48 = scmp.ne.s32.totalorder %s37, %s38
    %p49 = scmp.eq.s32.totalorder %s29, 0
    %p50 = por %p48, %p49
    %p51 = scmp.ne.s32.totalorder %s37, %s38
    %p52 = scmp.eq.s32.totalorder %s30, 1
    %p53 = por %p51, %p52
    %p55 = scmp.ne.s32.totalorder %s38, %s54
    %p56 = scmp.eq.s32.totalorder %s30, 0
    %p57 = por %p55, %p56
    %s58 = ssub.s32 %s24, %s31
    %p59 = scmp.eq.s32.totalorder %s58, 0
    %s61 = sadd.s32 %s60, 1
    %s62 = scalar_select %p59, %s60, %s61
    %p65 = pneg %p59
    %p66 = scmp.eq.s32.totalorder %s24, 1
    %p67 = por %p65, %p66
    %p68 = scmp.ne.s32.totalorder %s60, %s63
    %p69 = scmp.eq.s32.totalorder %s24, 0
    %p70 = por %p68, %p69
    %p71 = scmp.ne.s32.totalorder %s60, %s63
    %p72 = scmp.eq.s32.totalorder %s29, 1
    %p73 = por %p71, %p72
    %p74 = scmp.ne.s32.totalorder %s63, %s64
    %p75 = scmp.eq.s32.totalorder %s29, 0
    %p76 = por %p74, %p75
    %p77 = scmp.ne.s32.totalorder %s63, %s64
    %p78 = scmp.eq.s32.totalorder %s30, 1
    %p79 = por %p77, %p78
    %p81 = scmp.ne.s32.totalorder %s64, %s80
    %p82 = scmp.eq.s32.totalorder %s30, 0
    %p83 = por %p81, %p82
    %s85 = sadd.s32 %s84, 1
    %p88 = scmp.eq.s32.totalorder %s24, 1
    %p89 = scmp.ne.s32.totalorder %s84, %s86
    %p90 = scmp.eq.s32.totalorder %s24, 0
    %p91 = por %p89, %p90
    %p92 = scmp.ne.s32.totalorder %s84, %s86
    %p93 = scmp.eq.s32.totalorder %s29, 1
    %p94 = por %p92, %p93
    %p95 = scmp.ne.s32.totalorder %s86, %s87
    %p96 = scmp.eq.s32.totalorder %s29, 0
    %p97 = por %p95, %p96
    %p98 = scmp.ne.s32.totalorder %s86, %s87
    %p99 = scmp.eq.s32.totalorder %s30, 1
    %p100 = por %p98, %p99
    %p102 = scmp.ne.s32.totalorder %s87, %s101
    %p103 = scmp.eq.s32.totalorder %s30, 0
    %p104 = por %p102, %p103
    %s106 = sadd.s32 %s105, 1
    %p109 = scmp.eq.s32.totalorder %s24, 1
    %p110 = scmp.ne.s32.totalorder %s105, %s107
    %p111 = scmp.eq.s32.totalorder %s24, 0
    %p112 = por %p110, %p111
    %p113 = scmp.ne.s32.totalorder %s105, %s107
    %p114 = scmp.eq.s32.totalorder %s29, 1
    %p115 = por %p113, %p114
    %p116 = scmp.ne.s32.totalorder %s107, %s108
    %p117 = scmp.eq.s32.totalorder %s29, 0
    %p118 = por %p116, %p117
    %p119 = scmp.ne.s32.totalorder %s107, %s108
    %p120 = scmp.eq.s32.totalorder %s30, 1
    %p121 = por %p119, %p120
    %p123 = scmp.ne.s32.totalorder %s108, %s122
    %p124 = scmp.eq.s32.totalorder %s30, 0
    %p125 = por %p123, %p124
    %s127 = sadd.s32 %s126, 1
    %p130 = scmp.eq.s32.totalorder %s24, 1
    %p131 = scmp.ne.s32.totalorder %s126, %s128
    %p132 = scmp.eq.s32.totalorder %s24, 0
    %p133 = por %p131, %p132
    %p134 = scmp.ne.s32.totalorder %s126, %s128
    %p135 = scmp.eq.s32.totalorder %s29, 1
    %p136 = por %p134, %p135
    %p137 = scmp.ne.s32.totalorder %s128, %s129
    %p138 = scmp.eq.s32.totalorder %s29, 0
    %p139 = por %p137, %p138
    %p140 = scmp.ne.s32.totalorder %s128, %s129
    %p141 = scmp.eq.s32.totalorder %s30, 1
    %p142 = por %p140, %p141
    %p144 = scmp.ne.s32.totalorder %s129, %s143
    %p145 = scmp.eq.s32.totalorder %s30, 0
    %p146 = por %p144, %p145
    %s148 = sadd.s32 %s147, 1
    %p151 = scmp.eq.s32.totalorder %s24, 1
    %p152 = scmp.ne.s32.totalorder %s147, %s149
    %p153 = scmp.eq.s32.totalorder %s24, 0
    %p154 = por %p152, %p153
    %p155 = scmp.ne.s32.totalorder %s147, %s149
    %p156 = scmp.eq.s32.totalorder %s29, 1
    %p157 = por %p155, %p156
    %p158 = scmp.ne.s32.totalorder %s149, %s150
    %p159 = scmp.eq.s32.totalorder %s29, 0
    %p160 = por %p158, %p159
    %p161 = scmp.ne.s32.totalorder %s149, %s150
    %p162 = scmp.eq.s32.totalorder %s30, 1
    %p163 = por %p161, %p162
    %p165 = scmp.ne.s32.totalorder %s150, %s164
    %p166 = scmp.eq.s32.totalorder %s30, 0
    %p167 = por %p165, %p166
    %s169 = sadd.s32 %s168, 1
    %p172 = scmp.eq.s32.totalorder %s24, 1
    %p173 = scmp.ne.s32.totalorder %s168, %s170
    %p174 = scmp.eq.s32.totalorder %s24, 0
    %p175 = por %p173, %p174
    %p176 = scmp.ne.s32.totalorder %s168, %s170
    %p177 = scmp.eq.s32.totalorder %s29, 1
    %p178 = por %p176, %p177
    %p179 = scmp.ne.s32.totalorder %s170, %s171
    %p180 = scmp.eq.s32.totalorder %s29, 0
    %p181 = por %p179, %p180
    %p182 = scmp.ne.s32.totalorder %s170, %s171
    %p183 = scmp.eq.s32.totalorder %s30, 1
    %p184 = por %p182, %p183
    %p186 = scmp.ne.s32.totalorder %s171, %s185
    %p187 = scmp.eq.s32.totalorder %s30, 0
    %p188 = por %p186, %p187
    %s190 = sadd.s32 %s189, 1
    %p193 = scmp.eq.s32.totalorder %s24, 1
    %p194 = scmp.ne.s32.totalorder %s189, %s191
    %p195 = scmp.eq.s32.totalorder %s24, 0
    %p196 = por %p194, %p195
    %p197 = scmp.ne.s32.totalorder %s189, %s191
    %p198 = scmp.eq.s32.totalorder %s29, 1
    %p199 = por %p197, %p198
    %p200 = scmp.ne.s32.totalorder %s191, %s192
    %p201 = scmp.eq.s32.totalorder %s29, 0
    %p202 = por %p200, %p201
    %p203 = scmp.ne.s32.totalorder %s191, %s192
    %p204 = scmp.eq.s32.totalorder %s30, 1
    %p205 = por %p203, %p204
    %p207 = scmp.ne.s32.totalorder %s192, %s206
    %p208 = scmp.eq.s32.totalorder %s30, 0
    %p209 = por %p207, %p208
    %s211 = sadd.s32 %s210, 1
    %p214 = scmp.eq.s32.totalorder %s24, 1
    %p215 = scmp.ne.s32.totalorder %s210, %s212
    %p216 = scmp.eq.s32.totalorder %s24, 0
    %p217 = por %p215, %p216
    %p218 = scmp.ne.s32.totalorder %s210, %s212
    %p219 = scmp.eq.s32.totalorder %s29, 1
    %p220 = por %p218, %p219
    %p221 = scmp.ne.s32.totalorder %s212, %s213
    %p222 = scmp.eq.s32.totalorder %s29, 0
    %p223 = por %p221, %p222
    %p224 = scmp.ne.s32.totalorder %s212, %s213
    %p225 = scmp.eq.s32.totalorder %s30, 1
    %p226 = por %p224, %p225
    %p228 = scmp.ne.s32.totalorder %s213, %s227
    %p229 = scmp.eq.s32.totalorder %s30, 0
    %p230 = por %p228, %p229
    %s232 = sadd.s32 %s231, 1
    %p235 = scmp.eq.s32.totalorder %s24, 1
    %p236 = scmp.ne.s32.totalorder %s231, %s233
    %p237 = scmp.eq.s32.totalorder %s24, 0
    %p238 = por %p236, %p237
    %p239 = scmp.ne.s32.totalorder %s231, %s233
    %p240 = scmp.eq.s32.totalorder %s29, 1
    %p241 = por %p239, %p240
    %p242 = scmp.ne.s32.totalorder %s233, %s234
    %p243 = scmp.eq.s32.totalorder %s29, 0
    %p244 = por %p242, %p243
    %p245 = scmp.ne.s32.totalorder %s233, %s234
    %p246 = scmp.eq.s32.totalorder %s30, 1
    %p247 = por %p245, %p246
    %p249 = scmp.ne.s32.totalorder %s234, %s248
    %p250 = scmp.eq.s32.totalorder %s30, 0
    %p251 = por %p249, %p250
    %s253 = sadd.s32 %s252, 1
    %p256 = scmp.eq.s32.totalorder %s24, 1
    %p257 = scmp.ne.s32.totalorder %s252, %s254
    %p258 = scmp.eq.s32.totalorder %s24, 0
    %p259 = por %p257, %p258
    %p260 = scmp.ne.s32.totalorder %s252, %s254
    %p261 = scmp.eq.s32.totalorder %s29, 1
    %p262 = por %p260, %p261
    %p263 = scmp.ne.s32.totalorder %s254, %s255
    %p264 = scmp.eq.s32.totalorder %s29, 0
    %p265 = por %p263, %p264
    %p266 = scmp.ne.s32.totalorder %s254, %s255
    %p267 = scmp.eq.s32.totalorder %s30, 1
    %p268 = por %p266, %p267
    %p270 = scmp.ne.s32.totalorder %s255, %s269
    %p271 = scmp.eq.s32.totalorder %s30, 0
    %p272 = por %p270, %p271
    %s274 = sadd.s32 %s273, 1
    %p277 = scmp.eq.s32.totalorder %s24, 1
    %p278 = scmp.ne.s32.totalorder %s273, %s275
    %p279 = scmp.eq.s32.totalorder %s24, 0
    %p280 = por %p278, %p279
    %p281 = scmp.ne.s32.totalorder %s273, %s275
    %p282 = scmp.eq.s32.totalorder %s29, 1
    %p283 = por %p281, %p282
    %p284 = scmp.ne.s32.totalorder %s275, %s276
    %p285 = scmp.eq.s32.totalorder %s29, 0
    %p286 = por %p284, %p285
    %p287 = scmp.ne.s32.totalorder %s275, %s276
    %p288 = scmp.eq.s32.totalorder %s30, 1
    %p289 = por %p287, %p288
    %p291 = scmp.ne.s32.totalorder %s276, %s290
    %p292 = scmp.eq.s32.totalorder %s30, 0
    %p293 = por %p291, %p292
    %s295 = sadd.s32 %s294, 1
    %p298 = scmp.eq.s32.totalorder %s24, 1
    %p299 = scmp.ne.s32.totalorder %s294, %s296
    %p300 = scmp.eq.s32.totalorder %s24, 0
    %p301 = por %p299, %p300
    %p302 = scmp.ne.s32.totalorder %s294, %s296
    %p303 = scmp.eq.s32.totalorder %s29, 1
    %p304 = por %p302, %p303
    %p305 = scmp.ne.s32.totalorder %s296, %s297
    %p306 = scmp.eq.s32.totalorder %s29, 0
    %p307 = por %p305, %p306
    %p308 = scmp.ne.s32.totalorder %s296, %s297
    %p309 = scmp.eq.s32.totalorder %s30, 1
    %p310 = por %p308, %p309
    %p312 = scmp.ne.s32.totalorder %s297, %s311
    %p313 = scmp.eq.s32.totalorder %s30, 0
    %p314 = por %p312, %p313
    %s316 = sadd.s32 %s315, 1
    %p319 = scmp.eq.s32.totalorder %s24, 1
    %p320 = scmp.ne.s32.totalorder %s315, %s317
    %p321 = scmp.eq.s32.totalorder %s24, 0
    %p322 = por %p320, %p321
    %p323 = scmp.ne.s32.totalorder %s315, %s317
    %p324 = scmp.eq.s32.totalorder %s29, 1
    %p325 = por %p323, %p324
    %p326 = scmp.ne.s32.totalorder %s317, %s318
    %p327 = scmp.eq.s32.totalorder %s29, 0
    %p328 = por %p326, %p327
    %p329 = scmp.ne.s32.totalorder %s317, %s318
    %p330 = scmp.eq.s32.totalorder %s30, 1
    %p331 = por %p329, %p330
    %p333 = scmp.ne.s32.totalorder %s318, %s332
    %p334 = scmp.eq.s32.totalorder %s30, 0
    %p335 = por %p333, %p334
    %s337 = sadd.s32 %s336, 1
    %p340 = scmp.eq.s32.totalorder %s24, 1
    %p341 = scmp.ne.s32.totalorder %s336, %s338
    %p342 = scmp.eq.s32.totalorder %s24, 0
    %p343 = por %p341, %p342
    %p344 = scmp.ne.s32.totalorder %s336, %s338
    %p345 = scmp.eq.s32.totalorder %s29, 1
    %p346 = por %p344, %p345
    %p347 = scmp.ne.s32.totalorder %s338, %s339
    %p348 = scmp.eq.s32.totalorder %s29, 0
    %p349 = por %p347, %p348
    %p350 = scmp.ne.s32.totalorder %s338, %s339
    %p351 = scmp.eq.s32.totalorder %s30, 1
    %p352 = por %p350, %p351
    %p354 = scmp.ne.s32.totalorder %s339, %s353
    %p355 = scmp.eq.s32.totalorder %s30, 0
    %p356 = por %p354, %p355
    %s358 = sadd.s32 %s357, 1
    %p361 = scmp.eq.s32.totalorder %s24, 1
    %p362 = scmp.ne.s32.totalorder %s357, %s359
    %p363 = scmp.eq.s32.totalorder %s24, 0
    %p364 = por %p362, %p363
    %p365 = scmp.ne.s32.totalorder %s357, %s359
    %p366 = scmp.eq.s32.totalorder %s29, 1
    %p367 = por %p365, %p366
    %p368 = scmp.ne.s32.totalorder %s359, %s360
    %p369 = scmp.eq.s32.totalorder %s29, 0
    %p370 = por %p368, %p369
    %p371 = scmp.ne.s32.totalorder %s359, %s360
    %p372 = scmp.eq.s32.totalorder %s30, 1
    %p373 = por %p371, %p372
    %p375 = scmp.ne.s32.totalorder %s360, %s374
    %p376 = scmp.eq.s32.totalorder %s30, 0
    %p377 = por %p375, %p376
    %s379 = sadd.s32 %s378, 1
    %p382 = scmp.eq.s32.totalorder %s24, 1
    %p383 = scmp.ne.s32.totalorder %s378, %s380
    %p384 = scmp.eq.s32.totalorder %s24, 0
    %p385 = por %p383, %p384
    %p386 = scmp.ne.s32.totalorder %s378, %s380
    %p387 = scmp.eq.s32.totalorder %s29, 1
    %p388 = por %p386, %p387
    %p389 = scmp.ne.s32.totalorder %s380, %s381
    %p390 = scmp.eq.s32.totalorder %s29, 0
    %p391 = por %p389, %p390
    %p392 = scmp.ne.s32.totalorder %s380, %s381
    %p393 = scmp.eq.s32.totalorder %s30, 1
    %p394 = por %p392, %p393
    %p396 = scmp.ne.s32.totalorder %s381, %s395
    %p397 = scmp.eq.s32.totalorder %s30, 0
    %p398 = por %p396, %p397
    %s400 = sadd.s32 %s399, 1
    %p403 = scmp.eq.s32.totalorder %s24, 1
    %p404 = scmp.ne.s32.totalorder %s399, %s401
    %p405 = scmp.eq.s32.totalorder %s24, 0
    %p406 = por %p404, %p405
    %p407 = scmp.ne.s32.totalorder %s399, %s401
    %p408 = scmp.eq.s32.totalorder %s29, 1
    %p409 = por %p407, %p408
    %p410 = scmp.ne.s32.totalorder %s401, %s402
    %p411 = scmp.eq.s32.totalorder %s29, 0
    %p412 = por %p410, %p411
    %p413 = scmp.ne.s32.totalorder %s401, %s402
    %p414 = scmp.eq.s32.totalorder %s30, 1
    %p415 = por %p413, %p414
    %p417 = scmp.ne.s32.totalorder %s402, %s416
    %p418 = scmp.eq.s32.totalorder %s30, 0
    %p419 = por %p417, %p418
    %s420 = ssub.s32 %s24, %s31
    %p421 = scmp.eq.s32.totalorder %s420, 0
    %s423 = sadd.s32 %s422, 1
    %s424 = scalar_select %p421, %s422, %s423
    %p427 = pneg %p421
    %p428 = scmp.eq.s32.totalorder %s24, 1
    %p429 = por %p427, %p428
    %p430 = scmp.ne.s32.totalorder %s422, %s425
    %p431 = scmp.eq.s32.totalorder %s24, 0
    %p432 = por %p430, %p431
    %p433 = scmp.ne.s32.totalorder %s422, %s425
    %p434 = scmp.eq.s32.totalorder %s29, 1
    %p435 = por %p433, %p434
    %p436 = scmp.ne.s32.totalorder %s425, %s426
    %p437 = scmp.eq.s32.totalorder %s29, 0
    %p438 = por %p436, %p437
    %p439 = scmp.ne.s32.totalorder %s425, %s426
    %p440 = scmp.eq.s32.totalorder %s30, 1
    %p441 = por %p439, %p440
    %p443 = scmp.ne.s32.totalorder %s426, %s442
    %p444 = scmp.eq.s32.totalorder %s30, 0
    %p445 = por %p443, %p444
    %p446 = scmp.le.s32.totalorder 1, %s24
    %p447 = scmp.lt.s32.totalorder %s24, 3
    %p448 = pnand %p446, %p447
    %p449 = pneg %p448
    // Predicated region
    $region9: #{decoder_forward.1} parent=5 // pred_check
      _
    $region10: #{decoder_forward.1} parent=5 // pred_check_branch
      %451 = sbr.rel (%p448) target = $region12
    $region11: #{decoder_forward.1} parent=5 // pred_region
      %s452 = ssub.s32 %s24, 1
      // Predicated region
      $region13: #{decoder_forward.1} parent=11 // pred_check
        %p453 = pneg %p97
      $region14: #{decoder_forward.1} parent=11 // pred_check_branch
        %455 = sbr.rel (%p453) target = $region16
      $region15: #{decoder_forward.1} parent=11 // pred_region
        _
      $region16: #{decoder_forward.1} parent=11 // pred_fallthru
        _
      // Predicated region
      $region17: #{decoder_forward.1} parent=11 // pred_check
        %p456 = pneg %p118
      $region18: #{decoder_forward.1} parent=11 // pred_check_branch
        %458 = sbr.rel (%p456) target = $region20
      $region19: #{decoder_forward.1} parent=11 // pred_region
        _
      $region20: #{decoder_forward.1} parent=11 // pred_fallthru
        _
      // Predicated region
      $region21: #{decoder_forward.1} parent=11 // pred_check
        %p459 = pneg %p139
      $region22: #{decoder_forward.1} parent=11 // pred_check_branch
        %461 = sbr.rel (%p459) target = $region24
      $region23: #{decoder_forward.1} parent=11 // pred_region
        _
      $region24: #{decoder_forward.1} parent=11 // pred_fallthru
        _
      // Predicated region
      $region25: #{decoder_forward.1} parent=11 // pred_check
        %p462 = pneg %p160
      $region26: #{decoder_forward.1} parent=11 // pred_check_branch
        %464 = sbr.rel (%p462) target = $region28
      $region27: #{decoder_forward.1} parent=11 // pred_region
        _
      $region28: #{decoder_forward.1} parent=11 // pred_fallthru
        _
      // Predicated region
      $region29: #{decoder_forward.1} parent=11 // pred_check
        %p465 = pneg %p181
      $region30: #{decoder_forward.1} parent=11 // pred_check_branch
        %467 = sbr.rel (%p465) target = $region32
      $region31: #{decoder_forward.1} parent=11 // pred_region
        _
      $region32: #{decoder_forward.1} parent=11 // pred_fallthru
        _
      // Predicated region
      $region33: #{decoder_forward.1} parent=11 // pred_check
        %p468 = pneg %p202
      $region34: #{decoder_forward.1} parent=11 // pred_check_branch
        %470 = sbr.rel (%p468) target = $region36
      $region35: #{decoder_forward.1} parent=11 // pred_region
        _
      $region36: #{decoder_forward.1} parent=11 // pred_fallthru
        _
      // Predicated region
      $region37: #{decoder_forward.1} parent=11 // pred_check
        %p471 = pneg %p223
      $region38: #{decoder_forward.1} parent=11 // pred_check_branch
        %473 = sbr.rel (%p471) target = $region40
      $region39: #{decoder_forward.1} parent=11 // pred_region
        _
      $region40: #{decoder_forward.1} parent=11 // pred_fallthru
        _
      // Predicated region
      $region41: #{decoder_forward.1} parent=11 // pred_check
        %p474 = pneg %p244
      $region42: #{decoder_forward.1} parent=11 // pred_check_branch
        %476 = sbr.rel (%p474) target = $region44
      $region43: #{decoder_forward.1} parent=11 // pred_region
        _
      $region44: #{decoder_forward.1} parent=11 // pred_fallthru
        _
      // Predicated region
      $region45: #{decoder_forward.1} parent=11 // pred_check
        %p477 = pneg %p265
      $region46: #{decoder_forward.1} parent=11 // pred_check_branch
        %479 = sbr.rel (%p477) target = $region48
      $region47: #{decoder_forward.1} parent=11 // pred_region
        _
      $region48: #{decoder_forward.1} parent=11 // pred_fallthru
        _
      // Predicated region
      $region49: #{decoder_forward.1} parent=11 // pred_check
        %p480 = pneg %p286
      $region50: #{decoder_forward.1} parent=11 // pred_check_branch
        %482 = sbr.rel (%p480) target = $region52
      $region51: #{decoder_forward.1} parent=11 // pred_region
        _
      $region52: #{decoder_forward.1} parent=11 // pred_fallthru
        _
      // Predicated region
      $region53: #{decoder_forward.1} parent=11 // pred_check
        %p483 = pneg %p307
      $region54: #{decoder_forward.1} parent=11 // pred_check_branch
        %485 = sbr.rel (%p483) target = $region56
      $region55: #{decoder_forward.1} parent=11 // pred_region
        _
      $region56: #{decoder_forward.1} parent=11 // pred_fallthru
        _
      // Predicated region
      $region57: #{decoder_forward.1} parent=11 // pred_check
        %p486 = pneg %p328
      $region58: #{decoder_forward.1} parent=11 // pred_check_branch
        %488 = sbr.rel (%p486) target = $region60
      $region59: #{decoder_forward.1} parent=11 // pred_region
        _
      $region60: #{decoder_forward.1} parent=11 // pred_fallthru
        _
      // Predicated region
      $region61: #{decoder_forward.1} parent=11 // pred_check
        %p489 = pneg %p349
      $region62: #{decoder_forward.1} parent=11 // pred_check_branch
        %491 = sbr.rel (%p489) target = $region64
      $region63: #{decoder_forward.1} parent=11 // pred_region
        _
      $region64: #{decoder_forward.1} parent=11 // pred_fallthru
        _
      // Predicated region
      $region65: #{decoder_forward.1} parent=11 // pred_check
        %p492 = pneg %p370
      $region66: #{decoder_forward.1} parent=11 // pred_check_branch
        %494 = sbr.rel (%p492) target = $region68
      $region67: #{decoder_forward.1} parent=11 // pred_region
        _
      $region68: #{decoder_forward.1} parent=11 // pred_fallthru
        _
      // Predicated region
      $region69: #{decoder_forward.1} parent=11 // pred_check
        %p495 = pneg %p391
      $region70: #{decoder_forward.1} parent=11 // pred_check_branch
        %497 = sbr.rel (%p495) target = $region72
      $region71: #{decoder_forward.1} parent=11 // pred_region
        _
      $region72: #{decoder_forward.1} parent=11 // pred_fallthru
        _
      // Predicated region
      $region73: #{decoder_forward.1} parent=11 // pred_check
        %p498 = pneg %p412
      $region74: #{decoder_forward.1} parent=11 // pred_check_branch
        %500 = sbr.rel (%p498) target = $region76
      $region75: #{decoder_forward.1} parent=11 // pred_region
        _
      $region76: #{decoder_forward.1} parent=11 // pred_fallthru
        _
    $region12: #{decoder_forward.1} parent=5 // pred_fallthru
      _
    %p501 = scmp.lt.s32.totalorder %s24, 2
    // Predicated region
    $region77: #{decoder_forward.1} parent=5 // pred_check
      %p502 = pneg %p501
    $region78: #{decoder_forward.1} parent=5 // pred_check_branch
      %504 = sbr.rel (%p502) target = $region80
    $region79: #{decoder_forward.1} parent=5 // pred_region
      // Predicated region
      $region81: #{decoder_forward.1} parent=79 // pred_check
        %p505 = pneg %p44
      $region82: #{decoder_forward.1} parent=79 // pred_check_branch
        %507 = sbr.rel (%p505) target = $region84
      $region83: #{decoder_forward.1} parent=79 // pred_region
        %p508 = scmp.lt.s32.totalorder %s24, 1
        %s509 = scalar_select %p508, %s24, 1
        %s510 = scalar_lea.vmem %s0, %s509
      $region84: #{decoder_forward.1} parent=79 // pred_fallthru
        _
      // Predicated region
      $region85: #{decoder_forward.1} parent=79 // pred_check
        %p511 = pneg %p70
      $region86: #{decoder_forward.1} parent=79 // pred_check_branch
        %513 = sbr.rel (%p511) target = $region88
      $region87: #{decoder_forward.1} parent=79 // pred_region
        %p514 = scmp.lt.s32.totalorder %s24, 1
        %s515 = scalar_select %p514, %s24, 1
        %s516 = scalar_lea.vmem %s1, %s515
      $region88: #{decoder_forward.1} parent=79 // pred_fallthru
        _
    $region80: #{decoder_forward.1} parent=5 // pred_fallthru
      _
    %p517 = scmp.le.s32.totalorder 1, %s24
    %p518 = scmp.lt.s32.totalorder %s24, 3
    %p519 = pnand %p517, %p518
    %p520 = pneg %p519
    // Predicated region
    $region89: #{decoder_forward.1} parent=5 // pred_check
      _
    $region90: #{decoder_forward.1} parent=5 // pred_check_branch
      %522 = sbr.rel (%p519) target = $region92
    $region91: #{decoder_forward.1} parent=5 // pred_region
      %s523 = ssub.s32 %s24, 1
      %p524 = scmp.lt.s32.totalorder %s29, 1
      %s525 = scalar_select %p524, %s29, 1
      %s526 = scalar_lea.vmem %s0, %s525
      %p527 = pneg %p50
      %p528 = pneg %p47
      %p529 = scmp.lt.s32.totalorder %s29, 1
      %s530 = scalar_select %p529, %s29, 1
      %s531 = scalar_lea.vmem %s1, %s530
      %p532 = pneg %p76
      %p533 = pneg %p73
      %p534 = pneg %p97
      %p535 = pneg %p94
      %p536 = pneg %p118
      %p537 = pneg %p115
      %p538 = pneg %p139
      %p539 = pneg %p136
      %p540 = pneg %p160
      %p541 = pneg %p157
      %p542 = pneg %p181
      %p543 = pneg %p178
      %p544 = pneg %p202
      %p545 = pneg %p199
      %p546 = pneg %p223
      %p547 = pneg %p220
      %p548 = pneg %p244
      %p549 = pneg %p241
      %p550 = pneg %p265
      %p551 = pneg %p262
      %p552 = pneg %p286
      %p553 = pneg %p283
      %p554 = pneg %p307
      %p555 = pneg %p304
      %p556 = pneg %p328
      %p557 = pneg %p325
      %p558 = pneg %p349
      %p559 = pneg %p346
      %p560 = pneg %p370
      %p561 = pneg %p367
      %p562 = pneg %p391
      %p563 = pneg %p388
      %p564 = pneg %p412
      %p565 = pneg %p409
      %p566 = pneg %p438
      %p567 = pneg %p435
      %p568 = scmp.lt.s32.totalorder %s29, 1
      %s569 = scalar_select %p568, %s29, 1
      %s570 = smul.addr %s569, 2
      %s571 = scalar_lea.vmem %s18, %s570
      %p572 = scmp.lt.s32.totalorder %s29, 1
      %s573 = scalar_select %p572, %s29, 1
      %s574 = scalar_lea.vmem %s0, %s573
      %p575 = scmp.lt.s32.totalorder %s29, 1
      %s576 = scalar_select %p575, %s29, 1
      %s577 = scalar_lea.vmem %s1, %s576
      %p578 = scmp.lt.s32.totalorder %s29, 1
      %s579 = scalar_select %p578, %s29, 1
      %s580 = smul.addr %s579, 2
      %s581 = scalar_lea.vmem %s18, %s580
      %v582 = vld [vmem:[%s574] sm:$0x1]
      %v583 = vld [vmem:[%s2] sm:$0xff]
      %v584 = vld [vmem:[%s2 + $0x8] sm:$0xff]
      %v585 = vld [vmem:[%s2 + $0x10] sm:$0xff]
      %v586 = vld [vmem:[%s2 + $0x18] sm:$0xff]
      %v587 = vld [vmem:[%s2 + $0x20] sm:$0xff]
      %v588 = vld [vmem:[%s2 + $0x28] sm:$0xff]
      %v589 = vld [vmem:[%s2 + $0x30] sm:$0xff]
      %v590 = vld [vmem:[%s2 + $0x38] sm:$0xff]
      %v591 = vld [vmem:[%s2 + $0x40] sm:$0xff]
      %v592 = vld [vmem:[%s2 + $0x48] sm:$0xff]
      %v593 = vld [vmem:[%s2 + $0x50] sm:$0xff]
      %v594 = vld [vmem:[%s2 + $0x58] sm:$0xff]
      %v595 = vld [vmem:[%s2 + $0x60] sm:$0xff]
      %v596 = vld [vmem:[%s2 + $0x68] sm:$0xff]
      %v597 = vld [vmem:[%s2 + $0x70] sm:$0xff]
      %v598 = vld [vmem:[%s2 + $0x78] sm:$0xff]
      %v599 = vld [vmem:[%s2 + $0x80] sm:$0xff]
      %v600 = vld [vmem:[%s2 + $0x88] sm:$0xff]
      %v601 = vld [vmem:[%s2 + $0x90] sm:$0xff]
      %v602 = vld [vmem:[%s2 + $0x98] sm:$0xff]
      %v603 = vld [vmem:[%s2 + $0xa0] sm:$0xff]
      %v604 = vld [vmem:[%s2 + $0xa8] sm:$0xff]
      %v605 = vld [vmem:[%s2 + $0xb0] sm:$0xff]
      %v606 = vld [vmem:[%s2 + $0xb8] sm:$0xff]
      %v607 = vld [vmem:[%s2 + $0xc0] sm:$0xff]
      %v608 = vld [vmem:[%s2 + $0xc8] sm:$0xff]
      %v609 = vld [vmem:[%s2 + $0xd0] sm:$0xff]
      %v610 = vld [vmem:[%s2 + $0xd8] sm:$0xff]
      %v611 = vld [vmem:[%s2 + $0xe0] sm:$0xff]
      %v612 = vld [vmem:[%s2 + $0xe8] sm:$0xff]
      %v613 = vld [vmem:[%s2 + $0xf0] sm:$0xff]
      %v614 = vld [vmem:[%s2 + $0xf8] sm:$0xff]
      %v615 = vld [vmem:[%s577] sm:$0x1]
      %v616 = vld [vmem:[%s3] sm:$0xff]
      %v617 = vld [vmem:[%s3 + $0x8] sm:$0xff]
      %v618 = vld [vmem:[%s3 + $0x10] sm:$0xff]
      %v619 = vld [vmem:[%s3 + $0x18] sm:$0xff]
      %v620 = vld [vmem:[%s3 + $0x20] sm:$0xff]
      %v621 = vld [vmem:[%s3 + $0x28] sm:$0xff]
      %v622 = vld [vmem:[%s3 + $0x30] sm:$0xff]
      %v623 = vld [vmem:[%s3 + $0x38] sm:$0xff]
      %v624 = vld [vmem:[%s3 + $0x40] sm:$0xff]
      %v625 = vld [vmem:[%s3 + $0x48] sm:$0xff]
      %v626 = vld [vmem:[%s3 + $0x50] sm:$0xff]
      %v627 = vld [vmem:[%s3 + $0x58] sm:$0xff]
      %v628 = vld [vmem:[%s3 + $0x60] sm:$0xff]
      %v629 = vld [vmem:[%s3 + $0x68] sm:$0xff]
      %v630 = vld [vmem:[%s3 + $0x70] sm:$0xff]
      %v631 = vld [vmem:[%s3 + $0x78] sm:$0xff]
      %vm632 = vcmask 130048
      %v634 = vsel %vm632, %v615, 0
      %636 = vmatpush.msra.mxu0 0.0
      %637 = vmatpush.msra.mxu0 0.0
      %638 = vmatpush.msra.mxu0 0.0
      %639 = vmatpush.msra.mxu0 0.0
      %640 = vmatpush.msra.mxu0 0.0
      %641 = vmatpush.msra.mxu0 0.0
      %642 = vmatpush.msra.mxu0 0.0
      %643 = vmatpush.msra.mxu0 0.0
      %644 = vmatpush.msra.mxu0 0.0
      %645 = vmatpush.msra.mxu0 0.0
      %646 = vmatpush.msra.mxu0 0.0
      %647 = vmatpush.msra.mxu0 0.0
      %648 = vmatpush.msra.mxu0 0.0
      %649 = vmatpush.msra.mxu0 0.0
      %650 = vmatpush.msra.mxu0 %v624
      %651 = vmatpush.msra.mxu0 %v616
      %652 = vmatmul.f32.gmra.mxu0 %v634
      %v653 = vpop.f32.mrf.mxu0
      %v654 = vadd.f32 0.0, %v653
      %655 = vdwg.mxu0
      %656 = vmatpush.msra.mxu0 0.0
      %657 = vmatpush.msra.mxu0 0.0
      %658 = vmatpush.msra.mxu0 0.0
      %659 = vmatpush.msra.mxu0 0.0
      %660 = vmatpush.msra.mxu0 0.0
      %661 = vmatpush.msra.mxu0 0.0
      %662 = vmatpush.msra.mxu0 0.0
      %663 = vmatpush.msra.mxu0 0.0
      %664 = vmatpush.msra.mxu0 0.0
      %665 = vmatpush.msra.mxu0 0.0
      %666 = vmatpush.msra.mxu0 0.0
      %667 = vmatpush.msra.mxu0 0.0
      %668 = vmatpush.msra.mxu0 0.0
      %669 = vmatpush.msra.mxu0 0.0
      %670 = vmatpush.msra.mxu0 %v625
      %671 = vmatpush.msra.mxu0 %v617
      %672 = vmatmul.f32.gmra.mxu0 %v634
      %v673 = vpop.f32.mrf.mxu0
      %v674 = vadd.f32 0.0, %v673
      %675 = vdwg.mxu0
      %676 = vmatpush.msra.mxu0 0.0
      %677 = vmatpush.msra.mxu0 0.0
      %678 = vmatpush.msra.mxu0 0.0
      %679 = vmatpush.msra.mxu0 0.0
      %680 = vmatpush.msra.mxu0 0.0
      %681 = vmatpush.msra.mxu0 0.0
      %682 = vmatpush.msra.mxu0 0.0
      %683 = vmatpush.msra.mxu0 0.0
      %684 = vmatpush.msra.mxu0 0.0
      %685 = vmatpush.msra.mxu0 0.0
      %686 = vmatpush.msra.mxu0 0.0
      %687 = vmatpush.msra.mxu0 0.0
      %688 = vmatpush.msra.mxu0 0.0
      %689 = vmatpush.msra.mxu0 0.0
      %690 = vmatpush.msra.mxu0 %v626
      %691 = vmatpush.msra.mxu0 %v618
      %692 = vmatmul.f32.gmra.mxu0 %v634
      %v693 = vpop.f32.mrf.mxu0
      %v694 = vadd.f32 0.0, %v693
      %695 = vdwg.mxu0
      %696 = vmatpush.msra.mxu0 0.0
      %697 = vmatpush.msra.mxu0 0.0
      %698 = vmatpush.msra.mxu0 0.0
      %699 = vmatpush.msra.mxu0 0.0
      %700 = vmatpush.msra.mxu0 0.0
      %701 = vmatpush.msra.mxu0 0.0
      %702 = vmatpush.msra.mxu0 0.0
      %703 = vmatpush.msra.mxu0 0.0
      %704 = vmatpush.msra.mxu0 0.0
      %705 = vmatpush.msra.mxu0 0.0
      %706 = vmatpush.msra.mxu0 0.0
      %707 = vmatpush.msra.mxu0 0.0
      %708 = vmatpush.msra.mxu0 0.0
      %709 = vmatpush.msra.mxu0 0.0
      %710 = vmatpush.msra.mxu0 %v627
      %711 = vmatpush.msra.mxu0 %v619
      %712 = vmatmul.f32.gmra.mxu0 %v634
      %v713 = vpop.f32.mrf.mxu0
      %v714 = vadd.f32 0.0, %v713
      %715 = vdwg.mxu0
      %716 = vmatpush.msra.mxu0 0.0
      %717 = vmatpush.msra.mxu0 0.0
      %718 = vmatpush.msra.mxu0 0.0
      %719 = vmatpush.msra.mxu0 0.0
      %720 = vmatpush.msra.mxu0 0.0
      %721 = vmatpush.msra.mxu0 0.0
      %722 = vmatpush.msra.mxu0 0.0
      %723 = vmatpush.msra.mxu0 0.0
      %724 = vmatpush.msra.mxu0 0.0
      %725 = vmatpush.msra.mxu0 0.0
      %726 = vmatpush.msra.mxu0 0.0
      %727 = vmatpush.msra.mxu0 0.0
      %728 = vmatpush.msra.mxu0 0.0
      %729 = vmatpush.msra.mxu0 0.0
      %730 = vmatpush.msra.mxu0 %v628
      %731 = vmatpush.msra.mxu0 %v620
      %732 = vmatmul.f32.gmra.mxu0 %v634
      %v733 = vpop.f32.mrf.mxu0
      %v734 = vadd.f32 0.0, %v733
      %735 = vdwg.mxu0
      %736 = vmatpush.msra.mxu0 0.0
      %737 = vmatpush.msra.mxu0 0.0
      %738 = vmatpush.msra.mxu0 0.0
      %739 = vmatpush.msra.mxu0 0.0
      %740 = vmatpush.msra.mxu0 0.0
      %741 = vmatpush.msra.mxu0 0.0
      %742 = vmatpush.msra.mxu0 0.0
      %743 = vmatpush.msra.mxu0 0.0
      %744 = vmatpush.msra.mxu0 0.0
      %745 = vmatpush.msra.mxu0 0.0
      %746 = vmatpush.msra.mxu0 0.0
      %747 = vmatpush.msra.mxu0 0.0
      %748 = vmatpush.msra.mxu0 0.0
      %749 = vmatpush.msra.mxu0 0.0
      %750 = vmatpush.msra.mxu0 %v629
      %751 = vmatpush.msra.mxu0 %v621
      %752 = vmatmul.f32.gmra.mxu0 %v634
      %v753 = vpop.f32.mrf.mxu0
      %v754 = vadd.f32 0.0, %v753
      %755 = vdwg.mxu0
      %756 = vmatpush.msra.mxu0 0.0
      %757 = vmatpush.msra.mxu0 0.0
      %758 = vmatpush.msra.mxu0 0.0
      %759 = vmatpush.msra.mxu0 0.0
      %760 = vmatpush.msra.mxu0 0.0
      %761 = vmatpush.msra.mxu0 0.0
      %762 = vmatpush.msra.mxu0 0.0
      %763 = vmatpush.msra.mxu0 0.0
      %764 = vmatpush.msra.mxu0 0.0
      %765 = vmatpush.msra.mxu0 0.0
      %766 = vmatpush.msra.mxu0 0.0
      %767 = vmatpush.msra.mxu0 0.0
      %768 = vmatpush.msra.mxu0 0.0
      %769 = vmatpush.msra.mxu0 0.0
      %770 = vmatpush.msra.mxu0 %v630
      %771 = vmatpush.msra.mxu0 %v622
      %772 = vmatmul.f32.gmra.mxu0 %v634
      %v773 = vpop.f32.mrf.mxu0
      %v774 = vadd.f32 0.0, %v773
      %775 = vdwg.mxu0
      %776 = vmatpush.msra.mxu0 0.0
      %777 = vmatpush.msra.mxu0 0.0
      %778 = vmatpush.msra.mxu0 0.0
      %779 = vmatpush.msra.mxu0 0.0
      %780 = vmatpush.msra.mxu0 0.0
      %781 = vmatpush.msra.mxu0 0.0
      %782 = vmatpush.msra.mxu0 0.0
      %783 = vmatpush.msra.mxu0 0.0
      %784 = vmatpush.msra.mxu0 0.0
      %785 = vmatpush.msra.mxu0 0.0
      %786 = vmatpush.msra.mxu0 0.0
      %787 = vmatpush.msra.mxu0 0.0
      %788 = vmatpush.msra.mxu0 0.0
      %789 = vmatpush.msra.mxu0 0.0
      %790 = vmatpush.msra.mxu0 %v631
      %791 = vmatpush.msra.mxu0 %v623
      %792 = vmatmul.f32.gmra.mxu0 %v634
      %v793 = vpop.f32.mrf.mxu0
      %v794 = vadd.f32 0.0, %v793
      %795 = vdwg.mxu0
      %vm796 = vcmask 261120
      %v798 = vsel %vm796, %v582, 0
      %800 = vmatpush.msra.mxu0 0.0
      %801 = vmatpush.msra.mxu0 0.0
      %802 = vmatpush.msra.mxu0 0.0
      %803 = vmatpush.msra.mxu0 0.0
      %804 = vmatpush.msra.mxu0 0.0
      %805 = vmatpush.msra.mxu0 0.0
      %806 = vmatpush.msra.mxu0 0.0
      %807 = vmatpush.msra.mxu0 0.0
      %808 = vmatpush.msra.mxu0 0.0
      %809 = vmatpush.msra.mxu0 0.0
      %810 = vmatpush.msra.mxu0 0.0
      %811 = vmatpush.msra.mxu0 0.0
      %812 = vmatpush.msra.mxu0 %v607
      %813 = vmatpush.msra.mxu0 %v599
      %814 = vmatpush.msra.mxu0 %v591
      %815 = vmatpush.msra.mxu0 %v583
      %816 = vmatmul.f32.gmra.mxu0 %v798
      %v817 = vpop.f32.mrf.mxu0
      %v818 = vadd.f32 %v654, %v817
      %819 = vdwg.mxu0
      %820 = vmatpush.msra.mxu0 0.0
      %821 = vmatpush.msra.mxu0 0.0
      %822 = vmatpush.msra.mxu0 0.0
      %823 = vmatpush.msra.mxu0 0.0
      %824 = vmatpush.msra.mxu0 0.0
      %825 = vmatpush.msra.mxu0 0.0
      %826 = vmatpush.msra.mxu0 0.0
      %827 = vmatpush.msra.mxu0 0.0
      %828 = vmatpush.msra.mxu0 0.0
      %829 = vmatpush.msra.mxu0 0.0
      %830 = vmatpush.msra.mxu0 0.0
      %831 = vmatpush.msra.mxu0 0.0
      %832 = vmatpush.msra.mxu0 %v608
      %833 = vmatpush.msra.mxu0 %v600
      %834 = vmatpush.msra.mxu0 %v592
      %835 = vmatpush.msra.mxu0 %v584
      %836 = vmatmul.f32.gmra.mxu0 %v798
      %v837 = vpop.f32.mrf.mxu0
      %v838 = vadd.f32 %v674, %v837
      %839 = vdwg.mxu0
      %840 = vmatpush.msra.mxu0 0.0
      %841 = vmatpush.msra.mxu0 0.0
      %842 = vmatpush.msra.mxu0 0.0
      %843 = vmatpush.msra.mxu0 0.0
      %844 = vmatpush.msra.mxu0 0.0
      %845 = vmatpush.msra.mxu0 0.0
      %846 = vmatpush.msra.mxu0 0.0
      %847 = vmatpush.msra.mxu0 0.0
      %848 = vmatpush.msra.mxu0 0.0
      %849 = vmatpush.msra.mxu0 0.0
      %850 = vmatpush.msra.mxu0 0.0
      %851 = vmatpush.msra.mxu0 0.0
      %852 = vmatpush.msra.mxu0 %v609
      %853 = vmatpush.msra.mxu0 %v601
      %854 = vmatpush.msra.mxu0 %v593
      %855 = vmatpush.msra.mxu0 %v585
      %856 = vmatmul.f32.gmra.mxu0 %v798
      %v857 = vpop.f32.mrf.mxu0
      %v858 = vadd.f32 %v694, %v857
      %859 = vdwg.mxu0
      %860 = vmatpush.msra.mxu0 0.0
      %861 = vmatpush.msra.mxu0 0.0
      %862 = vmatpush.msra.mxu0 0.0
      %863 = vmatpush.msra.mxu0 0.0
      %864 = vmatpush.msra.mxu0 0.0
      %865 = vmatpush.msra.mxu0 0.0
      %866 = vmatpush.msra.mxu0 0.0
      %867 = vmatpush.msra.mxu0 0.0
      %868 = vmatpush.msra.mxu0 0.0
      %869 = vmatpush.msra.mxu0 0.0
      %870 = vmatpush.msra.mxu0 0.0
      %871 = vmatpush.msra.mxu0 0.0
      %872 = vmatpush.msra.mxu0 %v610
      %873 = vmatpush.msra.mxu0 %v602
      %874 = vmatpush.msra.mxu0 %v594
      %875 = vmatpush.msra.mxu0 %v586
      %876 = vmatmul.f32.gmra.mxu0 %v798
      %v877 = vpop.f32.mrf.mxu0
      %v878 = vadd.f32 %v714, %v877
      %879 = vdwg.mxu0
      %880 = vmatpush.msra.mxu0 0.0
      %881 = vmatpush.msra.mxu0 0.0
      %882 = vmatpush.msra.mxu0 0.0
      %883 = vmatpush.msra.mxu0 0.0
      %884 = vmatpush.msra.mxu0 0.0
      %885 = vmatpush.msra.mxu0 0.0
      %886 = vmatpush.msra.mxu0 0.0
      %887 = vmatpush.msra.mxu0 0.0
      %888 = vmatpush.msra.mxu0 0.0
      %889 = vmatpush.msra.mxu0 0.0
      %890 = vmatpush.msra.mxu0 0.0
      %891 = vmatpush.msra.mxu0 0.0
      %892 = vmatpush.msra.mxu0 %v611
      %893 = vmatpush.msra.mxu0 %v603
      %894 = vmatpush.msra.mxu0 %v595
      %895 = vmatpush.msra.mxu0 %v587
      %896 = vmatmul.f32.gmra.mxu0 %v798
      %v897 = vpop.f32.mrf.mxu0
      %v898 = vadd.f32 %v734, %v897
      %899 = vdwg.mxu0
      %900 = vmatpush.msra.mxu0 0.0
      %901 = vmatpush.msra.mxu0 0.0
      %902 = vmatpush.msra.mxu0 0.0
      %903 = vmatpush.msra.mxu0 0.0
      %904 = vmatpush.msra.mxu0 0.0
      %905 = vmatpush.msra.mxu0 0.0
      %906 = vmatpush.msra.mxu0 0.0
      %907 = vmatpush.msra.mxu0 0.0
      %908 = vmatpush.msra.mxu0 0.0
      %909 = vmatpush.msra.mxu0 0.0
      %910 = vmatpush.msra.mxu0 0.0
      %911 = vmatpush.msra.mxu0 0.0
      %912 = vmatpush.msra.mxu0 %v612
      %913 = vmatpush.msra.mxu0 %v604
      %914 = vmatpush.msra.mxu0 %v596
      %915 = vmatpush.msra.mxu0 %v588
      %916 = vmatmul.f32.gmra.mxu0 %v798
      %v917 = vpop.f32.mrf.mxu0
      %v918 = vadd.f32 %v754, %v917
      %919 = vdwg.mxu0
      %920 = vmatpush.msra.mxu0 0.0
      %921 = vmatpush.msra.mxu0 0.0
      %922 = vmatpush.msra.mxu0 0.0
      %923 = vmatpush.msra.mxu0 0.0
      %924 = vmatpush.msra.mxu0 0.0
      %925 = vmatpush.msra.mxu0 0.0
      %926 = vmatpush.msra.mxu0 0.0
      %927 = vmatpush.msra.mxu0 0.0
      %928 = vmatpush.msra.mxu0 0.0
      %929 = vmatpush.msra.mxu0 0.0
      %930 = vmatpush.msra.mxu0 0.0
      %931 = vmatpush.msra.mxu0 0.0
      %932 = vmatpush.msra.mxu0 %v613
      %933 = vmatpush.msra.mxu0 %v605
      %934 = vmatpush.msra.mxu0 %v597
      %935 = vmatpush.msra.mxu0 %v589
      %936 = vmatmul.f32.gmra.mxu0 %v798
      %v937 = vpop.f32.mrf.mxu0
      %v938 = vadd.f32 %v774, %v937
      %939 = vdwg.mxu0
      %940 = vmatpush.msra.mxu0 0.0
      %941 = vmatpush.msra.mxu0 0.0
      %942 = vmatpush.msra.mxu0 0.0
      %943 = vmatpush.msra.mxu0 0.0
      %944 = vmatpush.msra.mxu0 0.0
      %945 = vmatpush.msra.mxu0 0.0
      %946 = vmatpush.msra.mxu0 0.0
      %947 = vmatpush.msra.mxu0 0.0
      %948 = vmatpush.msra.mxu0 0.0
      %949 = vmatpush.msra.mxu0 0.0
      %950 = vmatpush.msra.mxu0 0.0
      %951 = vmatpush.msra.mxu0 0.0
      %952 = vmatpush.msra.mxu0 %v614
      %953 = vmatpush.msra.mxu0 %v606
      %954 = vmatpush.msra.mxu0 %v598
      %955 = vmatpush.msra.mxu0 %v590
      %956 = vmatmul.f32.gmra.mxu0 %v798
      %v957 = vpop.f32.mrf.mxu0
      %v958 = vadd.f32 %v794, %v957
      %959 = vdwg.mxu0
      %v960 = vld [vmem:[%s4] sm:$0xff]
      %v962 = vperm.slane %v960, 0
      %v963 = vperm.slane %v960, 1
      %v964 = vperm.slane %v960, 2
      %v965 = vperm.slane %v960, 3
      %v966 = vperm.slane %v960, 4
      %v967 = vperm.slane %v960, 5
      %v968 = vperm.slane %v960, 6
      %v969 = vperm.slane %v960, 7
      %v978 = vadd.f32 %v818, %v962
      %v979 = vadd.f32 %v838, %v963
      %v980 = vadd.f32 %v858, %v964
      %v981 = vadd.f32 %v878, %v965
      %v982 = vadd.f32 %v898, %v966
      %v983 = vadd.f32 %v918, %v967
      %v984 = vadd.f32 %v938, %v968
      %v985 = vadd.f32 %v958, %v969
      %v986 = vld [vmem:[%s5] sm:$0xff]
      %v988 = vperm.slane %v986, 0
      %v989 = vperm.slane %v986, 1
      %v990 = vperm.slane %v986, 2
      %v991 = vperm.slane %v986, 3
      %v992 = vperm.slane %v986, 4
      %v993 = vperm.slane %v986, 5
      %v994 = vperm.slane %v986, 6
      %v995 = vperm.slane %v986, 7
      %v1004 = vmul.f32 %v978, %v988
      %v1005 = vmul.f32 %v979, %v989
      %v1006 = vmul.f32 %v980, %v990
      %v1007 = vmul.f32 %v981, %v991
      %v1008 = vmul.f32 %v982, %v992
      %v1009 = vmul.f32 %v983, %v993
      %v1010 = vmul.f32 %v984, %v994
      %v1011 = vmul.f32 %v985, %v995
      %v1012 = vld [vmem:[%s6] sm:$0xff]
      %v1014 = vperm.slane %v1012, 0
      %v1015 = vperm.slane %v1012, 1
      %v1016 = vperm.slane %v1012, 2
      %v1017 = vperm.slane %v1012, 3
      %v1018 = vperm.slane %v1012, 4
      %v1019 = vperm.slane %v1012, 5
      %v1020 = vperm.slane %v1012, 6
      %v1021 = vperm.slane %v1012, 7
      %v1030 = vadd.f32 %v1004, %v1014
      %v1031 = vadd.f32 %v1005, %v1015
      %v1032 = vadd.f32 %v1006, %v1016
      %v1033 = vadd.f32 %v1007, %v1017
      %v1034 = vadd.f32 %v1008, %v1018
      %v1035 = vadd.f32 %v1009, %v1019
      %v1036 = vadd.f32 %v1010, %v1020
      %v1037 = vadd.f32 %v1011, %v1021
      %v1038 = vmax.f32 %v1030, 0.0
      %v1039 = vmax.f32 %v1031, 0.0
      %v1040 = vmax.f32 %v1032, 0.0
      %v1041 = vmax.f32 %v1033, 0.0
      %v1042 = vmax.f32 %v1034, 0.0
      %v1043 = vmax.f32 %v1035, 0.0
      %v1044 = vmax.f32 %v1036, 0.0
      %v1045 = vmax.f32 %v1037, 0.0
      %v1047 = vrot.slane %v1038, 7
      %1048 = vrot.lane.b32.xlu0 %v1047, 64
      %v1049 = vpop.permute.xlu0 %1048
      %v1052 = vrot.slane %v1039, 6
      %v1054 = vrot.slane %v1039, 5
      %1055 = vrot.lane.b32.xlu0 %v1054, 64
      %v1056 = vpop.permute.xlu0 %1055
      %v1059 = vrot.slane %v1040, 4
      %v1061 = vrot.slane %v1040, 3
      %1062 = vrot.lane.b32.xlu0 %v1061, 64
      %v1063 = vpop.permute.xlu0 %1062
      %v1066 = vrot.slane %v1041, 2
      %v1068 = vrot.slane %v1041, 1
      %1069 = vrot.lane.b32.xlu0 %v1068, 64
      %v1070 = vpop.permute.xlu0 %1069
      %v1073 = vrot.slane %v1042, 7
      %1074 = vrot.lane.b32.xlu0 %v1073, 64
      %v1075 = vpop.permute.xlu0 %1074
      %v1078 = vrot.slane %v1043, 6
      %v1080 = vrot.slane %v1043, 5
      %1081 = vrot.lane.b32.xlu0 %v1080, 64
      %v1082 = vpop.permute.xlu0 %1081
      %v1085 = vrot.slane %v1044, 4
      %v1087 = vrot.slane %v1044, 3
      %1088 = vrot.lane.b32.xlu0 %v1087, 64
      %v1089 = vpop.permute.xlu0 %1088
      %v1092 = vrot.slane %v1045, 2
      %v1094 = vrot.slane %v1045, 1
      %1095 = vrot.lane.b32.xlu0 %v1094, 64
      %v1096 = vpop.permute.xlu0 %1095
      %vm1098 = vcmask 1040384
      %v1099 = vsel %vm1098, %v1038, %v1049
      %vm1100 = vcmask 1041408
      %v1101 = vsel %vm1100, %v1099, %v1052
      %vm1102 = vcmask 1042432
      %v1103 = vsel %vm1102, %v1101, %v1056
      %vm1104 = vcmask 1043456
      %v1105 = vsel %vm1104, %v1103, %v1059
      %vm1106 = vcmask 1044480
      %v1107 = vsel %vm1106, %v1105, %v1063
      %vm1108 = vcmask 1045504
      %v1109 = vsel %vm1108, %v1107, %v1066
      %vm1110 = vcmask 1046528
      %v1111 = vsel %vm1110, %v1109, %v1070
      %v1112 = vsel %vm1098, %v1042, %v1075
      %v1113 = vsel %vm1100, %v1112, %v1078
      %v1114 = vsel %vm1102, %v1113, %v1082
      %v1115 = vsel %vm1104, %v1114, %v1085
      %v1116 = vsel %vm1106, %v1115, %v1089
      %v1117 = vsel %vm1108, %v1116, %v1092
      %v1118 = vsel %vm1110, %v1117, %v1096
      %v1121 = vrot.slane %v1111, 2
      %v1122 = vrot.slane %v1111, 4
      %v1123 = vrot.slane %v1111, 6
      %v1124 = vrot.slane %v1118, 2
      %v1125 = vrot.slane %v1118, 4
      %v1126 = vrot.slane %v1118, 6
      %1127 = vst [vmem:[#allocation1] ss:$4 sm:$0xff] %v1111
      %v1128 = vld.sshfl [vmem:[#allocation1] sm:$0xff pattern:$0x73625140]
      %s1129 = scalar_lea.vmem [#allocation1], 32
      %1130 = vst [vmem:[%s1129] ss:$4 sm:$0xff] %v1121
      %v1131 = vld.sshfl [vmem:[#allocation1 + $0x20] sm:$0xff pattern:$0x73625140]
      %1132 = vst [vmem:[#allocation1] ss:$4 sm:$0xff] %v1122
      %v1133 = vld.sshfl [vmem:[#allocation1] sm:$0xff pattern:$0x73625140]
      %1134 = vst [vmem:[%s1129] ss:$4 sm:$0xff] %v1123
      %v1135 = vld.sshfl [vmem:[#allocation1 + $0x20] sm:$0xff pattern:$0x73625140]
      %1136 = vst [vmem:[#allocation1] ss:$4 sm:$0xff] %v1118
      %v1137 = vld.sshfl [vmem:[#allocation1] sm:$0xff pattern:$0x73625140]
      %1138 = vst [vmem:[%s1129] ss:$4 sm:$0xff] %v1124
      %v1139 = vld.sshfl [vmem:[#allocation1 + $0x20] sm:$0xff pattern:$0x73625140]
      %1140 = vst [vmem:[#allocation1] ss:$4 sm:$0xff] %v1125
      %v1141 = vld.sshfl [vmem:[#allocation1] sm:$0xff pattern:$0x73625140]
      %1142 = vst [vmem:[%s1129] ss:$4 sm:$0xff] %v1126
      %v1143 = vld.sshfl [vmem:[#allocation1 + $0x20] sm:$0xff pattern:$0x73625140]
      %v1144 = vrot.slane %v1128, 7
      %v1145 = vrot.slane %v1131, 7
      %v1146 = vrot.slane %v1133, 7
      %v1147 = vrot.slane %v1135, 7
      %v1148 = vrot.slane %v1137, 7
      %v1149 = vrot.slane %v1139, 7
      %v1150 = vrot.slane %v1141, 7
      %v1151 = vrot.slane %v1143, 7
      %v1160 = vsel %vm1098, 0.0, %v1144
      %v1161 = vsel %vm1098, 0.0, %v1145
      %v1162 = vsel %vm1098, 0.0, %v1146
      %v1163 = vsel %vm1098, 0.0, %v1147
      %v1164 = vsel %vm1098, 0.0, %v1148
      %v1165 = vsel %vm1098, 0.0, %v1149
      %v1166 = vsel %vm1098, 0.0, %v1150
      %v1167 = vsel %vm1098, 0.0, %v1151
      %v1168 = vsel %vm1102, %v1160, 0.0
      %v1169 = vsel %vm1102, %v1161, 0.0
      %v1170 = vsel %vm1102, %v1162, 0.0
      %v1171 = vsel %vm1102, %v1163, 0.0
      %v1172 = vsel %vm1102, %v1164, 0.0
      %v1173 = vsel %vm1102, %v1165, 0.0
      %v1174 = vsel %vm1102, %v1166, 0.0
      %v1175 = vsel %vm1102, %v1167, 0.0
      %v1184 = vrot.slane 0.0, 1
      %v1185 = vrot.slane %v1168, 1
      %v1186 = vrot.slane %v1169, 1
      %v1187 = vrot.slane %v1170, 1
      %v1188 = vrot.slane %v1171, 1
      %v1189 = vrot.slane %v1172, 1
      %v1190 = vrot.slane %v1173, 1
      %v1191 = vrot.slane %v1174, 1
      %1192 = vrot.lane.b32.xlu0 %v1184, 64
      %v1193 = vpop.permute.xlu0 %1192
      %1194 = vrot.lane.b32.xlu0 %v1185, 64
      %v1195 = vpop.permute.xlu0 %1194
      %1196 = vrot.lane.b32.xlu0 %v1186, 64
      %v1197 = vpop.permute.xlu0 %1196
      %1198 = vrot.lane.b32.xlu0 %v1187, 64
      %v1199 = vpop.permute.xlu0 %1198
      %1200 = vrot.lane.b32.xlu0 %v1188, 64
      %v1201 = vpop.permute.xlu0 %1200
      %1202 = vrot.lane.b32.xlu0 %v1189, 64
      %v1203 = vpop.permute.xlu0 %1202
      %1204 = vrot.lane.b32.xlu0 %v1190, 64
      %v1205 = vpop.permute.xlu0 %1204
      %1206 = vrot.lane.b32.xlu0 %v1191, 64
      %v1207 = vpop.permute.xlu0 %1206
      %v1216 = vrot.slane 0.0, 2
      %v1217 = vrot.slane %v1168, 2
      %v1218 = vrot.slane %v1169, 2
      %v1219 = vrot.slane %v1170, 2
      %v1220 = vrot.slane %v1171, 2
      %v1221 = vrot.slane %v1172, 2
      %v1222 = vrot.slane %v1173, 2
      %v1223 = vrot.slane %v1174, 2
      %1233 = vrot.lane.b32.xlu0 %v1168, 64
      %v1234 = vpop.permute.xlu0 %1233
      %1235 = vrot.lane.b32.xlu0 %v1169, 64
      %v1236 = vpop.permute.xlu0 %1235
      %1237 = vrot.lane.b32.xlu0 %v1170, 64
      %v1238 = vpop.permute.xlu0 %1237
      %1239 = vrot.lane.b32.xlu0 %v1171, 64
      %v1240 = vpop.permute.xlu0 %1239
      %1241 = vrot.lane.b32.xlu0 %v1172, 64
      %v1242 = vpop.permute.xlu0 %1241
      %1243 = vrot.lane.b32.xlu0 %v1173, 64
      %v1244 = vpop.permute.xlu0 %1243
      %1245 = vrot.lane.b32.xlu0 %v1174, 64
      %v1246 = vpop.permute.xlu0 %1245
      %1247 = vrot.lane.b32.xlu0 %v1175, 64
      %v1248 = vpop.permute.xlu0 %1247
      %v1257 = vrot.slane %v1175, 1
      %v1266 = vrot.slane %v1175, 2
      %1267 = vrot.lane.b32.xlu0 %v1217, 64
      %v1268 = vpop.permute.xlu0 %1267
      %1269 = vrot.lane.b32.xlu0 %v1218, 64
      %v1270 = vpop.permute.xlu0 %1269
      %1271 = vrot.lane.b32.xlu0 %v1219, 64
      %v1272 = vpop.permute.xlu0 %1271
      %1273 = vrot.lane.b32.xlu0 %v1220, 64
      %v1274 = vpop.permute.xlu0 %1273
      %1275 = vrot.lane.b32.xlu0 %v1221, 64
      %v1276 = vpop.permute.xlu0 %1275
      %1277 = vrot.lane.b32.xlu0 %v1222, 64
      %v1278 = vpop.permute.xlu0 %1277
      %1279 = vrot.lane.b32.xlu0 %v1223, 64
      %v1280 = vpop.permute.xlu0 %1279
      %1281 = vrot.lane.b32.xlu0 %v1266, 64
      %v1282 = vpop.permute.xlu0 %1281
      %1291 = vrot.lane.b32.xlu0 %v1257, 64
      %v1292 = vpop.permute.xlu0 %1291
      %vm1294 = vcmask 523264
      %v1295 = vsel %vm1294, 0.0, %v1193
      %v1296 = vsel %vm1294, %v1168, %v1195
      %v1297 = vsel %vm1294, %v1169, %v1197
      %v1298 = vsel %vm1294, %v1170, %v1199
      %v1299 = vsel %vm1294, %v1171, %v1201
      %v1300 = vsel %vm1294, %v1172, %v1203
      %v1301 = vsel %vm1294, %v1173, %v1205
      %v1302 = vsel %vm1294, %v1174, %v1207
      %v1303 = vsel %vm1294, %v1216, %v1234
      %v1304 = vsel %vm1294, %v1217, %v1236
      %v1305 = vsel %vm1294, %v1218, %v1238
      %v1306 = vsel %vm1294, %v1219, %v1240
      %v1307 = vsel %vm1294, %v1220, %v1242
      %v1308 = vsel %vm1294, %v1221, %v1244
      %v1309 = vsel %vm1294, %v1222, %v1246
      %v1310 = vsel %vm1294, %v1223, %v1248
      %v1311 = vsel %vm1294, %v1185, %v1268
      %v1312 = vsel %vm1294, %v1186, %v1270
      %v1313 = vsel %vm1294, %v1187, %v1272
      %v1314 = vsel %vm1294, %v1188, %v1274
      %v1315 = vsel %vm1294, %v1189, %v1276
      %v1316 = vsel %vm1294, %v1190, %v1278
      %v1317 = vsel %vm1294, %v1191, %v1280
      %v1318 = vsel %vm1294, %v1257, %v1282
      %v1319 = vsel %vm1294, %v1175, %v1292
      %v1345 = vrot.slane %v1303, 6
      %v1346 = vrot.slane %v1311, 4
      %v1347 = vrot.slane %v1297, 2
      %v1348 = vrot.slane %v1304, 6
      %v1349 = vrot.slane %v1312, 4
      %v1350 = vrot.slane %v1298, 2
      %v1351 = vrot.slane %v1305, 6
      %v1352 = vrot.slane %v1313, 4
      %v1353 = vrot.slane %v1299, 2
      %v1354 = vrot.slane %v1306, 6
      %v1355 = vrot.slane %v1314, 4
      %v1356 = vrot.slane %v1300, 2
      %v1357 = vrot.slane %v1307, 6
      %v1358 = vrot.slane %v1315, 4
      %v1359 = vrot.slane %v1301, 2
      %v1360 = vrot.slane %v1308, 6
      %v1361 = vrot.slane %v1316, 4
      %v1362 = vrot.slane %v1302, 2
      %v1363 = vrot.slane %v1309, 6
      %v1364 = vrot.slane %v1317, 4
      %v1365 = vrot.slane %v1319, 2
      %v1366 = vrot.slane %v1310, 6
      %v1367 = vrot.slane %v1318, 4
      %v1368 = vrot.slane %v1295, 2
      %v1369 = vsel %vm1100, %v1295, %v1345
      %vm1370 = vcmask 1045508
      %v1371 = vsel %vm1370, %v1346, %v1347
      %v1372 = vsel %vm1104, %v1369, %v1371
      %v1373 = vsel %vm1100, %v1296, %v1348
      %v1374 = vsel %vm1370, %v1349, %v1350
      %v1375 = vsel %vm1104, %v1373, %v1374
      %v1376 = vsel %vm1100, %v1297, %v1351
      %v1377 = vsel %vm1370, %v1352, %v1353
      %v1378 = vsel %vm1104, %v1376, %v1377
      %v1379 = vsel %vm1100, %v1298, %v1354
      %v1380 = vsel %vm1370, %v1355, %v1356
      %v1381 = vsel %vm1104, %v1379, %v1380
      %v1382 = vsel %vm1100, %v1299, %v1357
      %v1383 = vsel %vm1370, %v1358, %v1359
      %v1384 = vsel %vm1104, %v1382, %v1383
      %v1385 = vsel %vm1100, %v1300, %v1360
      %v1386 = vsel %vm1370, %v1361, %v1362
      %v1387 = vsel %vm1104, %v1385, %v1386
      %v1388 = vsel %vm1100, %v1301, %v1363
      %v1389 = vsel %vm1370, %v1364, %v1365
      %v1390 = vsel %vm1104, %v1388, %v1389
      %v1391 = vsel %vm1100, %v1302, %v1366
      %v1392 = vsel %vm1370, %v1367, %v1368
      %v1393 = vsel %vm1104, %v1391, %v1392
      %v1394 = vld [vmem:[%s7] sm:$0xff]
      %v1395 = vld [vmem:[%s7 + $0x8] sm:$0xff]
      %v1396 = vld [vmem:[%s7 + $0x10] sm:$0xff]
      %v1397 = vld [vmem:[%s7 + $0x18] sm:$0xff]
      %v1398 = vld [vmem:[%s7 + $0x20] sm:$0xff]
      %v1399 = vld [vmem:[%s7 + $0x28] sm:$0xff]
      %v1400 = vld [vmem:[%s7 + $0x30] sm:$0xff]
      %v1401 = vld [vmem:[%s7 + $0x38] sm:$0xff]
      %v1402 = vld [vmem:[%s7 + $0x40] sm:$0xff]
      %v1403 = vld [vmem:[%s7 + $0x48] sm:$0xff]
      %v1404 = vld [vmem:[%s7 + $0x50] sm:$0xff]
      %v1405 = vld [vmem:[%s7 + $0x58] sm:$0xff]
      %v1406 = vld [vmem:[%s7 + $0x60] sm:$0xff]
      %v1407 = vld [vmem:[%s7 + $0x68] sm:$0xff]
      %v1408 = vld [vmem:[%s7 + $0x70] sm:$0xff]
      %v1409 = vld [vmem:[%s7 + $0x78] sm:$0xff]
      %v1410 = vld [vmem:[%s7 + $0x80] sm:$0xff]
      %v1411 = vld [vmem:[%s7 + $0x88] sm:$0xff]
      %v1412 = vld [vmem:[%s7 + $0x90] sm:$0xff]
      %v1413 = vld [vmem:[%s7 + $0x98] sm:$0xff]
      %v1414 = vld [vmem:[%s7 + $0xa0] sm:$0xff]
      %v1415 = vld [vmem:[%s7 + $0xa8] sm:$0xff]
      %v1416 = vld [vmem:[%s7 + $0xb0] sm:$0xff]
      %v1417 = vld [vmem:[%s7 + $0xb8] sm:$0xff]
      %v1418 = vld [vmem:[%s7 + $0xc0] sm:$0xff]
      %v1419 = vld [vmem:[%s7 + $0xc8] sm:$0xff]
      %v1420 = vld [vmem:[%s7 + $0xd0] sm:$0xff]
      %v1421 = vld [vmem:[%s7 + $0xd8] sm:$0xff]
      %v1422 = vld [vmem:[%s7 + $0xe0] sm:$0xff]
      %v1423 = vld [vmem:[%s7 + $0xe8] sm:$0xff]
      %v1424 = vld [vmem:[%s7 + $0xf0] sm:$0xff]
      %v1425 = vld [vmem:[%s7 + $0xf8] sm:$0xff]
      %v1426 = vld [vmem:[%s7 + $0x100] sm:$0xff]
      %v1427 = vld [vmem:[%s7 + $0x108] sm:$0xff]
      %v1428 = vld [vmem:[%s7 + $0x110] sm:$0xff]
      %v1429 = vld [vmem:[%s7 + $0x118] sm:$0xff]
      %v1430 = vld [vmem:[%s7 + $0x120] sm:$0xff]
      %v1431 = vld [vmem:[%s7 + $0x128] sm:$0xff]
      %v1432 = vld [vmem:[%s7 + $0x130] sm:$0xff]
      %v1433 = vld [vmem:[%s7 + $0x138] sm:$0xff]
      %v1434 = vld [vmem:[%s7 + $0x140] sm:$0xff]
      %v1435 = vld [vmem:[%s7 + $0x148] sm:$0xff]
      %v1436 = vld [vmem:[%s7 + $0x150] sm:$0xff]
      %v1437 = vld [vmem:[%s7 + $0x158] sm:$0xff]
      %v1438 = vld [vmem:[%s7 + $0x160] sm:$0xff]
      %v1439 = vld [vmem:[%s7 + $0x168] sm:$0xff]
      %v1440 = vld [vmem:[%s7 + $0x170] sm:$0xff]
      %v1441 = vld [vmem:[%s7 + $0x178] sm:$0xff]
      %v1442 = vld [vmem:[%s7 + $0x180] sm:$0xff]
      %v1443 = vld [vmem:[%s7 + $0x188] sm:$0xff]
      %v1444 = vld [vmem:[%s7 + $0x190] sm:$0xff]
      %v1445 = vld [vmem:[%s7 + $0x198] sm:$0xff]
      %v1446 = vld [vmem:[%s7 + $0x1a0] sm:$0xff]
      %v1447 = vld [vmem:[%s7 + $0x1a8] sm:$0xff]
      %v1448 = vld [vmem:[%s7 + $0x1b0] sm:$0xff]
      %v1449 = vld [vmem:[%s7 + $0x1b8] sm:$0xff]
      %v1450 = vld [vmem:[%s7 + $0x1c0] sm:$0xff]
      %v1451 = vld [vmem:[%s7 + $0x1c8] sm:$0xff]
      %v1452 = vld [vmem:[%s7 + $0x1d0] sm:$0xff]
      %v1453 = vld [vmem:[%s7 + $0x1d8] sm:$0xff]
      %v1454 = vld [vmem:[%s7 + $0x1e0] sm:$0xff]
      %v1455 = vld [vmem:[%s7 + $0x1e8] sm:$0xff]
      %v1456 = vld [vmem:[%s7 + $0x1f0] sm:$0xff]
      %v1457 = vld [vmem:[%s7 + $0x1f8] sm:$0xff]
      %v1458 = vld [vmem:[%s7 + $0x200] sm:$0xff]
      %v1459 = vld [vmem:[%s7 + $0x208] sm:$0xff]
      %v1460 = vld [vmem:[%s7 + $0x210] sm:$0xff]
      %v1461 = vld [vmem:[%s7 + $0x218] sm:$0xff]
      %v1462 = vld [vmem:[%s7 + $0x220] sm:$0xff]
      %v1463 = vld [vmem:[%s7 + $0x228] sm:$0xff]
      %v1464 = vld [vmem:[%s7 + $0x230] sm:$0xff]
      %v1465 = vld [vmem:[%s7 + $0x238] sm:$0xff]
      %v1466 = vld [vmem:[%s7 + $0x240] sm:$0xff]
      %v1467 = vld [vmem:[%s7 + $0x248] sm:$0xff]
      %v1468 = vld [vmem:[%s7 + $0x250] sm:$0xff]
      %v1469 = vld [vmem:[%s7 + $0x258] sm:$0xff]
      %v1470 = vld [vmem:[%s7 + $0x260] sm:$0xff]
      %v1471 = vld [vmem:[%s7 + $0x268] sm:$0xff]
      %v1472 = vld [vmem:[%s7 + $0x270] sm:$0xff]
      %v1473 = vld [vmem:[%s7 + $0x278] sm:$0xff]
      %v1474 = vld [vmem:[%s7 + $0x280] sm:$0xff]
      %v1475 = vld [vmem:[%s7 + $0x288] sm:$0xff]
      %v1476 = vld [vmem:[%s7 + $0x290] sm:$0xff]
      %v1477 = vld [vmem:[%s7 + $0x298] sm:$0xff]
      %v1478 = vld [vmem:[%s7 + $0x2a0] sm:$0xff]
      %v1479 = vld [vmem:[%s7 + $0x2a8] sm:$0xff]
      %v1480 = vld [vmem:[%s7 + $0x2b0] sm:$0xff]
      %v1481 = vld [vmem:[%s7 + $0x2b8] sm:$0xff]
      %v1482 = vld [vmem:[%s7 + $0x2c0] sm:$0xff]
      %v1483 = vld [vmem:[%s7 + $0x2c8] sm:$0xff]
      %v1484 = vld [vmem:[%s7 + $0x2d0] sm:$0xff]
      %v1485 = vld [vmem:[%s7 + $0x2d8] sm:$0xff]
      %v1486 = vld [vmem:[%s7 + $0x2e0] sm:$0xff]
      %v1487 = vld [vmem:[%s7 + $0x2e8] sm:$0xff]
      %v1488 = vld [vmem:[%s7 + $0x2f0] sm:$0xff]
      %v1489 = vld [vmem:[%s7 + $0x2f8] sm:$0xff]
      %v1490 = vld [vmem:[%s7 + $0x300] sm:$0xff]
      %v1491 = vld [vmem:[%s7 + $0x308] sm:$0xff]
      %v1492 = vld [vmem:[%s7 + $0x310] sm:$0xff]
      %v1493 = vld [vmem:[%s7 + $0x318] sm:$0xff]
      %v1494 = vld [vmem:[%s7 + $0x320] sm:$0xff]
      %v1495 = vld [vmem:[%s7 + $0x328] sm:$0xff]
      %v1496 = vld [vmem:[%s7 + $0x330] sm:$0xff]
      %v1497 = vld [vmem:[%s7 + $0x338] sm:$0xff]
      %v1498 = vld [vmem:[%s7 + $0x340] sm:$0xff]
      %v1499 = vld [vmem:[%s7 + $0x348] sm:$0xff]
      %v1500 = vld [vmem:[%s7 + $0x350] sm:$0xff]
      %v1501 = vld [vmem:[%s7 + $0x358] sm:$0xff]
      %v1502 = vld [vmem:[%s7 + $0x360] sm:$0xff]
      %v1503 = vld [vmem:[%s7 + $0x368] sm:$0xff]
      %v1504 = vld [vmem:[%s7 + $0x370] sm:$0xff]
      %v1505 = vld [vmem:[%s7 + $0x378] sm:$0xff]
      %v1506 = vld [vmem:[%s7 + $0x380] sm:$0xff]
      %v1507 = vld [vmem:[%s7 + $0x388] sm:$0xff]
      %v1508 = vld [vmem:[%s7 + $0x390] sm:$0xff]
      %v1509 = vld [vmem:[%s7 + $0x398] sm:$0xff]
      %v1510 = vld [vmem:[%s7 + $0x3a0] sm:$0xff]
      %v1511 = vld [vmem:[%s7 + $0x3a8] sm:$0xff]
      %v1512 = vld [vmem:[%s7 + $0x3b0] sm:$0xff]
      %v1513 = vld [vmem:[%s7 + $0x3b8] sm:$0xff]
      %v1514 = vld [vmem:[%s7 + $0x3c0] sm:$0xff]
      %v1515 = vld [vmem:[%s7 + $0x3c8] sm:$0xff]
      %v1516 = vld [vmem:[%s7 + $0x3d0] sm:$0xff]
      %v1517 = vld [vmem:[%s7 + $0x3d8] sm:$0xff]
      %v1518 = vld [vmem:[%s7 + $0x3e0] sm:$0xff]
      %v1519 = vld [vmem:[%s7 + $0x3e8] sm:$0xff]
      %v1520 = vld [vmem:[%s7 + $0x3f0] sm:$0xff]
      %v1521 = vld [vmem:[%s7 + $0x3f8] sm:$0xff]
      %v1522 = vld [vmem:[%s7 + $0x400] sm:$0xff]
      %v1523 = vld [vmem:[%s7 + $0x408] sm:$0xff]
      %v1524 = vld [vmem:[%s7 + $0x410] sm:$0xff]
      %v1525 = vld [vmem:[%s7 + $0x418] sm:$0xff]
      %v1526 = vld [vmem:[%s7 + $0x420] sm:$0xff]
      %v1527 = vld [vmem:[%s7 + $0x428] sm:$0xff]
      %v1528 = vld [vmem:[%s7 + $0x430] sm:$0xff]
      %v1529 = vld [vmem:[%s7 + $0x438] sm:$0xff]
      %v1530 = vld [vmem:[%s7 + $0x440] sm:$0xff]
      %v1531 = vld [vmem:[%s7 + $0x448] sm:$0xff]
      %v1532 = vld [vmem:[%s7 + $0x450] sm:$0xff]
      %v1533 = vld [vmem:[%s7 + $0x458] sm:$0xff]
      %v1534 = vld [vmem:[%s7 + $0x460] sm:$0xff]
      %v1535 = vld [vmem:[%s7 + $0x468] sm:$0xff]
      %v1536 = vld [vmem:[%s7 + $0x470] sm:$0xff]
      %v1537 = vld [vmem:[%s7 + $0x478] sm:$0xff]
      %1538 = vst [vmem:[#allocation1] ss:$4 sm:$0xff] %v1372
      %s1539 = scalar_lea.vmem [#allocation1], 1
      %1540 = vst [vmem:[%s1539] ss:$4 sm:$0xff] %v1375
      %s1541 = scalar_lea.vmem [#allocation1], 2
      %1542 = vst [vmem:[%s1541] ss:$4 sm:$0xff] %v1378
      %s1543 = scalar_lea.vmem [#allocation1], 3
      %1544 = vst [vmem:[%s1543] ss:$4 sm:$0xff] %v1381
      %s1545 = scalar_lea.vmem [#allocation1], 32
      %1546 = vst [vmem:[%s1545] ss:$4 sm:$0xff] %v1218
      %s1547 = scalar_lea.vmem [#allocation1], 33
      %1548 = vst [vmem:[%s1547] ss:$4 sm:$0xff] %v1219
      %s1549 = scalar_lea.vmem [#allocation1], 34
      %1550 = vst [vmem:[%s1549] ss:$4 sm:$0xff] %v1220
      %s1551 = scalar_lea.vmem [#allocation1], 35
      %1552 = vst [vmem:[%s1551] ss:$4 sm:$0xff] %v1221
      %v1553 = vld.sshfl [vmem:[#allocation1] sm:$0xff pattern:$0x73625140]
      %v1554 = vld.sshfl [vmem:[#allocation1 + $0x8] sm:$0xff pattern:$0x73625140]
      %v1555 = vld.sshfl [vmem:[#allocation1 + $0x10] sm:$0xff pattern:$0x73625140]
      %v1556 = vld.sshfl [vmem:[#allocation1 + $0x18] sm:$0xff pattern:$0x73625140]
      %v1557 = vld.sshfl [vmem:[#allocation1 + $0x20] sm:$0xff pattern:$0x73625140]
      %1558 = vst [vmem:[#allocation1] ss:$4 sm:$0xff] %v1384
      %1559 = vst [vmem:[%s1539] ss:$4 sm:$0xff] %v1387
      %1560 = vst [vmem:[%s1541] ss:$4 sm:$0xff] %v1390
      %1561 = vst [vmem:[%s1543] ss:$4 sm:$0xff] %v1393
      %1562 = vst [vmem:[%s1545] ss:$4 sm:$0xff] %v1222
      %1563 = vst [vmem:[%s1547] ss:$4 sm:$0xff] %v1223
      %1564 = vst [vmem:[%s1549] ss:$4 sm:$0xff] %v1266
      %1565 = vst [vmem:[%s1551] ss:$4 sm:$0xff] %v1216
      %v1566 = vld.sshfl [vmem:[#allocation1] sm:$0xff pattern:$0x73625140]
      %v1567 = vld.sshfl [vmem:[#allocation1 + $0x8] sm:$0xff pattern:$0x73625140]
      %v1568 = vld.sshfl [vmem:[#allocation1 + $0x10] sm:$0xff pattern:$0x73625140]
      %v1569 = vld.sshfl [vmem:[#allocation1 + $0x18] sm:$0xff pattern:$0x73625140]
      %v1570 = vld.sshfl [vmem:[#allocation1 + $0x20] sm:$0xff pattern:$0x73625140]
      %v1579 = vsel %vm1294, %v1557, 0
      %v1581 = vsel %vm1294, %v1570, 0
      %1583 = vmatpush.msra.mxu0 %v1424
      %1584 = vmatpush.msra.mxu0 %v1422
      %1585 = vmatpush.msra.mxu0 %v1420
      %1586 = vmatpush.msra.mxu0 %v1418
      %1587 = vmatpush.msra.mxu0 %v1416
      %1588 = vmatpush.msra.mxu0 %v1414
      %1589 = vmatpush.msra.mxu0 %v1412
      %1590 = vmatpush.msra.mxu0 %v1410
      %1591 = vmatpush.msra.mxu0 %v1408
      %1592 = vmatpush.msra.mxu0 %v1406
      %1593 = vmatpush.msra.mxu0 %v1404
      %1594 = vmatpush.msra.mxu0 %v1402
      %1595 = vmatpush.msra.mxu0 %v1400
      %1596 = vmatpush.msra.mxu0 %v1398
      %1597 = vmatpush.msra.mxu0 %v1396
      %1598 = vmatpush.msra.mxu0 %v1394
      %1599 = vmatmul.f32.gmra.mxu0 %v1553
      %v1600 = vpop.f32.mrf.mxu0
      %v1601 = vadd.f32 0.0, %v1600
      %1602 = vmatmul.f32.gmra.mxu0 %v1566
      %v1603 = vpop.f32.mrf.mxu0
      %v1604 = vadd.f32 0.0, %v1603
      %1605 = vdwg.mxu0
      %1606 = vmatpush.msra.mxu0 %v1456
      %1607 = vmatpush.msra.mxu0 %v1454
      %1608 = vmatpush.msra.mxu0 %v1452
      %1609 = vmatpush.msra.mxu0 %v1450
      %1610 = vmatpush.msra.mxu0 %v1448
      %1611 = vmatpush.msra.mxu0 %v1446
      %1612 = vmatpush.msra.mxu0 %v1444
      %1613 = vmatpush.msra.mxu0 %v1442
      %1614 = vmatpush.msra.mxu0 %v1440
      %1615 = vmatpush.msra.mxu0 %v1438
      %1616 = vmatpush.msra.mxu0 %v1436
      %1617 = vmatpush.msra.mxu0 %v1434
      %1618 = vmatpush.msra.mxu0 %v1432
      %1619 = vmatpush.msra.mxu0 %v1430
      %1620 = vmatpush.msra.mxu0 %v1428
      %1621 = vmatpush.msra.mxu0 %v1426
      %1622 = vmatmul.f32.gmra.mxu0 %v1554
      %v1623 = vpop.f32.mrf.mxu0
      %v1624 = vadd.f32 %v1601, %v1623
      %1625 = vmatmul.f32.gmra.mxu0 %v1567
      %v1626 = vpop.f32.mrf.mxu0
      %v1627 = vadd.f32 %v1604, %v1626
      %1628 = vdwg.mxu0
      %1629 = vmatpush.msra.mxu0 %v1488
      %1630 = vmatpush.msra.mxu0 %v1486
      %1631 = vmatpush.msra.mxu0 %v1484
      %1632 = vmatpush.msra.mxu0 %v1482
      %1633 = vmatpush.msra.mxu0 %v1480
      %1634 = vmatpush.msra.mxu0 %v1478
      %1635 = vmatpush.msra.mxu0 %v1476
      %1636 = vmatpush.msra.mxu0 %v1474
      %1637 = vmatpush.msra.mxu0 %v1472
      %1638 = vmatpush.msra.mxu0 %v1470
      %1639 = vmatpush.msra.mxu0 %v1468
      %1640 = vmatpush.msra.mxu0 %v1466
      %1641 = vmatpush.msra.mxu0 %v1464
      %1642 = vmatpush.msra.mxu0 %v1462
      %1643 = vmatpush.msra.mxu0 %v1460
      %1644 = vmatpush.msra.mxu0 %v1458
      %1645 = vmatmul.f32.gmra.mxu0 %v1555
      %v1646 = vpop.f32.mrf.mxu0
      %v1647 = vadd.f32 %v1624, %v1646
      %1648 = vmatmul.f32.gmra.mxu0 %v1568
      %v1649 = vpop.f32.mrf.mxu0
      %v1650 = vadd.f32 %v1627, %v1649
      %1651 = vdwg.mxu0
      %1652 = vmatpush.msra.mxu0 %v1520
      %1653 = vmatpush.msra.mxu0 %v1518
      %1654 = vmatpush.msra.mxu0 %v1516
      %1655 = vmatpush.msra.mxu0 %v1514
      %1656 = vmatpush.msra.mxu0 %v1512
      %1657 = vmatpush.msra.mxu0 %v1510
      %1658 = vmatpush.msra.mxu0 %v1508
      %1659 = vmatpush.msra.mxu0 %v1506
      %1660 = vmatpush.msra.mxu0 %v1504
      %1661 = vmatpush.msra.mxu0 %v1502
      %1662 = vmatpush.msra.mxu0 %v1500
      %1663 = vmatpush.msra.mxu0 %v1498
      %1664 = vmatpush.msra.mxu0 %v1496
      %1665 = vmatpush.msra.mxu0 %v1494
      %1666 = vmatpush.msra.mxu0 %v1492
      %1667 = vmatpush.msra.mxu0 %v1490
      %1668 = vmatmul.f32.gmra.mxu0 %v1556
      %v1669 = vpop.f32.mrf.mxu0
      %v1670 = vadd.f32 %v1647, %v1669
      %1671 = vmatmul.f32.gmra.mxu0 %v1569
      %v1672 = vpop.f32.mrf.mxu0
      %v1673 = vadd.f32 %v1650, %v1672
      %1674 = vdwg.mxu0
      %1675 = vmatpush.msra.mxu0 0.0
      %1676 = vmatpush.msra.mxu0 0.0
      %1677 = vmatpush.msra.mxu0 0.0
      %1678 = vmatpush.msra.mxu0 0.0
      %1679 = vmatpush.msra.mxu0 0.0
      %1680 = vmatpush.msra.mxu0 0.0
      %1681 = vmatpush.msra.mxu0 0.0
      %1682 = vmatpush.msra.mxu0 0.0
      %1683 = vmatpush.msra.mxu0 %v1536
      %1684 = vmatpush.msra.mxu0 %v1534
      %1685 = vmatpush.msra.mxu0 %v1532
      %1686 = vmatpush.msra.mxu0 %v1530
      %1687 = vmatpush.msra.mxu0 %v1528
      %1688 = vmatpush.msra.mxu0 %v1526
      %1689 = vmatpush.msra.mxu0 %v1524
      %1690 = vmatpush.msra.mxu0 %v1522
      %1691 = vmatmul.f32.gmra.mxu0 %v1579
      %v1692 = vpop.f32.mrf.mxu0
      %v1693 = vadd.f32 %v1670, %v1692
      %1694 = vmatmul.f32.gmra.mxu0 %v1581
      %v1695 = vpop.f32.mrf.mxu0
      %v1696 = vadd.f32 %v1673, %v1695
      %1697 = vdwg.mxu0
      %1698 = vmatpush.msra.mxu0 %v1425
      %1699 = vmatpush.msra.mxu0 %v1423
      %1700 = vmatpush.msra.mxu0 %v1421
      %1701 = vmatpush.msra.mxu0 %v1419
      %1702 = vmatpush.msra.mxu0 %v1417
      %1703 = vmatpush.msra.mxu0 %v1415
      %1704 = vmatpush.msra.mxu0 %v1413
      %1705 = vmatpush.msra.mxu0 %v1411
      %1706 = vmatpush.msra.mxu0 %v1409
      %1707 = vmatpush.msra.mxu0 %v1407
      %1708 = vmatpush.msra.mxu0 %v1405
      %1709 = vmatpush.msra.mxu0 %v1403
      %1710 = vmatpush.msra.mxu0 %v1401
      %1711 = vmatpush.msra.mxu0 %v1399
      %1712 = vmatpush.msra.mxu0 %v1397
      %1713 = vmatpush.msra.mxu0 %v1395
      %1714 = vmatmul.f32.gmra.mxu0 %v1553
      %v1715 = vpop.f32.mrf.mxu0
      %v1716 = vadd.f32 0.0, %v1715
      %1717 = vmatmul.f32.gmra.mxu0 %v1566
      %v1718 = vpop.f32.mrf.mxu0
      %v1719 = vadd.f32 0.0, %v1718
      %1720 = vdwg.mxu0
      %1721 = vmatpush.msra.mxu0 %v1457
      %1722 = vmatpush.msra.mxu0 %v1455
      %1723 = vmatpush.msra.mxu0 %v1453
      %1724 = vmatpush.msra.mxu0 %v1451
      %1725 = vmatpush.msra.mxu0 %v1449
      %1726 = vmatpush.msra.mxu0 %v1447
      %1727 = vmatpush.msra.mxu0 %v1445
      %1728 = vmatpush.msra.mxu0 %v1443
      %1729 = vmatpush.msra.mxu0 %v1441
      %1730 = vmatpush.msra.mxu0 %v1439
      %1731 = vmatpush.msra.mxu0 %v1437
      %1732 = vmatpush.msra.mxu0 %v1435
      %1733 = vmatpush.msra.mxu0 %v1433
      %1734 = vmatpush.msra.mxu0 %v1431
      %1735 = vmatpush.msra.mxu0 %v1429
      %1736 = vmatpush.msra.mxu0 %v1427
      %1737 = vmatmul.f32.gmra.mxu0 %v1554
      %v1738 = vpop.f32.mrf.mxu0
      %v1739 = vadd.f32 %v1716, %v1738
      %1740 = vmatmul.f32.gmra.mxu0 %v1567
      %v1741 = vpop.f32.mrf.mxu0
      %v1742 = vadd.f32 %v1719, %v1741
      %1743 = vdwg.mxu0
      %1744 = vmatpush.msra.mxu0 %v1489
      %1745 = vmatpush.msra.mxu0 %v1487
      %1746 = vmatpush.msra.mxu0 %v1485
      %1747 = vmatpush.msra.mxu0 %v1483
      %1748 = vmatpush.msra.mxu0 %v1481
      %1749 = vmatpush.msra.mxu0 %v1479
      %1750 = vmatpush.msra.mxu0 %v1477
      %1751 = vmatpush.msra.mxu0 %v1475
      %1752 = vmatpush.msra.mxu0 %v1473
      %1753 = vmatpush.msra.mxu0 %v1471
      %1754 = vmatpush.msra.mxu0 %v1469
      %1755 = vmatpush.msra.mxu0 %v1467
      %1756 = vmatpush.msra.mxu0 %v1465
      %1757 = vmatpush.msra.mxu0 %v1463
      %1758 = vmatpush.msra.mxu0 %v1461
      %1759 = vmatpush.msra.mxu0 %v1459
      %1760 = vmatmul.f32.gmra.mxu0 %v1555
      %v1761 = vpop.f32.mrf.mxu0
      %v1762 = vadd.f32 %v1739, %v1761
      %1763 = vmatmul.f32.gmra.mxu0 %v1568
      %v1764 = vpop.f32.mrf.mxu0
      %v1765 = vadd.f32 %v1742, %v1764
      %1766 = vdwg.mxu0
      %1767 = vmatpush.msra.mxu0 %v1521
      %1768 = vmatpush.msra.mxu0 %v1519
      %1769 = vmatpush.msra.mxu0 %v1517
      %1770 = vmatpush.msra.mxu0 %v1515
      %1771 = vmatpush.msra.mxu0 %v1513
      %1772 = vmatpush.msra.mxu0 %v1511
      %1773 = vmatpush.msra.mxu0 %v1509
      %1774 = vmatpush.msra.mxu0 %v1507
      %1775 = vmatpush.msra.mxu0 %v1505
      %1776 = vmatpush.msra.mxu0 %v1503
      %1777 = vmatpush.msra.mxu0 %v1501
      %1778 = vmatpush.msra.mxu0 %v1499
      %1779 = vmatpush.msra.mxu0 %v1497
      %1780 = vmatpush.msra.mxu0 %v1495
      %1781 = vmatpush.msra.mxu0 %v1493
      %1782 = vmatpush.msra.mxu0 %v1491
      %1783 = vmatmul.f32.gmra.mxu0 %v1556
      %v1784 = vpop.f32.mrf.mxu0
      %v1785 = vadd.f32 %v1762, %v1784
      %1786 = vmatmul.f32.gmra.mxu0 %v1569
      %v1787 = vpop.f32.mrf.mxu0
      %v1788 = vadd.f32 %v1765, %v1787
      %1789 = vdwg.mxu0
      %1790 = vmatpush.msra.mxu0 0.0
      %1791 = vmatpush.msra.mxu0 0.0
      %1792 = vmatpush.msra.mxu0 0.0
      %1793 = vmatpush.msra.mxu0 0.0
      %1794 = vmatpush.msra.mxu0 0.0
      %1795 = vmatpush.msra.mxu0 0.0
      %1796 = vmatpush.msra.mxu0 0.0
      %1797 = vmatpush.msra.mxu0 0.0
      %1798 = vmatpush.msra.mxu0 %v1537
      %1799 = vmatpush.msra.mxu0 %v1535
      %1800 = vmatpush.msra.mxu0 %v1533
      %1801 = vmatpush.msra.mxu0 %v1531
      %1802 = vmatpush.msra.mxu0 %v1529
      %1803 = vmatpush.msra.mxu0 %v1527
      %1804 = vmatpush.msra.mxu0 %v1525
      %1805 = vmatpush.msra.mxu0 %v1523
      %1806 = vmatmul.f32.gmra.mxu0 %v1579
      %v1807 = vpop.f32.mrf.mxu0
      %v1808 = vadd.f32 %v1785, %v1807
      %1809 = vmatmul.f32.gmra.mxu0 %v1581
      %v1810 = vpop.f32.mrf.mxu0
      %v1811 = vadd.f32 %v1788, %v1810
      %1812 = vdwg.mxu0
      %v1813 = vld [vmem:[%s8] sm:$0x3]
      %v1815 = vperm.slane %v1813, 0
      %v1816 = vperm.slane %v1813, 1
      %v1819 = vmul.f32 %v1693, %v1815
      %v1820 = vmul.f32 %v1808, %v1816
      %v1821 = vmul.f32 %v1696, %v1815
      %v1822 = vmul.f32 %v1811, %v1816
      %v1823 = vld [vmem:[%s9] sm:$0x3]
      %v1825 = vperm.slane %v1823, 0
      %v1826 = vperm.slane %v1823, 1
      %v1829 = vadd.f32 %v1819, %v1825
      %v1830 = vadd.f32 %v1820, %v1826
      %v1831 = vadd.f32 %v1821, %v1825
      %v1832 = vadd.f32 %v1822, %v1826
      %v1833 = vmax.f32 %v1829, 0.0
      %v1834 = vmax.f32 %v1830, 0.0
      %v1835 = vmax.f32 %v1831, 0.0
      %v1836 = vmax.f32 %v1832, 0.0
      %v1839 = vrot.slane %v1833, 1
      %v1840 = vrot.slane %v1833, 2
      %v1841 = vrot.slane %v1833, 3
      %v1842 = vrot.slane %v1833, 4
      %v1843 = vrot.slane %v1833, 5
      %v1844 = vrot.slane %v1833, 6
      %v1845 = vrot.slane %v1833, 7
      %v1846 = vrot.slane %v1835, 1
      %v1847 = vrot.slane %v1835, 2
      %v1848 = vrot.slane %v1835, 3
      %v1849 = vrot.slane %v1835, 4
      %v1850 = vrot.slane %v1835, 5
      %v1851 = vrot.slane %v1835, 6
      %v1852 = vrot.slane %v1835, 7
      %v1869 = vrot.slane %v1834, 1
      %v1870 = vrot.slane %v1834, 2
      %v1871 = vrot.slane %v1834, 3
      %v1872 = vrot.slane %v1834, 4
      %v1873 = vrot.slane %v1834, 5
      %v1874 = vrot.slane %v1834, 6
      %v1875 = vrot.slane %v1834, 7
      %v1876 = vrot.slane %v1836, 1
      %v1877 = vrot.slane %v1836, 2
      %v1878 = vrot.slane %v1836, 3
      %v1879 = vrot.slane %v1836, 4
      %v1880 = vrot.slane %v1836, 5
      %v1881 = vrot.slane %v1836, 6
      %v1882 = vrot.slane %v1836, 7
      %v1883 = vperm.slane %v1834, 0
      %v1884 = vperm.slane %v1869, 0
      %v1885 = vperm.slane %v1870, 0
      %v1886 = vperm.slane %v1871, 0
      %v1887 = vperm.slane %v1872, 0
      %v1888 = vperm.slane %v1873, 0
      %v1889 = vperm.slane %v1874, 0
      %v1890 = vperm.slane %v1875, 0
      %v1891 = vperm.slane %v1836, 0
      %v1892 = vperm.slane %v1876, 0
      %v1893 = vperm.slane %v1877, 0
      %v1894 = vperm.slane %v1878, 0
      %v1895 = vperm.slane %v1879, 0
      %v1896 = vperm.slane %v1880, 0
      %v1897 = vperm.slane %v1881, 0
      %v1898 = vperm.slane %v1882, 0
      %v1915 = vsel %vm1098, %v1833, %v1883
      %v1916 = vsel %vm1098, %v1839, %v1884
      %v1917 = vsel %vm1098, %v1840, %v1885
      %v1918 = vsel %vm1098, %v1841, %v1886
      %v1919 = vsel %vm1098, %v1842, %v1887
      %v1920 = vsel %vm1098, %v1843, %v1888
      %v1921 = vsel %vm1098, %v1844, %v1889
      %v1922 = vsel %vm1098, %v1845, %v1890
      %v1923 = vsel %vm1098, %v1835, %v1891
      %v1924 = vsel %vm1098, %v1846, %v1892
      %v1925 = vsel %vm1098, %v1847, %v1893
      %v1926 = vsel %vm1098, %v1848, %v1894
      %v1927 = vsel %vm1098, %v1849, %v1895
      %v1928 = vsel %vm1098, %v1850, %v1896
      %v1929 = vsel %vm1098, %v1851, %v1897
      %v1930 = vsel %vm1098, %v1852, %v1898
      %1947 = vst [vmem:[#allocation1] ss:$4 sm:$0xff] %v1915
      %s1948 = scalar_lea.vmem [#allocation1], 1
      %1949 = vst [vmem:[%s1948] ss:$4 sm:$0xff] %v1916
      %v1950 = vld.sshfl [vmem:[#allocation1] sm:$0xff pattern:$0x73625140]
      %s1951 = scalar_lea.vmem [#allocation1], 32
      %1952 = vst [vmem:[%s1951] ss:$4 sm:$0xff] %v1917
      %s1953 = scalar_lea.vmem [#allocation1], 33
      %1954 = vst [vmem:[%s1953] ss:$4 sm:$0xff] %v1918
      %v1955 = vld.sshfl [vmem:[#allocation1 + $0x20] sm:$0xff pattern:$0x73625140]
      %1956 = vst [vmem:[#allocation1] ss:$4 sm:$0xff] %v1919
      %1957 = vst [vmem:[%s1948] ss:$4 sm:$0xff] %v1920
      %v1958 = vld.sshfl [vmem:[#allocation1] sm:$0xff pattern:$0x73625140]
      %1959 = vst [vmem:[%s1951] ss:$4 sm:$0xff] %v1921
      %1960 = vst [vmem:[%s1953] ss:$4 sm:$0xff] %v1922
      %v1961 = vld.sshfl [vmem:[#allocation1 + $0x20] sm:$0xff pattern:$0x73625140]
      %1962 = vst [vmem:[#allocation1] ss:$4 sm:$0xff] %v1923
      %1963 = vst [vmem:[%s1948] ss:$4 sm:$0xff] %v1924
      %v1964 = vld.sshfl [vmem:[#allocation1] sm:$0xff pattern:$0x73625140]
      %1965 = vst [vmem:[%s1951] ss:$4 sm:$0xff] %v1925
      %1966 = vst [vmem:[%s1953] ss:$4 sm:$0xff] %v1926
      %v1967 = vld.sshfl [vmem:[#allocation1 + $0x20] sm:$0xff pattern:$0x73625140]
      %1968 = vst [vmem:[#allocation1] ss:$4 sm:$0xff] %v1927
      %1969 = vst [vmem:[%s1948] ss:$4 sm:$0xff] %v1928
      %v1970 = vld.sshfl [vmem:[#allocation1] sm:$0xff pattern:$0x73625140]
      %1971 = vst [vmem:[%s1951] ss:$4 sm:$0xff] %v1929
      %1972 = vst [vmem:[%s1953] ss:$4 sm:$0xff] %v1930
      %v1973 = vld.sshfl [vmem:[#allocation1 + $0x20] sm:$0xff pattern:$0x73625140]
      %v1974 = vrot.slane %v1950, 7
      %v1975 = vrot.slane %v1955, 7
      %v1976 = vrot.slane %v1958, 7
      %v1977 = vrot.slane %v1961, 7
      %v1978 = vrot.slane %v1964, 7
      %v1979 = vrot.slane %v1967, 7
      %v1980 = vrot.slane %v1970, 7
      %v1981 = vrot.slane %v1973, 7
      %v1990 = vsel %vm1098, 0.0, %v1974
      %v1991 = vsel %vm1098, 0.0, %v1975
      %v1992 = vsel %vm1098, 0.0, %v1976
      %v1993 = vsel %vm1098, 0.0, %v1977
      %v1994 = vsel %vm1098, 0.0, %v1978
      %v1995 = vsel %vm1098, 0.0, %v1979
      %v1996 = vsel %vm1098, 0.0, %v1980
      %v1997 = vsel %vm1098, 0.0, %v1981
      %v1998 = vsel %vm1106, %v1990, 0.0
      %v1999 = vsel %vm1106, %v1991, 0.0
      %v2000 = vsel %vm1106, %v1992, 0.0
      %v2001 = vsel %vm1106, %v1993, 0.0
      %v2002 = vsel %vm1106, %v1994, 0.0
      %v2003 = vsel %vm1106, %v1995, 0.0
      %v2004 = vsel %vm1106, %v1996, 0.0
      %v2005 = vsel %vm1106, %v1997, 0.0
      %v2013 = vrot.slane %v1998, 1
      %v2014 = vrot.slane %v1999, 1
      %v2015 = vrot.slane %v2000, 1
      %v2016 = vrot.slane %v2001, 1
      %v2017 = vrot.slane %v2002, 1
      %v2018 = vrot.slane %v2003, 1
      %v2019 = vrot.slane %v2004, 1
      %v2020 = vrot.slane %v1998, 2
      %v2021 = vrot.slane %v1999, 2
      %v2022 = vrot.slane %v2000, 2
      %v2023 = vrot.slane %v2001, 2
      %v2024 = vrot.slane %v2002, 2
      %v2025 = vrot.slane %v2003, 2
      %v2026 = vrot.slane %v2004, 2
      %v2028 = vrot.slane %v2005, 1
      %v2029 = vrot.slane %v2005, 2
      %v2030 = vrot.slane %v1184, 4
      %v2031 = vrot.slane %v1998, 4
      %v2032 = vrot.slane %v2020, 4
      %v2033 = vrot.slane %v2014, 4
      %v2034 = vrot.slane %v2013, 4
      %v2035 = vrot.slane %v1999, 4
      %v2036 = vrot.slane %v2021, 4
      %v2037 = vrot.slane %v2015, 4
      %v2038 = vrot.slane %v2000, 4
      %v2039 = vrot.slane %v2022, 4
      %v2040 = vrot.slane %v2016, 4
      %v2041 = vrot.slane %v2001, 4
      %v2042 = vrot.slane %v2023, 4
      %v2043 = vrot.slane %v2017, 4
      %v2044 = vrot.slane %v2002, 4
      %v2045 = vrot.slane %v2024, 4
      %v2046 = vrot.slane %v2018, 4
      %v2047 = vrot.slane %v2003, 4
      %v2048 = vrot.slane %v2025, 4
      %v2049 = vrot.slane %v2019, 4
      %v2050 = vrot.slane %v2004, 4
      %v2051 = vrot.slane %v2026, 4
      %v2052 = vrot.slane %v2028, 4
      %v2053 = vrot.slane %v2005, 4
      %v2054 = vrot.slane %v2029, 4
      %v2055 = vsel %vm1104, 0.0, %v2030
      %v2056 = vsel %vm1104, %v1216, %v2031
      %v2057 = vsel %vm1104, %v2013, %v2032
      %v2058 = vsel %vm1104, %v1999, %v2033
      %v2059 = vsel %vm1104, %v1998, %v2034
      %v2060 = vsel %vm1104, %v2020, %v2035
      %v2061 = vsel %vm1104, %v2014, %v2036
      %v2062 = vsel %vm1104, %v2000, %v2037
      %v2063 = vsel %vm1104, %v2021, %v2038
      %v2064 = vsel %vm1104, %v2015, %v2039
      %v2065 = vsel %vm1104, %v2001, %v2040
      %v2066 = vsel %vm1104, %v2022, %v2041
      %v2067 = vsel %vm1104, %v2016, %v2042
      %v2068 = vsel %vm1104, %v2002, %v2043
      %v2069 = vsel %vm1104, %v2023, %v2044
      %v2070 = vsel %vm1104, %v2017, %v2045
      %v2071 = vsel %vm1104, %v2003, %v2046
      %v2072 = vsel %vm1104, %v2024, %v2047
      %v2073 = vsel %vm1104, %v2018, %v2048
      %v2074 = vsel %vm1104, %v2004, %v2049
      %v2075 = vsel %vm1104, %v2025, %v2050
      %v2076 = vsel %vm1104, %v2019, %v2051
      %v2077 = vsel %vm1104, %v2005, %v2052
      %v2078 = vsel %vm1104, %v2026, %v2053
      %v2079 = vsel %vm1104, %v2028, %v2054
      %v2080 = vld [vmem:[%s10] sm:$0xff]
      %v2081 = vld [vmem:[%s10 + $0x8] sm:$0xff]
      %v2082 = vld [vmem:[%s10 + $0x10] sm:$0xff]
      %v2083 = vld [vmem:[%s10 + $0x18] sm:$0xff]
      %v2084 = vld [vmem:[%s10 + $0x20] sm:$0xff]
      %v2085 = vld [vmem:[%s10 + $0x28] sm:$0xff]
      %v2086 = vld [vmem:[%s10 + $0x30] sm:$0xff]
      %v2087 = vld [vmem:[%s10 + $0x38] sm:$0xff]
      %v2088 = vld [vmem:[%s10 + $0x40] sm:$0xff]
      %v2089 = vld [vmem:[%s10 + $0x48] sm:$0xff]
      %v2090 = vld [vmem:[%s10 + $0x50] sm:$0xff]
      %v2091 = vld [vmem:[%s10 + $0x58] sm:$0xff]
      %v2092 = vld [vmem:[%s10 + $0x60] sm:$0xff]
      %v2093 = vld [vmem:[%s10 + $0x68] sm:$0xff]
      %v2094 = vld [vmem:[%s10 + $0x70] sm:$0xff]
      %v2095 = vld [vmem:[%s10 + $0x78] sm:$0xff]
      %v2096 = vld [vmem:[%s10 + $0x80] sm:$0xff]
      %v2097 = vld [vmem:[%s10 + $0x88] sm:$0xff]
      %v2098 = vld [vmem:[%s10 + $0x90] sm:$0xff]
      %v2099 = vld [vmem:[%s10 + $0x98] sm:$0xff]
      %v2100 = vld [vmem:[%s10 + $0xa0] sm:$0xff]
      %v2101 = vld [vmem:[%s10 + $0xa8] sm:$0xff]
      %v2102 = vld [vmem:[%s10 + $0xb0] sm:$0xff]
      %v2103 = vld [vmem:[%s10 + $0xb8] sm:$0xff]
      %v2104 = vld [vmem:[%s10 + $0xc0] sm:$0xff]
      %v2105 = vld [vmem:[%s10 + $0xc8] sm:$0xff]
      %v2106 = vld [vmem:[%s10 + $0xd0] sm:$0xff]
      %v2107 = vld [vmem:[%s10 + $0xd8] sm:$0xff]
      %v2108 = vld [vmem:[%s10 + $0xe0] sm:$0xff]
      %v2109 = vld [vmem:[%s10 + $0xe8] sm:$0xff]
      %v2110 = vld [vmem:[%s10 + $0xf0] sm:$0xff]
      %v2111 = vld [vmem:[%s10 + $0xf8] sm:$0xff]
      %v2112 = vld [vmem:[%s10 + $0x100] sm:$0xff]
      %v2113 = vld [vmem:[%s10 + $0x108] sm:$0xff]
      %v2114 = vld [vmem:[%s10 + $0x110] sm:$0xff]
      %v2115 = vld [vmem:[%s10 + $0x118] sm:$0xff]
      %v2116 = vld [vmem:[%s10 + $0x120] sm:$0xff]
      %v2117 = vld [vmem:[%s10 + $0x128] sm:$0xff]
      %v2118 = vld [vmem:[%s10 + $0x130] sm:$0xff]
      %v2119 = vld [vmem:[%s10 + $0x138] sm:$0xff]
      %v2120 = vld [vmem:[%s10 + $0x140] sm:$0xff]
      %v2121 = vld [vmem:[%s10 + $0x148] sm:$0xff]
      %v2122 = vld [vmem:[%s10 + $0x150] sm:$0xff]
      %v2123 = vld [vmem:[%s10 + $0x158] sm:$0xff]
      %v2124 = vld [vmem:[%s10 + $0x160] sm:$0xff]
      %v2125 = vld [vmem:[%s10 + $0x168] sm:$0xff]
      %v2126 = vld [vmem:[%s10 + $0x170] sm:$0xff]
      %v2127 = vld [vmem:[%s10 + $0x178] sm:$0xff]
      %v2128 = vld [vmem:[%s10 + $0x180] sm:$0xff]
      %v2129 = vld [vmem:[%s10 + $0x188] sm:$0xff]
      %v2130 = vld [vmem:[%s10 + $0x190] sm:$0xff]
      %v2131 = vld [vmem:[%s10 + $0x198] sm:$0xff]
      %v2132 = vld [vmem:[%s10 + $0x1a0] sm:$0xff]
      %v2133 = vld [vmem:[%s10 + $0x1a8] sm:$0xff]
      %v2134 = vld [vmem:[%s10 + $0x1b0] sm:$0xff]
      %v2135 = vld [vmem:[%s10 + $0x1b8] sm:$0xff]
      %v2136 = vld [vmem:[%s10 + $0x1c0] sm:$0xff]
      %v2137 = vld [vmem:[%s10 + $0x1c8] sm:$0xff]
      %v2138 = vld [vmem:[%s10 + $0x1d0] sm:$0xff]
      %v2139 = vld [vmem:[%s10 + $0x1d8] sm:$0xff]
      %v2140 = vld [vmem:[%s10 + $0x1e0] sm:$0xff]
      %v2141 = vld [vmem:[%s10 + $0x1e8] sm:$0xff]
      %v2142 = vld [vmem:[%s10 + $0x1f0] sm:$0xff]
      %v2143 = vld [vmem:[%s10 + $0x1f8] sm:$0xff]
      %v2144 = vld [vmem:[%s10 + $0x200] sm:$0xff]
      %v2145 = vld [vmem:[%s10 + $0x208] sm:$0xff]
      %v2146 = vld [vmem:[%s10 + $0x210] sm:$0xff]
      %v2147 = vld [vmem:[%s10 + $0x218] sm:$0xff]
      %v2148 = vld [vmem:[%s10 + $0x220] sm:$0xff]
      %v2149 = vld [vmem:[%s10 + $0x228] sm:$0xff]
      %v2150 = vld [vmem:[%s10 + $0x230] sm:$0xff]
      %v2151 = vld [vmem:[%s10 + $0x238] sm:$0xff]
      %v2152 = vld [vmem:[%s10 + $0x240] sm:$0xff]
      %v2153 = vld [vmem:[%s10 + $0x248] sm:$0xff]
      %v2154 = vld [vmem:[%s10 + $0x250] sm:$0xff]
      %v2155 = vld [vmem:[%s10 + $0x258] sm:$0xff]
      %v2156 = vld [vmem:[%s10 + $0x260] sm:$0xff]
      %v2157 = vld [vmem:[%s10 + $0x268] sm:$0xff]
      %v2158 = vld [vmem:[%s10 + $0x270] sm:$0xff]
      %v2159 = vld [vmem:[%s10 + $0x278] sm:$0xff]
      %v2160 = vld [vmem:[%s10 + $0x280] sm:$0xff]
      %v2161 = vld [vmem:[%s10 + $0x288] sm:$0xff]
      %v2162 = vld [vmem:[%s10 + $0x290] sm:$0xff]
      %v2163 = vld [vmem:[%s10 + $0x298] sm:$0xff]
      %v2164 = vld [vmem:[%s10 + $0x2a0] sm:$0xff]
      %v2165 = vld [vmem:[%s10 + $0x2a8] sm:$0xff]
      %v2166 = vld [vmem:[%s10 + $0x2b0] sm:$0xff]
      %v2167 = vld [vmem:[%s10 + $0x2b8] sm:$0xff]
      %v2168 = vld [vmem:[%s10 + $0x2c0] sm:$0xff]
      %v2169 = vld [vmem:[%s10 + $0x2c8] sm:$0xff]
      %v2170 = vld [vmem:[%s10 + $0x2d0] sm:$0xff]
      %v2171 = vld [vmem:[%s10 + $0x2d8] sm:$0xff]
      %v2172 = vld [vmem:[%s10 + $0x2e0] sm:$0xff]
      %v2173 = vld [vmem:[%s10 + $0x2e8] sm:$0xff]
      %v2174 = vld [vmem:[%s10 + $0x2f0] sm:$0xff]
      %v2175 = vld [vmem:[%s10 + $0x2f8] sm:$0xff]
      %v2176 = vld [vmem:[%s10 + $0x300] sm:$0xff]
      %v2177 = vld [vmem:[%s10 + $0x308] sm:$0xff]
      %v2178 = vld [vmem:[%s10 + $0x310] sm:$0xff]
      %v2179 = vld [vmem:[%s10 + $0x318] sm:$0xff]
      %v2180 = vld [vmem:[%s10 + $0x320] sm:$0xff]
      %v2181 = vld [vmem:[%s10 + $0x328] sm:$0xff]
      %v2182 = vld [vmem:[%s10 + $0x330] sm:$0xff]
      %v2183 = vld [vmem:[%s10 + $0x338] sm:$0xff]
      %v2184 = vld [vmem:[%s10 + $0x340] sm:$0xff]
      %v2185 = vld [vmem:[%s10 + $0x348] sm:$0xff]
      %v2186 = vld [vmem:[%s10 + $0x350] sm:$0xff]
      %v2187 = vld [vmem:[%s10 + $0x358] sm:$0xff]
      %v2188 = vld [vmem:[%s10 + $0x360] sm:$0xff]
      %v2189 = vld [vmem:[%s10 + $0x368] sm:$0xff]
      %v2190 = vld [vmem:[%s10 + $0x370] sm:$0xff]
      %v2191 = vld [vmem:[%s10 + $0x378] sm:$0xff]
      %v2192 = vld [vmem:[%s10 + $0x380] sm:$0xff]
      %v2193 = vld [vmem:[%s10 + $0x388] sm:$0xff]
      %v2194 = vld [vmem:[%s10 + $0x390] sm:$0xff]
      %v2195 = vld [vmem:[%s10 + $0x398] sm:$0xff]
      %v2196 = vld [vmem:[%s10 + $0x3a0] sm:$0xff]
      %v2197 = vld [vmem:[%s10 + $0x3a8] sm:$0xff]
      %v2198 = vld [vmem:[%s10 + $0x3b0] sm:$0xff]
      %v2199 = vld [vmem:[%s10 + $0x3b8] sm:$0xff]
      %v2200 = vld [vmem:[%s10 + $0x3c0] sm:$0xff]
      %v2201 = vld [vmem:[%s10 + $0x3c8] sm:$0xff]
      %v2202 = vld [vmem:[%s10 + $0x3d0] sm:$0xff]
      %v2203 = vld [vmem:[%s10 + $0x3d8] sm:$0xff]
      %v2204 = vld [vmem:[%s10 + $0x3e0] sm:$0xff]
      %v2205 = vld [vmem:[%s10 + $0x3e8] sm:$0xff]
      %v2206 = vld [vmem:[%s10 + $0x3f0] sm:$0xff]
      %v2207 = vld [vmem:[%s10 + $0x3f8] sm:$0xff]
      %v2208 = vld [vmem:[%s10 + $0x400] sm:$0xff]
      %v2209 = vld [vmem:[%s10 + $0x408] sm:$0xff]
      %v2210 = vld [vmem:[%s10 + $0x410] sm:$0xff]
      %v2211 = vld [vmem:[%s10 + $0x418] sm:$0xff]
      %v2212 = vld [vmem:[%s10 + $0x420] sm:$0xff]
      %v2213 = vld [vmem:[%s10 + $0x428] sm:$0xff]
      %v2214 = vld [vmem:[%s10 + $0x430] sm:$0xff]
      %v2215 = vld [vmem:[%s10 + $0x438] sm:$0xff]
      %v2216 = vld [vmem:[%s10 + $0x440] sm:$0xff]
      %v2217 = vld [vmem:[%s10 + $0x448] sm:$0xff]
      %v2218 = vld [vmem:[%s10 + $0x450] sm:$0xff]
      %v2219 = vld [vmem:[%s10 + $0x458] sm:$0xff]
      %v2220 = vld [vmem:[%s10 + $0x460] sm:$0xff]
      %v2221 = vld [vmem:[%s10 + $0x468] sm:$0xff]
      %v2222 = vld [vmem:[%s10 + $0x470] sm:$0xff]
      %v2223 = vld [vmem:[%s10 + $0x478] sm:$0xff]
      %2224 = vst [vmem:[#allocation1] ss:$2 sm:$0xff] %v2055
      %s2225 = scalar_lea.vmem [#allocation1], 1
      %2226 = vst [vmem:[%s2225] ss:$2 sm:$0xff] %v2059
      %s2227 = scalar_lea.vmem [#allocation1], 16
      %2228 = vst [vmem:[%s2227] ss:$2 sm:$0xff] %v2056
      %s2229 = scalar_lea.vmem [#allocation1], 17
      %2230 = vst [vmem:[%s2229] ss:$2 sm:$0xff] %v2060
      %s2231 = scalar_lea.vmem [#allocation1], 32
      %2232 = vst [vmem:[%s2231] ss:$2 sm:$0xff] %v2057
      %s2233 = scalar_lea.vmem [#allocation1], 33
      %2234 = vst [vmem:[%s2233] ss:$2 sm:$0xff] %v2061
      %s2235 = scalar_lea.vmem [#allocation1], 48
      %2236 = vst [vmem:[%s2235] ss:$2 sm:$0xff] %v2058
      %s2237 = scalar_lea.vmem [#allocation1], 49
      %2238 = vst [vmem:[%s2237] ss:$2 sm:$0xff] %v2062
      %v2239 = vld.sshfl [vmem:[#allocation1] sm:$0xff pattern:$0x75316420]
      %v2240 = vld.sshfl [vmem:[#allocation1 + $0x8] sm:$0xff pattern:$0x75316420]
      %v2241 = vld.sshfl [vmem:[#allocation1 + $0x10] sm:$0xff pattern:$0x75316420]
      %v2242 = vld.sshfl [vmem:[#allocation1 + $0x18] sm:$0xff pattern:$0x75316420]
      %v2243 = vld.sshfl [vmem:[#allocation1 + $0x20] sm:$0xff pattern:$0x75316420]
      %v2244 = vld.sshfl [vmem:[#allocation1 + $0x28] sm:$0xff pattern:$0x75316420]
      %v2245 = vld.sshfl [vmem:[#allocation1 + $0x30] sm:$0xff pattern:$0x75316420]
      %v2246 = vld.sshfl [vmem:[#allocation1 + $0x38] sm:$0xff pattern:$0x75316420]
      %2247 = vst [vmem:[#allocation1] ss:$2 sm:$0xff] %v2021
      %2248 = vst [vmem:[%s2225] ss:$2 sm:$0xff] %v2022
      %2249 = vst [vmem:[%s2227] ss:$2 sm:$0xff] %v2058
      %2250 = vst [vmem:[%s2229] ss:$2 sm:$0xff] %v2062
      %2251 = vst [vmem:[%s2231] ss:$2 sm:$0xff] %v2063
      %2252 = vst [vmem:[%s2233] ss:$2 sm:$0xff] %v2066
      %2253 = vst [vmem:[%s2235] ss:$2 sm:$0xff] %v2064
      %2254 = vst [vmem:[%s2237] ss:$2 sm:$0xff] %v2067
      %v2255 = vld.sshfl [vmem:[#allocation1] sm:$0xff pattern:$0x75316420]
      %v2256 = vld.sshfl [vmem:[#allocation1 + $0x10] sm:$0xff pattern:$0x75316420]
      %v2257 = vld.sshfl [vmem:[#allocation1 + $0x18] sm:$0xff pattern:$0x75316420]
      %v2258 = vld.sshfl [vmem:[#allocation1 + $0x20] sm:$0xff pattern:$0x75316420]
      %v2259 = vld.sshfl [vmem:[#allocation1 + $0x28] sm:$0xff pattern:$0x75316420]
      %v2260 = vld.sshfl [vmem:[#allocation1 + $0x30] sm:$0xff pattern:$0x75316420]
      %v2261 = vld.sshfl [vmem:[#allocation1 + $0x38] sm:$0xff pattern:$0x75316420]
      %2262 = vst [vmem:[#allocation1] ss:$2 sm:$0xff] %v2065
      %2263 = vst [vmem:[%s2225] ss:$2 sm:$0xff] %v2068
      %2264 = vst [vmem:[%s2227] ss:$2 sm:$0xff] %v2023
      %2265 = vst [vmem:[%s2229] ss:$2 sm:$0xff] %v2024
      %2266 = vst [vmem:[%s2231] ss:$2 sm:$0xff] %v2065
      %2267 = vst [vmem:[%s2233] ss:$2 sm:$0xff] %v2068
      %2268 = vst [vmem:[%s2235] ss:$2 sm:$0xff] %v2069
      %2269 = vst [vmem:[%s2237] ss:$2 sm:$0xff] %v2072
      %v2270 = vld.sshfl [vmem:[#allocation1] sm:$0xff pattern:$0x75316420]
      %v2271 = vld.sshfl [vmem:[#allocation1 + $0x8] sm:$0xff pattern:$0x75316420]
      %v2272 = vld.sshfl [vmem:[#allocation1 + $0x10] sm:$0xff pattern:$0x75316420]
      %v2273 = vld.sshfl [vmem:[#allocation1 + $0x20] sm:$0xff pattern:$0x75316420]
      %v2274 = vld.sshfl [vmem:[#allocation1 + $0x28] sm:$0xff pattern:$0x75316420]
      %v2275 = vld.sshfl [vmem:[#allocation1 + $0x30] sm:$0xff pattern:$0x75316420]
      %v2276 = vld.sshfl [vmem:[#allocation1 + $0x38] sm:$0xff pattern:$0x75316420]
      %2277 = vst [vmem:[#allocation1] ss:$2 sm:$0xff] %v2070
      %2278 = vst [vmem:[%s2225] ss:$2 sm:$0xff] %v2073
      %2279 = vst [vmem:[%s2227] ss:$2 sm:$0xff] %v2071
      %2280 = vst [vmem:[%s2229] ss:$2 sm:$0xff] %v2074
      %2281 = vst [vmem:[%s2231] ss:$2 sm:$0xff] %v2025
      %2282 = vst [vmem:[%s2233] ss:$2 sm:$0xff] %v2026
      %2283 = vst [vmem:[%s2235] ss:$2 sm:$0xff] %v2071
      %2284 = vst [vmem:[%s2237] ss:$2 sm:$0xff] %v2074
      %v2285 = vld.sshfl [vmem:[#allocation1] sm:$0xff pattern:$0x75316420]
      %v2286 = vld.sshfl [vmem:[#allocation1 + $0x8] sm:$0xff pattern:$0x75316420]
      %v2287 = vld.sshfl [vmem:[#allocation1 + $0x10] sm:$0xff pattern:$0x75316420]
      %v2288 = vld.sshfl [vmem:[#allocation1 + $0x18] sm:$0xff pattern:$0x75316420]
      %v2289 = vld.sshfl [vmem:[#allocation1 + $0x20] sm:$0xff pattern:$0x75316420]
      %v2290 = vld.sshfl [vmem:[#allocation1 + $0x30] sm:$0xff pattern:$0x75316420]
      %v2291 = vld.sshfl [vmem:[#allocation1 + $0x38] sm:$0xff pattern:$0x75316420]
      %2292 = vst [vmem:[#allocation1] ss:$2 sm:$0xff] %v2075
      %2293 = vst [vmem:[%s2225] ss:$2 sm:$0xff] %v2078
      %2294 = vst [vmem:[%s2227] ss:$2 sm:$0xff] %v2076
      %2295 = vst [vmem:[%s2229] ss:$2 sm:$0xff] %v2079
      %2296 = vst [vmem:[%s2231] ss:$2 sm:$0xff] %v2077
      %2297 = vst [vmem:[%s2233] ss:$2 sm:$0xff] %v2055
      %2298 = vst [vmem:[%s2235] ss:$2 sm:$0xff] %v2029
      %2299 = vst [vmem:[%s2237] ss:$2 sm:$0xff] %v1216
      %v2300 = vld.sshfl [vmem:[#allocation1] sm:$0xff pattern:$0x75316420]
      %v2301 = vld.sshfl [vmem:[#allocation1 + $0x8] sm:$0xff pattern:$0x75316420]
      %v2302 = vld.sshfl [vmem:[#allocation1 + $0x10] sm:$0xff pattern:$0x75316420]
      %v2303 = vld.sshfl [vmem:[#allocation1 + $0x18] sm:$0xff pattern:$0x75316420]
      %v2304 = vld.sshfl [vmem:[#allocation1 + $0x20] sm:$0xff pattern:$0x75316420]
      %v2305 = vld.sshfl [vmem:[#allocation1 + $0x28] sm:$0xff pattern:$0x75316420]
      %v2306 = vld.sshfl [vmem:[#allocation1 + $0x30] sm:$0xff pattern:$0x75316420]
      %2343 = vmatpush.msra.mxu0 %v2095
      %2344 = vmatpush.msra.mxu0 %v2094
      %2345 = vmatpush.msra.mxu0 %v2093
      %2346 = vmatpush.msra.mxu0 %v2092
      %2347 = vmatpush.msra.mxu0 %v2091
      %2348 = vmatpush.msra.mxu0 %v2090
      %2349 = vmatpush.msra.mxu0 %v2089
      %2350 = vmatpush.msra.mxu0 %v2088
      %2351 = vmatpush.msra.mxu0 %v2087
      %2352 = vmatpush.msra.mxu0 %v2086
      %2353 = vmatpush.msra.mxu0 %v2085
      %2354 = vmatpush.msra.mxu0 %v2084
      %2355 = vmatpush.msra.mxu0 %v2083
      %2356 = vmatpush.msra.mxu0 %v2082
      %2357 = vmatpush.msra.mxu0 %v2081
      %2358 = vmatpush.msra.mxu0 %v2080
      %2359 = vmatmul.f32.gmra.mxu0 %v2239
      %v2360 = vpop.f32.mrf.mxu0
      %v2361 = vadd.f32 0.0, %v2360
      %2362 = vmatmul.f32.gmra.mxu0 %v2256
      %v2363 = vpop.f32.mrf.mxu0
      %v2364 = vadd.f32 0.0, %v2363
      %2365 = vmatmul.f32.gmra.mxu0 %v2273
      %v2366 = vpop.f32.mrf.mxu0
      %v2367 = vadd.f32 0.0, %v2366
      %2368 = vmatmul.f32.gmra.mxu0 %v2290
      %v2369 = vpop.f32.mrf.mxu0
      %v2370 = vadd.f32 0.0, %v2369
      %2371 = vdwg.mxu0
      %2372 = vmatpush.msra.mxu0 %v2111
      %2373 = vmatpush.msra.mxu0 %v2110
      %2374 = vmatpush.msra.mxu0 %v2109
      %2375 = vmatpush.msra.mxu0 %v2108
      %2376 = vmatpush.msra.mxu0 %v2107
      %2377 = vmatpush.msra.mxu0 %v2106
      %2378 = vmatpush.msra.mxu0 %v2105
      %2379 = vmatpush.msra.mxu0 %v2104
      %2380 = vmatpush.msra.mxu0 %v2103
      %2381 = vmatpush.msra.mxu0 %v2102
      %2382 = vmatpush.msra.mxu0 %v2101
      %2383 = vmatpush.msra.mxu0 %v2100
      %2384 = vmatpush.msra.mxu0 %v2099
      %2385 = vmatpush.msra.mxu0 %v2098
      %2386 = vmatpush.msra.mxu0 %v2097
      %2387 = vmatpush.msra.mxu0 %v2096
      %2388 = vmatmul.f32.gmra.mxu0 %v2240
      %v2389 = vpop.f32.mrf.mxu0
      %v2390 = vadd.f32 %v2361, %v2389
      %2391 = vmatmul.f32.gmra.mxu0 %v2257
      %v2392 = vpop.f32.mrf.mxu0
      %v2393 = vadd.f32 %v2364, %v2392
      %2394 = vmatmul.f32.gmra.mxu0 %v2274
      %v2395 = vpop.f32.mrf.mxu0
      %v2396 = vadd.f32 %v2367, %v2395
      %2397 = vmatmul.f32.gmra.mxu0 %v2291
      %v2398 = vpop.f32.mrf.mxu0
      %v2399 = vadd.f32 %v2370, %v2398
      %2400 = vdwg.mxu0
      %2401 = vmatpush.msra.mxu0 %v2127
      %2402 = vmatpush.msra.mxu0 %v2126
      %2403 = vmatpush.msra.mxu0 %v2125
      %2404 = vmatpush.msra.mxu0 %v2124
      %2405 = vmatpush.msra.mxu0 %v2123
      %2406 = vmatpush.msra.mxu0 %v2122
      %2407 = vmatpush.msra.mxu0 %v2121
      %2408 = vmatpush.msra.mxu0 %v2120
      %2409 = vmatpush.msra.mxu0 %v2119
      %2410 = vmatpush.msra.mxu0 %v2118
      %2411 = vmatpush.msra.mxu0 %v2117
      %2412 = vmatpush.msra.mxu0 %v2116
      %2413 = vmatpush.msra.mxu0 %v2115
      %2414 = vmatpush.msra.mxu0 %v2114
      %2415 = vmatpush.msra.mxu0 %v2113
      %2416 = vmatpush.msra.mxu0 %v2112
      %2417 = vmatmul.f32.gmra.mxu0 %v2241
      %v2418 = vpop.f32.mrf.mxu0
      %v2419 = vadd.f32 %v2390, %v2418
      %2420 = vmatmul.f32.gmra.mxu0 %v2258
      %v2421 = vpop.f32.mrf.mxu0
      %v2422 = vadd.f32 %v2393, %v2421
      %2423 = vmatmul.f32.gmra.mxu0 %v2275
      %v2424 = vpop.f32.mrf.mxu0
      %v2425 = vadd.f32 %v2396, %v2424
      %2426 = vmatmul.f32.gmra.mxu0 %v2300
      %v2427 = vpop.f32.mrf.mxu0
      %v2428 = vadd.f32 %v2399, %v2427
      %2429 = vdwg.mxu0
      %2430 = vmatpush.msra.mxu0 %v2143
      %2431 = vmatpush.msra.mxu0 %v2142
      %2432 = vmatpush.msra.mxu0 %v2141
      %2433 = vmatpush.msra.mxu0 %v2140
      %2434 = vmatpush.msra.mxu0 %v2139
      %2435 = vmatpush.msra.mxu0 %v2138
      %2436 = vmatpush.msra.mxu0 %v2137
      %2437 = vmatpush.msra.mxu0 %v2136
      %2438 = vmatpush.msra.mxu0 %v2135
      %2439 = vmatpush.msra.mxu0 %v2134
      %2440 = vmatpush.msra.mxu0 %v2133
      %2441 = vmatpush.msra.mxu0 %v2132
      %2442 = vmatpush.msra.mxu0 %v2131
      %2443 = vmatpush.msra.mxu0 %v2130
      %2444 = vmatpush.msra.mxu0 %v2129
      %2445 = vmatpush.msra.mxu0 %v2128
      %2446 = vmatmul.f32.gmra.mxu0 %v2242
      %v2447 = vpop.f32.mrf.mxu0
      %v2448 = vadd.f32 %v2419, %v2447
      %2449 = vmatmul.f32.gmra.mxu0 %v2259
      %v2450 = vpop.f32.mrf.mxu0
      %v2451 = vadd.f32 %v2422, %v2450
      %2452 = vmatmul.f32.gmra.mxu0 %v2276
      %v2453 = vpop.f32.mrf.mxu0
      %v2454 = vadd.f32 %v2425, %v2453
      %2455 = vmatmul.f32.gmra.mxu0 %v2301
      %v2456 = vpop.f32.mrf.mxu0
      %v2457 = vadd.f32 %v2428, %v2456
      %2458 = vdwg.mxu0
      %2459 = vmatpush.msra.mxu0 %v2159
      %2460 = vmatpush.msra.mxu0 %v2158
      %2461 = vmatpush.msra.mxu0 %v2157
      %2462 = vmatpush.msra.mxu0 %v2156
      %2463 = vmatpush.msra.mxu0 %v2155
      %2464 = vmatpush.msra.mxu0 %v2154
      %2465 = vmatpush.msra.mxu0 %v2153
      %2466 = vmatpush.msra.mxu0 %v2152
      %2467 = vmatpush.msra.mxu0 %v2151
      %2468 = vmatpush.msra.mxu0 %v2150
      %2469 = vmatpush.msra.mxu0 %v2149
      %2470 = vmatpush.msra.mxu0 %v2148
      %2471 = vmatpush.msra.mxu0 %v2147
      %2472 = vmatpush.msra.mxu0 %v2146
      %2473 = vmatpush.msra.mxu0 %v2145
      %2474 = vmatpush.msra.mxu0 %v2144
      %2475 = vmatmul.f32.gmra.mxu0 %v2243
      %v2476 = vpop.f32.mrf.mxu0
      %v2477 = vadd.f32 %v2448, %v2476
      %2478 = vmatmul.f32.gmra.mxu0 %v2260
      %v2479 = vpop.f32.mrf.mxu0
      %v2480 = vadd.f32 %v2451, %v2479
      %2481 = vmatmul.f32.gmra.mxu0 %v2285
      %v2482 = vpop.f32.mrf.mxu0
      %v2483 = vadd.f32 %v2454, %v2482
      %2484 = vmatmul.f32.gmra.mxu0 %v2302
      %v2485 = vpop.f32.mrf.mxu0
      %v2486 = vadd.f32 %v2457, %v2485
      %2487 = vdwg.mxu0
      %2488 = vmatpush.msra.mxu0 %v2175
      %2489 = vmatpush.msra.mxu0 %v2174
      %2490 = vmatpush.msra.mxu0 %v2173
      %2491 = vmatpush.msra.mxu0 %v2172
      %2492 = vmatpush.msra.mxu0 %v2171
      %2493 = vmatpush.msra.mxu0 %v2170
      %2494 = vmatpush.msra.mxu0 %v2169
      %2495 = vmatpush.msra.mxu0 %v2168
      %2496 = vmatpush.msra.mxu0 %v2167
      %2497 = vmatpush.msra.mxu0 %v2166
      %2498 = vmatpush.msra.mxu0 %v2165
      %2499 = vmatpush.msra.mxu0 %v2164
      %2500 = vmatpush.msra.mxu0 %v2163
      %2501 = vmatpush.msra.mxu0 %v2162
      %2502 = vmatpush.msra.mxu0 %v2161
      %2503 = vmatpush.msra.mxu0 %v2160
      %2504 = vmatmul.f32.gmra.mxu0 %v2244
      %v2505 = vpop.f32.mrf.mxu0
      %v2506 = vadd.f32 %v2477, %v2505
      %2507 = vmatmul.f32.gmra.mxu0 %v2261
      %v2508 = vpop.f32.mrf.mxu0
      %v2509 = vadd.f32 %v2480, %v2508
      %2510 = vmatmul.f32.gmra.mxu0 %v2286
      %v2511 = vpop.f32.mrf.mxu0
      %v2512 = vadd.f32 %v2483, %v2511
      %2513 = vmatmul.f32.gmra.mxu0 %v2303
      %v2514 = vpop.f32.mrf.mxu0
      %v2515 = vadd.f32 %v2486, %v2514
      %2516 = vdwg.mxu0
      %2517 = vmatpush.msra.mxu0 %v2191
      %2518 = vmatpush.msra.mxu0 %v2190
      %2519 = vmatpush.msra.mxu0 %v2189
      %2520 = vmatpush.msra.mxu0 %v2188
      %2521 = vmatpush.msra.mxu0 %v2187
      %2522 = vmatpush.msra.mxu0 %v2186
      %2523 = vmatpush.msra.mxu0 %v2185
      %2524 = vmatpush.msra.mxu0 %v2184
      %2525 = vmatpush.msra.mxu0 %v2183
      %2526 = vmatpush.msra.mxu0 %v2182
      %2527 = vmatpush.msra.mxu0 %v2181
      %2528 = vmatpush.msra.mxu0 %v2180
      %2529 = vmatpush.msra.mxu0 %v2179
      %2530 = vmatpush.msra.mxu0 %v2178
      %2531 = vmatpush.msra.mxu0 %v2177
      %2532 = vmatpush.msra.mxu0 %v2176
      %2533 = vmatmul.f32.gmra.mxu0 %v2245
      %v2534 = vpop.f32.mrf.mxu0
      %v2535 = vadd.f32 %v2506, %v2534
      %2536 = vmatmul.f32.gmra.mxu0 %v2270
      %v2537 = vpop.f32.mrf.mxu0
      %v2538 = vadd.f32 %v2509, %v2537
      %2539 = vmatmul.f32.gmra.mxu0 %v2287
      %v2540 = vpop.f32.mrf.mxu0
      %v2541 = vadd.f32 %v2512, %v2540
      %2542 = vmatmul.f32.gmra.mxu0 %v2304
      %v2543 = vpop.f32.mrf.mxu0
      %v2544 = vadd.f32 %v2515, %v2543
      %2545 = vdwg.mxu0
      %2546 = vmatpush.msra.mxu0 %v2207
      %2547 = vmatpush.msra.mxu0 %v2206
      %2548 = vmatpush.msra.mxu0 %v2205
      %2549 = vmatpush.msra.mxu0 %v2204
      %2550 = vmatpush.msra.mxu0 %v2203
      %2551 = vmatpush.msra.mxu0 %v2202
      %2552 = vmatpush.msra.mxu0 %v2201
      %2553 = vmatpush.msra.mxu0 %v2200
      %2554 = vmatpush.msra.mxu0 %v2199
      %2555 = vmatpush.msra.mxu0 %v2198
      %2556 = vmatpush.msra.mxu0 %v2197
      %2557 = vmatpush.msra.mxu0 %v2196
      %2558 = vmatpush.msra.mxu0 %v2195
      %2559 = vmatpush.msra.mxu0 %v2194
      %2560 = vmatpush.msra.mxu0 %v2193
      %2561 = vmatpush.msra.mxu0 %v2192
      %2562 = vmatmul.f32.gmra.mxu0 %v2246
      %v2563 = vpop.f32.mrf.mxu0
      %v2564 = vadd.f32 %v2535, %v2563
      %2565 = vmatmul.f32.gmra.mxu0 %v2271
      %v2566 = vpop.f32.mrf.mxu0
      %v2567 = vadd.f32 %v2538, %v2566
      %2568 = vmatmul.f32.gmra.mxu0 %v2288
      %v2569 = vpop.f32.mrf.mxu0
      %v2570 = vadd.f32 %v2541, %v2569
      %2571 = vmatmul.f32.gmra.mxu0 %v2305
      %v2572 = vpop.f32.mrf.mxu0
      %v2573 = vadd.f32 %v2544, %v2572
      %2574 = vdwg.mxu0
      %2575 = vmatpush.msra.mxu0 %v2223
      %2576 = vmatpush.msra.mxu0 %v2222
      %2577 = vmatpush.msra.mxu0 %v2221
      %2578 = vmatpush.msra.mxu0 %v2220
      %2579 = vmatpush.msra.mxu0 %v2219
      %2580 = vmatpush.msra.mxu0 %v2218
      %2581 = vmatpush.msra.mxu0 %v2217
      %2582 = vmatpush.msra.mxu0 %v2216
      %2583 = vmatpush.msra.mxu0 %v2215
      %2584 = vmatpush.msra.mxu0 %v2214
      %2585 = vmatpush.msra.mxu0 %v2213
      %2586 = vmatpush.msra.mxu0 %v2212
      %2587 = vmatpush.msra.mxu0 %v2211
      %2588 = vmatpush.msra.mxu0 %v2210
      %2589 = vmatpush.msra.mxu0 %v2209
      %2590 = vmatpush.msra.mxu0 %v2208
      %2591 = vmatmul.f32.gmra.mxu0 %v2255
      %v2592 = vpop.f32.mrf.mxu0
      %v2593 = vadd.f32 %v2564, %v2592
      %2594 = vmatmul.f32.gmra.mxu0 %v2272
      %v2595 = vpop.f32.mrf.mxu0
      %v2596 = vadd.f32 %v2567, %v2595
      %2597 = vmatmul.f32.gmra.mxu0 %v2289
      %v2598 = vpop.f32.mrf.mxu0
      %v2599 = vadd.f32 %v2570, %v2598
      %2600 = vmatmul.f32.gmra.mxu0 %v2306
      %v2601 = vpop.f32.mrf.mxu0
      %v2602 = vadd.f32 %v2573, %v2601
      %2603 = vdwg.mxu0
      %v2604 = vld [vmem:[%s11] sm:$0x1]
      %v2606 = vperm.slane %v2604, 0
      %v2608 = vmul.f32 %v2593, %v2606
      %v2609 = vmul.f32 %v2596, %v2606
      %v2610 = vmul.f32 %v2599, %v2606
      %v2611 = vmul.f32 %v2602, %v2606
      %v2612 = vld [vmem:[%s12] sm:$0x1]
      %v2614 = vperm.slane %v2612, 0
      %v2616 = vadd.f32 %v2608, %v2614
      %v2617 = vadd.f32 %v2609, %v2614
      %v2618 = vadd.f32 %v2610, %v2614
      %v2619 = vadd.f32 %v2611, %v2614
      %v2620 = vmax.f32 %v2616, 0.0
      %v2621 = vmax.f32 %v2617, 0.0
      %v2622 = vmax.f32 %v2618, 0.0
      %v2623 = vmax.f32 %v2619, 0.0
      %v2628 = vrot.slane %v2620, 1
      %v2629 = vrot.slane %v2620, 2
      %v2630 = vrot.slane %v2620, 3
      %v2631 = vrot.slane %v2620, 4
      %v2632 = vrot.slane %v2620, 5
      %v2633 = vrot.slane %v2620, 6
      %v2634 = vrot.slane %v2620, 7
      %v2635 = vrot.slane %v2621, 1
      %v2636 = vrot.slane %v2621, 2
      %v2637 = vrot.slane %v2621, 3
      %v2638 = vrot.slane %v2621, 4
      %v2639 = vrot.slane %v2621, 5
      %v2640 = vrot.slane %v2621, 6
      %v2641 = vrot.slane %v2621, 7
      %v2642 = vrot.slane %v2622, 1
      %v2643 = vrot.slane %v2622, 2
      %v2644 = vrot.slane %v2622, 3
      %v2645 = vrot.slane %v2622, 4
      %v2646 = vrot.slane %v2622, 5
      %v2647 = vrot.slane %v2622, 6
      %v2648 = vrot.slane %v2622, 7
      %v2649 = vrot.slane %v2623, 1
      %v2650 = vrot.slane %v2623, 2
      %v2651 = vrot.slane %v2623, 3
      %v2652 = vrot.slane %v2623, 4
      %v2653 = vrot.slane %v2623, 5
      %v2654 = vrot.slane %v2623, 6
      %v2655 = vrot.slane %v2623, 7
      %v2684 = vperm.slane %v2620, 0
      %v2685 = vperm.slane %v2628, 0
      %v2686 = vperm.slane %v2629, 0
      %v2687 = vperm.slane %v2630, 0
      %v2688 = vperm.slane %v2631, 0
      %v2689 = vperm.slane %v2632, 0
      %v2690 = vperm.slane %v2633, 0
      %v2691 = vperm.slane %v2634, 0
      %v2692 = vperm.slane %v2621, 0
      %v2693 = vperm.slane %v2635, 0
      %v2694 = vperm.slane %v2636, 0
      %v2695 = vperm.slane %v2637, 0
      %v2696 = vperm.slane %v2638, 0
      %v2697 = vperm.slane %v2639, 0
      %v2698 = vperm.slane %v2640, 0
      %v2699 = vperm.slane %v2641, 0
      %v2700 = vperm.slane %v2622, 0
      %v2701 = vperm.slane %v2642, 0
      %v2702 = vperm.slane %v2643, 0
      %v2703 = vperm.slane %v2644, 0
      %v2704 = vperm.slane %v2645, 0
      %v2705 = vperm.slane %v2646, 0
      %v2706 = vperm.slane %v2647, 0
      %v2707 = vperm.slane %v2648, 0
      %v2708 = vperm.slane %v2623, 0
      %v2709 = vperm.slane %v2649, 0
      %v2710 = vperm.slane %v2650, 0
      %v2711 = vperm.slane %v2651, 0
      %v2712 = vperm.slane %v2652, 0
      %v2713 = vperm.slane %v2653, 0
      %v2714 = vperm.slane %v2654, 0
      %v2715 = vperm.slane %v2655, 0
      %2716 = vrot.lane.b32.xlu0 %v2684, 64
      %v2717 = vpop.permute.xlu0 %2716
      %2718 = vrot.lane.b32.xlu0 %v2685, 64
      %v2719 = vpop.permute.xlu0 %2718
      %2720 = vrot.lane.b32.xlu0 %v2686, 64
      %v2721 = vpop.permute.xlu0 %2720
      %2722 = vrot.lane.b32.xlu0 %v2687, 64
      %v2723 = vpop.permute.xlu0 %2722
      %2724 = vrot.lane.b32.xlu0 %v2688, 64
      %v2725 = vpop.permute.xlu0 %2724
      %2726 = vrot.lane.b32.xlu0 %v2689, 64
      %v2727 = vpop.permute.xlu0 %2726
      %2728 = vrot.lane.b32.xlu0 %v2690, 64
      %v2729 = vpop.permute.xlu0 %2728
      %2730 = vrot.lane.b32.xlu0 %v2691, 64
      %v2731 = vpop.permute.xlu0 %2730
      %2732 = vrot.lane.b32.xlu0 %v2692, 64
      %v2733 = vpop.permute.xlu0 %2732
      %2734 = vrot.lane.b32.xlu0 %v2693, 64
      %v2735 = vpop.permute.xlu0 %2734
      %2736 = vrot.lane.b32.xlu0 %v2694, 64
      %v2737 = vpop.permute.xlu0 %2736
      %2738 = vrot.lane.b32.xlu0 %v2695, 64
      %v2739 = vpop.permute.xlu0 %2738
      %2740 = vrot.lane.b32.xlu0 %v2696, 64
      %v2741 = vpop.permute.xlu0 %2740
      %2742 = vrot.lane.b32.xlu0 %v2697, 64
      %v2743 = vpop.permute.xlu0 %2742
      %2744 = vrot.lane.b32.xlu0 %v2698, 64
      %v2745 = vpop.permute.xlu0 %2744
      %2746 = vrot.lane.b32.xlu0 %v2699, 64
      %v2747 = vpop.permute.xlu0 %2746
      %2748 = vrot.lane.b32.xlu0 %v2700, 64
      %v2749 = vpop.permute.xlu0 %2748
      %2750 = vrot.lane.b32.xlu0 %v2701, 64
      %v2751 = vpop.permute.xlu0 %2750
      %2752 = vrot.lane.b32.xlu0 %v2702, 64
      %v2753 = vpop.permute.xlu0 %2752
      %2754 = vrot.lane.b32.xlu0 %v2703, 64
      %v2755 = vpop.permute.xlu0 %2754
      %2756 = vrot.lane.b32.xlu0 %v2704, 64
      %v2757 = vpop.permute.xlu0 %2756
      %2758 = vrot.lane.b32.xlu0 %v2705, 64
      %v2759 = vpop.permute.xlu0 %2758
      %2760 = vrot.lane.b32.xlu0 %v2706, 64
      %v2761 = vpop.permute.xlu0 %2760
      %2762 = vrot.lane.b32.xlu0 %v2707, 64
      %v2763 = vpop.permute.xlu0 %2762
      %2764 = vrot.lane.b32.xlu0 %v2708, 64
      %v2765 = vpop.permute.xlu0 %2764
      %2766 = vrot.lane.b32.xlu0 %v2709, 64
      %v2767 = vpop.permute.xlu0 %2766
      %2768 = vrot.lane.b32.xlu0 %v2710, 64
      %v2769 = vpop.permute.xlu0 %2768
      %2770 = vrot.lane.b32.xlu0 %v2711, 64
      %v2771 = vpop.permute.xlu0 %2770
      %2772 = vrot.lane.b32.xlu0 %v2712, 64
      %v2773 = vpop.permute.xlu0 %2772
      %2774 = vrot.lane.b32.xlu0 %v2713, 64
      %v2775 = vpop.permute.xlu0 %2774
      %2776 = vrot.lane.b32.xlu0 %v2714, 64
      %v2777 = vpop.permute.xlu0 %2776
      %2778 = vrot.lane.b32.xlu0 %v2715, 64
      %v2779 = vpop.permute.xlu0 %2778
      %v2812 = vsel %vm1098, %v2620, %v2717
      %v2813 = vsel %vm1098, %v2628, %v2719
      %v2814 = vsel %vm1098, %v2629, %v2721
      %v2815 = vsel %vm1098, %v2630, %v2723
      %v2816 = vsel %vm1098, %v2631, %v2725
      %v2817 = vsel %vm1098, %v2632, %v2727
      %v2818 = vsel %vm1098, %v2633, %v2729
      %v2819 = vsel %vm1098, %v2634, %v2731
      %v2820 = vsel %vm1098, %v2621, %v2733
      %v2821 = vsel %vm1098, %v2635, %v2735
      %v2822 = vsel %vm1098, %v2636, %v2737
      %v2823 = vsel %vm1098, %v2637, %v2739
      %v2824 = vsel %vm1098, %v2638, %v2741
      %v2825 = vsel %vm1098, %v2639, %v2743
      %v2826 = vsel %vm1098, %v2640, %v2745
      %v2827 = vsel %vm1098, %v2641, %v2747
      %v2828 = vsel %vm1098, %v2622, %v2749
      %v2829 = vsel %vm1098, %v2642, %v2751
      %v2830 = vsel %vm1098, %v2643, %v2753
      %v2831 = vsel %vm1098, %v2644, %v2755
      %v2832 = vsel %vm1098, %v2645, %v2757
      %v2833 = vsel %vm1098, %v2646, %v2759
      %v2834 = vsel %vm1098, %v2647, %v2761
      %v2835 = vsel %vm1098, %v2648, %v2763
      %v2836 = vsel %vm1098, %v2623, %v2765
      %v2837 = vsel %vm1098, %v2649, %v2767
      %v2838 = vsel %vm1098, %v2650, %v2769
      %v2839 = vsel %vm1098, %v2651, %v2771
      %v2840 = vsel %vm1098, %v2652, %v2773
      %v2841 = vsel %vm1098, %v2653, %v2775
      %v2842 = vsel %vm1098, %v2654, %v2777
      %v2843 = vsel %vm1098, %v2655, %v2779
      %2876 = vst [vmem:[#allocation1] ss:$4 sm:$0xff] %v2812
      %s2877 = scalar_lea.vmem [#allocation1], 1
      %2878 = vst [vmem:[%s2877] ss:$4 sm:$0xff] %v2813
      %s2879 = scalar_lea.vmem [#allocation1], 2
      %2880 = vst [vmem:[%s2879] ss:$4 sm:$0xff] %v2814
      %s2881 = scalar_lea.vmem [#allocation1], 3
      %2882 = vst [vmem:[%s2881] ss:$4 sm:$0xff] %v2815
      %v2883 = vld.sshfl [vmem:[#allocation1] sm:$0xff pattern:$0x73625140]
      %s2884 = scalar_lea.vmem [#allocation1], 32
      %2885 = vst [vmem:[%s2884] ss:$4 sm:$0xff] %v2816
      %s2886 = scalar_lea.vmem [#allocation1], 33
      %2887 = vst [vmem:[%s2886] ss:$4 sm:$0xff] %v2817
      %s2888 = scalar_lea.vmem [#allocation1], 34
      %2889 = vst [vmem:[%s2888] ss:$4 sm:$0xff] %v2818
      %s2890 = scalar_lea.vmem [#allocation1], 35
      %2891 = vst [vmem:[%s2890] ss:$4 sm:$0xff] %v2819
      %v2892 = vld.sshfl [vmem:[#allocation1 + $0x20] sm:$0xff pattern:$0x73625140]
      %2893 = vst [vmem:[#allocation1] ss:$4 sm:$0xff] %v2820
      %2894 = vst [vmem:[%s2877] ss:$4 sm:$0xff] %v2821
      %2895 = vst [vmem:[%s2879] ss:$4 sm:$0xff] %v2822
      %2896 = vst [vmem:[%s2881] ss:$4 sm:$0xff] %v2823
      %v2897 = vld.sshfl [vmem:[#allocation1] sm:$0xff pattern:$0x73625140]
      %2898 = vst [vmem:[%s2884] ss:$4 sm:$0xff] %v2824
      %2899 = vst [vmem:[%s2886] ss:$4 sm:$0xff] %v2825
      %2900 = vst [vmem:[%s2888] ss:$4 sm:$0xff] %v2826
      %2901 = vst [vmem:[%s2890] ss:$4 sm:$0xff] %v2827
      %v2902 = vld.sshfl [vmem:[#allocation1 + $0x20] sm:$0xff pattern:$0x73625140]
      %2903 = vst [vmem:[#allocation1] ss:$4 sm:$0xff] %v2828
      %2904 = vst [vmem:[%s2877] ss:$4 sm:$0xff] %v2829
      %2905 = vst [vmem:[%s2879] ss:$4 sm:$0xff] %v2830
      %2906 = vst [vmem:[%s2881] ss:$4 sm:$0xff] %v2831
      %v2907 = vld.sshfl [vmem:[#allocation1] sm:$0xff pattern:$0x73625140]
      %2908 = vst [vmem:[%s2884] ss:$4 sm:$0xff] %v2832
      %2909 = vst [vmem:[%s2886] ss:$4 sm:$0xff] %v2833
      %2910 = vst [vmem:[%s2888] ss:$4 sm:$0xff] %v2834
      %2911 = vst [vmem:[%s2890] ss:$4 sm:$0xff] %v2835
      %v2912 = vld.sshfl [vmem:[#allocation1 + $0x20] sm:$0xff pattern:$0x73625140]
      %2913 = vst [vmem:[#allocation1] ss:$4 sm:$0xff] %v2836
      %2914 = vst [vmem:[%s2877] ss:$4 sm:$0xff] %v2837
      %2915 = vst [vmem:[%s2879] ss:$4 sm:$0xff] %v2838
      %2916 = vst [vmem:[%s2881] ss:$4 sm:$0xff] %v2839
      %v2917 = vld.sshfl [vmem:[#allocation1] sm:$0xff pattern:$0x73625140]
      %2918 = vst [vmem:[%s2884] ss:$4 sm:$0xff] %v2840
      %2919 = vst [vmem:[%s2886] ss:$4 sm:$0xff] %v2841
      %2920 = vst [vmem:[%s2888] ss:$4 sm:$0xff] %v2842
      %2921 = vst [vmem:[%s2890] ss:$4 sm:$0xff] %v2843
      %v2922 = vld.sshfl [vmem:[#allocation1 + $0x20] sm:$0xff pattern:$0x73625140]
      %v2923 = vrot.slane %v2883, 7
      %v2924 = vrot.slane %v2892, 7
      %v2925 = vrot.slane %v2897, 7
      %v2926 = vrot.slane %v2902, 7
      %v2927 = vrot.slane %v2907, 7
      %v2928 = vrot.slane %v2912, 7
      %v2929 = vrot.slane %v2917, 7
      %v2930 = vrot.slane %v2922, 7
      %v2939 = vsel %vm1098, 0.0, %v2923
      %v2940 = vsel %vm1098, 0.0, %v2924
      %v2941 = vsel %vm1098, 0.0, %v2925
      %v2942 = vsel %vm1098, 0.0, %v2926
      %v2943 = vsel %vm1098, 0.0, %v2927
      %v2944 = vsel %vm1098, 0.0, %v2928
      %v2945 = vsel %vm1098, 0.0, %v2929
      %v2946 = vsel %vm1098, 0.0, %v2930
      %v2947 = vsel %vm1098, %v2923, 0.0
      %v2948 = vsel %vm1098, %v2924, 0.0
      %v2949 = vsel %vm1098, %v2925, 0.0
      %v2950 = vsel %vm1098, %v2926, 0.0
      %v2951 = vsel %vm1098, %v2927, 0.0
      %v2952 = vsel %vm1098, %v2928, 0.0
      %v2953 = vsel %vm1098, %v2929, 0.0
      %v2954 = vsel %vm1098, %v2930, 0.0
      %v2969 = vsel %vm1110, %v1184, %v1184
      %v2970 = vrot.slane %v2939, 1
      %v2971 = vrot.slane %v2947, 1
      %v2972 = vsel %vm1110, %v2970, %v2971
      %v2973 = vrot.slane %v2940, 1
      %v2974 = vrot.slane %v2948, 1
      %v2975 = vsel %vm1110, %v2973, %v2974
      %v2976 = vrot.slane %v2941, 1
      %v2977 = vrot.slane %v2949, 1
      %v2978 = vsel %vm1110, %v2976, %v2977
      %v2979 = vrot.slane %v2942, 1
      %v2980 = vrot.slane %v2950, 1
      %v2981 = vsel %vm1110, %v2979, %v2980
      %v2982 = vrot.slane %v2943, 1
      %v2983 = vrot.slane %v2951, 1
      %v2984 = vsel %vm1110, %v2982, %v2983
      %v2985 = vrot.slane %v2944, 1
      %v2986 = vrot.slane %v2952, 1
      %v2987 = vsel %vm1110, %v2985, %v2986
      %v2988 = vrot.slane %v2945, 1
      %v2989 = vrot.slane %v2953, 1
      %v2990 = vsel %vm1110, %v2988, %v2989
      %2991 = vrot.lane.b32.xlu0 %v2969, 64
      %v2992 = vpop.permute.xlu0 %2991
      %2993 = vrot.lane.b32.xlu0 %v2972, 64
      %v2994 = vpop.permute.xlu0 %2993
      %2995 = vrot.lane.b32.xlu0 %v2975, 64
      %v2996 = vpop.permute.xlu0 %2995
      %2997 = vrot.lane.b32.xlu0 %v2978, 64
      %v2998 = vpop.permute.xlu0 %2997
      %2999 = vrot.lane.b32.xlu0 %v2981, 64
      %v3000 = vpop.permute.xlu0 %2999
      %3001 = vrot.lane.b32.xlu0 %v2984, 64
      %v3002 = vpop.permute.xlu0 %3001
      %3003 = vrot.lane.b32.xlu0 %v2987, 64
      %v3004 = vpop.permute.xlu0 %3003
      %3005 = vrot.lane.b32.xlu0 %v2990, 64
      %v3006 = vpop.permute.xlu0 %3005
      %v3015 = vsel %vm1108, %v1216, %v1216
      %v3016 = vrot.slane %v2939, 2
      %v3017 = vrot.slane %v2947, 2
      %v3018 = vsel %vm1108, %v3016, %v3017
      %v3019 = vrot.slane %v2940, 2
      %v3020 = vrot.slane %v2948, 2
      %v3021 = vsel %vm1108, %v3019, %v3020
      %v3022 = vrot.slane %v2941, 2
      %v3023 = vrot.slane %v2949, 2
      %v3024 = vsel %vm1108, %v3022, %v3023
      %v3025 = vrot.slane %v2942, 2
      %v3026 = vrot.slane %v2950, 2
      %v3027 = vsel %vm1108, %v3025, %v3026
      %v3028 = vrot.slane %v2943, 2
      %v3029 = vrot.slane %v2951, 2
      %v3030 = vsel %vm1108, %v3028, %v3029
      %v3031 = vrot.slane %v2944, 2
      %v3032 = vrot.slane %v2952, 2
      %v3033 = vsel %vm1108, %v3031, %v3032
      %v3034 = vrot.slane %v2945, 2
      %v3035 = vrot.slane %v2953, 2
      %v3036 = vsel %vm1108, %v3034, %v3035
      %3046 = vrot.lane.b32.xlu0 %v2939, 64
      %v3047 = vpop.permute.xlu0 %3046
      %3048 = vrot.lane.b32.xlu0 %v2940, 64
      %v3049 = vpop.permute.xlu0 %3048
      %3050 = vrot.lane.b32.xlu0 %v2941, 64
      %v3051 = vpop.permute.xlu0 %3050
      %3052 = vrot.lane.b32.xlu0 %v2942, 64
      %v3053 = vpop.permute.xlu0 %3052
      %3054 = vrot.lane.b32.xlu0 %v2943, 64
      %v3055 = vpop.permute.xlu0 %3054
      %3056 = vrot.lane.b32.xlu0 %v2944, 64
      %v3057 = vpop.permute.xlu0 %3056
      %3058 = vrot.lane.b32.xlu0 %v2945, 64
      %v3059 = vpop.permute.xlu0 %3058
      %3060 = vrot.lane.b32.xlu0 %v2946, 64
      %v3061 = vpop.permute.xlu0 %3060
      %v3071 = vrot.slane %v2946, 1
      %v3072 = vrot.slane %v2954, 1
      %v3073 = vsel %vm1110, %v3071, %v3072
      %v3082 = vrot.slane %v2946, 2
      %v3083 = vrot.slane %v2954, 2
      %v3084 = vsel %vm1108, %v3082, %v3083
      %3085 = vrot.lane.b32.xlu0 %v3018, 64
      %v3086 = vpop.permute.xlu0 %3085
      %3087 = vrot.lane.b32.xlu0 %v3021, 64
      %v3088 = vpop.permute.xlu0 %3087
      %3089 = vrot.lane.b32.xlu0 %v3024, 64
      %v3090 = vpop.permute.xlu0 %3089
      %3091 = vrot.lane.b32.xlu0 %v3027, 64
      %v3092 = vpop.permute.xlu0 %3091
      %3093 = vrot.lane.b32.xlu0 %v3030, 64
      %v3094 = vpop.permute.xlu0 %3093
      %3095 = vrot.lane.b32.xlu0 %v3033, 64
      %v3096 = vpop.permute.xlu0 %3095
      %3097 = vrot.lane.b32.xlu0 %v3036, 64
      %v3098 = vpop.permute.xlu0 %3097
      %3099 = vrot.lane.b32.xlu0 %v3084, 64
      %v3100 = vpop.permute.xlu0 %3099
      %3109 = vrot.lane.b32.xlu0 %v3073, 64
      %v3110 = vpop.permute.xlu0 %3109
      %v3112 = vsel %vm1294, 0.0, %v2992
      %v3113 = vsel %vm1294, %v2939, %v2994
      %v3114 = vsel %vm1294, %v2940, %v2996
      %v3115 = vsel %vm1294, %v2941, %v2998
      %v3116 = vsel %vm1294, %v2942, %v3000
      %v3117 = vsel %vm1294, %v2943, %v3002
      %v3118 = vsel %vm1294, %v2944, %v3004
      %v3119 = vsel %vm1294, %v2945, %v3006
      %v3120 = vsel %vm1294, %v3015, %v3047
      %v3121 = vsel %vm1294, %v3018, %v3049
      %v3122 = vsel %vm1294, %v3021, %v3051
      %v3123 = vsel %vm1294, %v3024, %v3053
      %v3124 = vsel %vm1294, %v3027, %v3055
      %v3125 = vsel %vm1294, %v3030, %v3057
      %v3126 = vsel %vm1294, %v3033, %v3059
      %v3127 = vsel %vm1294, %v3036, %v3061
      %v3128 = vsel %vm1294, %v2972, %v3086
      %v3129 = vsel %vm1294, %v2975, %v3088
      %v3130 = vsel %vm1294, %v2978, %v3090
      %v3131 = vsel %vm1294, %v2981, %v3092
      %v3132 = vsel %vm1294, %v2984, %v3094
      %v3133 = vsel %vm1294, %v2987, %v3096
      %v3134 = vsel %vm1294, %v2990, %v3098
      %v3135 = vsel %vm1294, %v3073, %v3100
      %v3136 = vsel %vm1294, %v2946, %v3110
      %v3137 = vld [vmem:[%s13] sm:$0xff]
      %v3138 = vld [vmem:[%s13 + $0x8] sm:$0xff]
      %v3139 = vld [vmem:[%s13 + $0x10] sm:$0xff]
      %v3140 = vld [vmem:[%s13 + $0x18] sm:$0xff]
      %v3141 = vld [vmem:[%s13 + $0x20] sm:$0xff]
      %v3142 = vld [vmem:[%s13 + $0x28] sm:$0xff]
      %v3143 = vld [vmem:[%s13 + $0x30] sm:$0xff]
      %v3144 = vld [vmem:[%s13 + $0x38] sm:$0xff]
      %v3145 = vld [vmem:[%s13 + $0x40] sm:$0xff]
      %v3146 = vld [vmem:[%s13 + $0x48] sm:$0xff]
      %v3147 = vld [vmem:[%s13 + $0x50] sm:$0xff]
      %v3148 = vld [vmem:[%s13 + $0x58] sm:$0xff]
      %v3149 = vld [vmem:[%s13 + $0x60] sm:$0xff]
      %v3150 = vld [vmem:[%s13 + $0x68] sm:$0xff]
      %v3151 = vld [vmem:[%s13 + $0x70] sm:$0xff]
      %v3152 = vld [vmem:[%s13 + $0x78] sm:$0xff]
      %v3153 = vld [vmem:[%s13 + $0x80] sm:$0xff]
      %v3154 = vld [vmem:[%s13 + $0x88] sm:$0xff]
      %v3155 = vld [vmem:[%s13 + $0x90] sm:$0xff]
      %v3156 = vld [vmem:[%s13 + $0x98] sm:$0xff]
      %v3157 = vld [vmem:[%s13 + $0xa0] sm:$0xff]
      %v3158 = vld [vmem:[%s13 + $0xa8] sm:$0xff]
      %v3159 = vld [vmem:[%s13 + $0xb0] sm:$0xff]
      %v3160 = vld [vmem:[%s13 + $0xb8] sm:$0xff]
      %v3161 = vld [vmem:[%s13 + $0xc0] sm:$0xff]
      %v3162 = vld [vmem:[%s13 + $0xc8] sm:$0xff]
      %v3163 = vld [vmem:[%s13 + $0xd0] sm:$0xff]
      %v3164 = vld [vmem:[%s13 + $0xd8] sm:$0xff]
      %v3165 = vld [vmem:[%s13 + $0xe0] sm:$0xff]
      %v3166 = vld [vmem:[%s13 + $0xe8] sm:$0xff]
      %v3167 = vld [vmem:[%s13 + $0xf0] sm:$0xff]
      %v3168 = vld [vmem:[%s13 + $0xf8] sm:$0xff]
      %v3169 = vld [vmem:[%s13 + $0x100] sm:$0xff]
      %v3170 = vld [vmem:[%s13 + $0x108] sm:$0xff]
      %v3171 = vld [vmem:[%s13 + $0x110] sm:$0xff]
      %v3172 = vld [vmem:[%s13 + $0x118] sm:$0xff]
      %v3173 = vld [vmem:[%s13 + $0x120] sm:$0xff]
      %v3174 = vld [vmem:[%s13 + $0x128] sm:$0xff]
      %v3175 = vld [vmem:[%s13 + $0x130] sm:$0xff]
      %v3176 = vld [vmem:[%s13 + $0x138] sm:$0xff]
      %v3177 = vld [vmem:[%s13 + $0x140] sm:$0xff]
      %v3178 = vld [vmem:[%s13 + $0x148] sm:$0xff]
      %v3179 = vld [vmem:[%s13 + $0x150] sm:$0xff]
      %v3180 = vld [vmem:[%s13 + $0x158] sm:$0xff]
      %v3181 = vld [vmem:[%s13 + $0x160] sm:$0xff]
      %v3182 = vld [vmem:[%s13 + $0x168] sm:$0xff]
      %v3183 = vld [vmem:[%s13 + $0x170] sm:$0xff]
      %v3184 = vld [vmem:[%s13 + $0x178] sm:$0xff]
      %v3185 = vld [vmem:[%s13 + $0x180] sm:$0xff]
      %v3186 = vld [vmem:[%s13 + $0x188] sm:$0xff]
      %v3187 = vld [vmem:[%s13 + $0x190] sm:$0xff]
      %v3188 = vld [vmem:[%s13 + $0x198] sm:$0xff]
      %v3189 = vld [vmem:[%s13 + $0x1a0] sm:$0xff]
      %v3190 = vld [vmem:[%s13 + $0x1a8] sm:$0xff]
      %v3191 = vld [vmem:[%s13 + $0x1b0] sm:$0xff]
      %v3192 = vld [vmem:[%s13 + $0x1b8] sm:$0xff]
      %v3193 = vld [vmem:[%s13 + $0x1c0] sm:$0xff]
      %v3194 = vld [vmem:[%s13 + $0x1c8] sm:$0xff]
      %v3195 = vld [vmem:[%s13 + $0x1d0] sm:$0xff]
      %v3196 = vld [vmem:[%s13 + $0x1d8] sm:$0xff]
      %v3197 = vld [vmem:[%s13 + $0x1e0] sm:$0xff]
      %v3198 = vld [vmem:[%s13 + $0x1e8] sm:$0xff]
      %v3199 = vld [vmem:[%s13 + $0x1f0] sm:$0xff]
      %v3200 = vld [vmem:[%s13 + $0x1f8] sm:$0xff]
      %v3201 = vld [vmem:[%s13 + $0x200] sm:$0xff]
      %v3202 = vld [vmem:[%s13 + $0x208] sm:$0xff]
      %v3203 = vld [vmem:[%s13 + $0x210] sm:$0xff]
      %v3204 = vld [vmem:[%s13 + $0x218] sm:$0xff]
      %v3205 = vld [vmem:[%s13 + $0x220] sm:$0xff]
      %v3206 = vld [vmem:[%s13 + $0x228] sm:$0xff]
      %v3207 = vld [vmem:[%s13 + $0x230] sm:$0xff]
      %v3208 = vld [vmem:[%s13 + $0x238] sm:$0xff]
      %v3209 = vsel %vm1294, %v3021, 0
      %v3211 = vsel %vm1294, %v3024, 0
      %v3213 = vsel %vm1294, %v3027, 0
      %v3215 = vsel %vm1294, %v3030, 0
      %v3217 = vsel %vm1294, %v3033, 0
      %v3219 = vsel %vm1294, %v3036, 0
      %v3221 = vsel %vm1294, %v3084, 0
      %v3223 = vsel %vm1294, %v3015, 0
      %3225 = vmatpush.msra.mxu0 %v3152
      %3226 = vmatpush.msra.mxu0 %v3151
      %3227 = vmatpush.msra.mxu0 %v3150
      %3228 = vmatpush.msra.mxu0 %v3149
      %3229 = vmatpush.msra.mxu0 %v3148
      %3230 = vmatpush.msra.mxu0 %v3147
      %3231 = vmatpush.msra.mxu0 %v3146
      %3232 = vmatpush.msra.mxu0 %v3145
      %3233 = vmatpush.msra.mxu0 %v3144
      %3234 = vmatpush.msra.mxu0 %v3143
      %3235 = vmatpush.msra.mxu0 %v3142
      %3236 = vmatpush.msra.mxu0 %v3141
      %3237 = vmatpush.msra.mxu0 %v3140
      %3238 = vmatpush.msra.mxu0 %v3139
      %3239 = vmatpush.msra.mxu0 %v3138
      %3240 = vmatpush.msra.mxu0 %v3137
      %3241 = vmatmul.f32.gmra.mxu0 %v3112
      %v3242 = vpop.f32.mrf.mxu0
      %v3243 = vadd.f32 0.0, %v3242
      %3244 = vmatmul.f32.gmra.mxu0 %v3113
      %v3245 = vpop.f32.mrf.mxu0
      %v3246 = vadd.f32 0.0, %v3245
      %3247 = vmatmul.f32.gmra.mxu0 %v3114
      %v3248 = vpop.f32.mrf.mxu0
      %v3249 = vadd.f32 0.0, %v3248
      %3250 = vmatmul.f32.gmra.mxu0 %v3115
      %v3251 = vpop.f32.mrf.mxu0
      %v3252 = vadd.f32 0.0, %v3251
      %3253 = vmatmul.f32.gmra.mxu0 %v3116
      %v3254 = vpop.f32.mrf.mxu0
      %v3255 = vadd.f32 0.0, %v3254
      %3256 = vmatmul.f32.gmra.mxu0 %v3117
      %v3257 = vpop.f32.mrf.mxu0
      %v3258 = vadd.f32 0.0, %v3257
      %3259 = vmatmul.f32.gmra.mxu0 %v3118
      %v3260 = vpop.f32.mrf.mxu0
      %v3261 = vadd.f32 0.0, %v3260
      %3262 = vmatmul.f32.gmra.mxu0 %v3119
      %v3263 = vpop.f32.mrf.mxu0
      %v3264 = vadd.f32 0.0, %v3263
      %3265 = vdwg.mxu0
      %3266 = vmatpush.msra.mxu0 %v3168
      %3267 = vmatpush.msra.mxu0 %v3167
      %3268 = vmatpush.msra.mxu0 %v3166
      %3269 = vmatpush.msra.mxu0 %v3165
      %3270 = vmatpush.msra.mxu0 %v3164
      %3271 = vmatpush.msra.mxu0 %v3163
      %3272 = vmatpush.msra.mxu0 %v3162
      %3273 = vmatpush.msra.mxu0 %v3161
      %3274 = vmatpush.msra.mxu0 %v3160
      %3275 = vmatpush.msra.mxu0 %v3159
      %3276 = vmatpush.msra.mxu0 %v3158
      %3277 = vmatpush.msra.mxu0 %v3157
      %3278 = vmatpush.msra.mxu0 %v3156
      %3279 = vmatpush.msra.mxu0 %v3155
      %3280 = vmatpush.msra.mxu0 %v3154
      %3281 = vmatpush.msra.mxu0 %v3153
      %3282 = vmatmul.f32.gmra.mxu0 %v3120
      %v3283 = vpop.f32.mrf.mxu0
      %v3284 = vadd.f32 %v3243, %v3283
      %3285 = vmatmul.f32.gmra.mxu0 %v3121
      %v3286 = vpop.f32.mrf.mxu0
      %v3287 = vadd.f32 %v3246, %v3286
      %3288 = vmatmul.f32.gmra.mxu0 %v3122
      %v3289 = vpop.f32.mrf.mxu0
      %v3290 = vadd.f32 %v3249, %v3289
      %3291 = vmatmul.f32.gmra.mxu0 %v3123
      %v3292 = vpop.f32.mrf.mxu0
      %v3293 = vadd.f32 %v3252, %v3292
      %3294 = vmatmul.f32.gmra.mxu0 %v3124
      %v3295 = vpop.f32.mrf.mxu0
      %v3296 = vadd.f32 %v3255, %v3295
      %3297 = vmatmul.f32.gmra.mxu0 %v3125
      %v3298 = vpop.f32.mrf.mxu0
      %v3299 = vadd.f32 %v3258, %v3298
      %3300 = vmatmul.f32.gmra.mxu0 %v3126
      %v3301 = vpop.f32.mrf.mxu0
      %v3302 = vadd.f32 %v3261, %v3301
      %3303 = vmatmul.f32.gmra.mxu0 %v3127
      %v3304 = vpop.f32.mrf.mxu0
      %v3305 = vadd.f32 %v3264, %v3304
      %3306 = vdwg.mxu0
      %3307 = vmatpush.msra.mxu0 %v3184
      %3308 = vmatpush.msra.mxu0 %v3183
      %3309 = vmatpush.msra.mxu0 %v3182
      %3310 = vmatpush.msra.mxu0 %v3181
      %3311 = vmatpush.msra.mxu0 %v3180
      %3312 = vmatpush.msra.mxu0 %v3179
      %3313 = vmatpush.msra.mxu0 %v3178
      %3314 = vmatpush.msra.mxu0 %v3177
      %3315 = vmatpush.msra.mxu0 %v3176
      %3316 = vmatpush.msra.mxu0 %v3175
      %3317 = vmatpush.msra.mxu0 %v3174
      %3318 = vmatpush.msra.mxu0 %v3173
      %3319 = vmatpush.msra.mxu0 %v3172
      %3320 = vmatpush.msra.mxu0 %v3171
      %3321 = vmatpush.msra.mxu0 %v3170
      %3322 = vmatpush.msra.mxu0 %v3169
      %3323 = vmatmul.f32.gmra.mxu0 %v3128
      %v3324 = vpop.f32.mrf.mxu0
      %v3325 = vadd.f32 %v3284, %v3324
      %3326 = vmatmul.f32.gmra.mxu0 %v3129
      %v3327 = vpop.f32.mrf.mxu0
      %v3328 = vadd.f32 %v3287, %v3327
      %3329 = vmatmul.f32.gmra.mxu0 %v3130
      %v3330 = vpop.f32.mrf.mxu0
      %v3331 = vadd.f32 %v3290, %v3330
      %3332 = vmatmul.f32.gmra.mxu0 %v3131
      %v3333 = vpop.f32.mrf.mxu0
      %v3334 = vadd.f32 %v3293, %v3333
      %3335 = vmatmul.f32.gmra.mxu0 %v3132
      %v3336 = vpop.f32.mrf.mxu0
      %v3337 = vadd.f32 %v3296, %v3336
      %3338 = vmatmul.f32.gmra.mxu0 %v3133
      %v3339 = vpop.f32.mrf.mxu0
      %v3340 = vadd.f32 %v3299, %v3339
      %3341 = vmatmul.f32.gmra.mxu0 %v3134
      %v3342 = vpop.f32.mrf.mxu0
      %v3343 = vadd.f32 %v3302, %v3342
      %3344 = vmatmul.f32.gmra.mxu0 %v3135
      %v3345 = vpop.f32.mrf.mxu0
      %v3346 = vadd.f32 %v3305, %v3345
      %3347 = vdwg.mxu0
      %3348 = vmatpush.msra.mxu0 %v3200
      %3349 = vmatpush.msra.mxu0 %v3199
      %3350 = vmatpush.msra.mxu0 %v3198
      %3351 = vmatpush.msra.mxu0 %v3197
      %3352 = vmatpush.msra.mxu0 %v3196
      %3353 = vmatpush.msra.mxu0 %v3195
      %3354 = vmatpush.msra.mxu0 %v3194
      %3355 = vmatpush.msra.mxu0 %v3193
      %3356 = vmatpush.msra.mxu0 %v3192
      %3357 = vmatpush.msra.mxu0 %v3191
      %3358 = vmatpush.msra.mxu0 %v3190
      %3359 = vmatpush.msra.mxu0 %v3189
      %3360 = vmatpush.msra.mxu0 %v3188
      %3361 = vmatpush.msra.mxu0 %v3187
      %3362 = vmatpush.msra.mxu0 %v3186
      %3363 = vmatpush.msra.mxu0 %v3185
      %3364 = vmatmul.f32.gmra.mxu0 %v3114
      %v3365 = vpop.f32.mrf.mxu0
      %v3366 = vadd.f32 %v3325, %v3365
      %3367 = vmatmul.f32.gmra.mxu0 %v3115
      %v3368 = vpop.f32.mrf.mxu0
      %v3369 = vadd.f32 %v3328, %v3368
      %3370 = vmatmul.f32.gmra.mxu0 %v3116
      %v3371 = vpop.f32.mrf.mxu0
      %v3372 = vadd.f32 %v3331, %v3371
      %3373 = vmatmul.f32.gmra.mxu0 %v3117
      %v3374 = vpop.f32.mrf.mxu0
      %v3375 = vadd.f32 %v3334, %v3374
      %3376 = vmatmul.f32.gmra.mxu0 %v3118
      %v3377 = vpop.f32.mrf.mxu0
      %v3378 = vadd.f32 %v3337, %v3377
      %3379 = vmatmul.f32.gmra.mxu0 %v3119
      %v3380 = vpop.f32.mrf.mxu0
      %v3381 = vadd.f32 %v3340, %v3380
      %3382 = vmatmul.f32.gmra.mxu0 %v3136
      %v3383 = vpop.f32.mrf.mxu0
      %v3384 = vadd.f32 %v3343, %v3383
      %3385 = vmatmul.f32.gmra.mxu0 %v3112
      %v3386 = vpop.f32.mrf.mxu0
      %v3387 = vadd.f32 %v3346, %v3386
      %3388 = vdwg.mxu0
      %3389 = vmatpush.msra.mxu0 0.0
      %3390 = vmatpush.msra.mxu0 0.0
      %3391 = vmatpush.msra.mxu0 0.0
      %3392 = vmatpush.msra.mxu0 0.0
      %3393 = vmatpush.msra.mxu0 0.0
      %3394 = vmatpush.msra.mxu0 0.0
      %3395 = vmatpush.msra.mxu0 0.0
      %3396 = vmatpush.msra.mxu0 0.0
      %3397 = vmatpush.msra.mxu0 %v3208
      %3398 = vmatpush.msra.mxu0 %v3207
      %3399 = vmatpush.msra.mxu0 %v3206
      %3400 = vmatpush.msra.mxu0 %v3205
      %3401 = vmatpush.msra.mxu0 %v3204
      %3402 = vmatpush.msra.mxu0 %v3203
      %3403 = vmatpush.msra.mxu0 %v3202
      %3404 = vmatpush.msra.mxu0 %v3201
      %3405 = vmatmul.f32.gmra.mxu0 %v3209
      %v3406 = vpop.f32.mrf.mxu0
      %v3407 = vadd.f32 %v3366, %v3406
      %3408 = vmatmul.f32.gmra.mxu0 %v3211
      %v3409 = vpop.f32.mrf.mxu0
      %v3410 = vadd.f32 %v3369, %v3409
      %3411 = vmatmul.f32.gmra.mxu0 %v3213
      %v3412 = vpop.f32.mrf.mxu0
      %v3413 = vadd.f32 %v3372, %v3412
      %3414 = vmatmul.f32.gmra.mxu0 %v3215
      %v3415 = vpop.f32.mrf.mxu0
      %v3416 = vadd.f32 %v3375, %v3415
      %3417 = vmatmul.f32.gmra.mxu0 %v3217
      %v3418 = vpop.f32.mrf.mxu0
      %v3419 = vadd.f32 %v3378, %v3418
      %3420 = vmatmul.f32.gmra.mxu0 %v3219
      %v3421 = vpop.f32.mrf.mxu0
      %v3422 = vadd.f32 %v3381, %v3421
      %3423 = vmatmul.f32.gmra.mxu0 %v3221
      %v3424 = vpop.f32.mrf.mxu0
      %v3425 = vadd.f32 %v3384, %v3424
      %3426 = vmatmul.f32.gmra.mxu0 %v3223
      %v3427 = vpop.f32.mrf.mxu0
      %v3428 = vadd.f32 %v3387, %v3427
      %3429 = vdwg.mxu0
      %v3430 = vld [vmem:[%s14] sm:$0x1]
      %v3432 = vperm.slane %v3430, 0
      %v3434 = vmul.f32 %v3407, %v3432
      %v3435 = vmul.f32 %v3410, %v3432
      %v3436 = vmul.f32 %v3413, %v3432
      %v3437 = vmul.f32 %v3416, %v3432
      %v3438 = vmul.f32 %v3419, %v3432
      %v3439 = vmul.f32 %v3422, %v3432
      %v3440 = vmul.f32 %v3425, %v3432
      %v3441 = vmul.f32 %v3428, %v3432
      %v3442 = vld [vmem:[%s15] sm:$0x1]
      %v3444 = vperm.slane %v3442, 0
      %v3446 = vadd.f32 %v3434, %v3444
      %v3447 = vadd.f32 %v3435, %v3444
      %v3448 = vadd.f32 %v3436, %v3444
      %v3449 = vadd.f32 %v3437, %v3444
      %v3450 = vadd.f32 %v3438, %v3444
      %v3451 = vadd.f32 %v3439, %v3444
      %v3452 = vadd.f32 %v3440, %v3444
      %v3453 = vadd.f32 %v3441, %v3444
      %v3454 = vmax.f32 %v3446, 0.0
      %v3455 = vmax.f32 %v3447, 0.0
      %v3456 = vmax.f32 %v3448, 0.0
      %v3457 = vmax.f32 %v3449, 0.0
      %v3458 = vmax.f32 %v3450, 0.0
      %v3459 = vmax.f32 %v3451, 0.0
      %v3460 = vmax.f32 %v3452, 0.0
      %v3461 = vmax.f32 %v3453, 0.0
      %v3470 = vrot.slane %v3454, 1
      %v3471 = vrot.slane %v3454, 2
      %v3472 = vrot.slane %v3454, 3
      %v3473 = vrot.slane %v3454, 4
      %v3474 = vrot.slane %v3454, 5
      %v3475 = vrot.slane %v3454, 6
      %v3476 = vrot.slane %v3454, 7
      %v3477 = vrot.slane %v3455, 1
      %v3478 = vrot.slane %v3455, 2
      %v3479 = vrot.slane %v3455, 3
      %v3480 = vrot.slane %v3455, 4
      %v3481 = vrot.slane %v3455, 5
      %v3482 = vrot.slane %v3455, 6
      %v3483 = vrot.slane %v3455, 7
      %v3484 = vrot.slane %v3456, 1
      %v3485 = vrot.slane %v3456, 2
      %v3486 = vrot.slane %v3456, 3
      %v3487 = vrot.slane %v3456, 4
      %v3488 = vrot.slane %v3456, 5
      %v3489 = vrot.slane %v3456, 6
      %v3490 = vrot.slane %v3456, 7
      %v3491 = vrot.slane %v3457, 1
      %v3492 = vrot.slane %v3457, 2
      %v3493 = vrot.slane %v3457, 3
      %v3494 = vrot.slane %v3457, 4
      %v3495 = vrot.slane %v3457, 5
      %v3496 = vrot.slane %v3457, 6
      %v3497 = vrot.slane %v3457, 7
      %v3498 = vrot.slane %v3458, 1
      %v3499 = vrot.slane %v3458, 2
      %v3500 = vrot.slane %v3458, 3
      %v3501 = vrot.slane %v3458, 4
      %v3502 = vrot.slane %v3458, 5
      %v3503 = vrot.slane %v3458, 6
      %v3504 = vrot.slane %v3458, 7
      %v3505 = vrot.slane %v3459, 1
      %v3506 = vrot.slane %v3459, 2
      %v3507 = vrot.slane %v3459, 3
      %v3508 = vrot.slane %v3459, 4
      %v3509 = vrot.slane %v3459, 5
      %v3510 = vrot.slane %v3459, 6
      %v3511 = vrot.slane %v3459, 7
      %v3512 = vrot.slane %v3460, 1
      %v3513 = vrot.slane %v3460, 2
      %v3514 = vrot.slane %v3460, 3
      %v3515 = vrot.slane %v3460, 4
      %v3516 = vrot.slane %v3460, 5
      %v3517 = vrot.slane %v3460, 6
      %v3518 = vrot.slane %v3460, 7
      %v3519 = vrot.slane %v3461, 1
      %v3520 = vrot.slane %v3461, 2
      %v3521 = vrot.slane %v3461, 3
      %v3522 = vrot.slane %v3461, 4
      %v3523 = vrot.slane %v3461, 5
      %v3524 = vrot.slane %v3461, 6
      %v3525 = vrot.slane %v3461, 7
      %v3582 = vperm.slane %v3454, 0
      %v3583 = vperm.slane %v3470, 0
      %v3584 = vperm.slane %v3471, 0
      %v3585 = vperm.slane %v3472, 0
      %v3586 = vperm.slane %v3473, 0
      %v3587 = vperm.slane %v3474, 0
      %v3588 = vperm.slane %v3475, 0
      %v3589 = vperm.slane %v3476, 0
      %v3590 = vperm.slane %v3455, 0
      %v3591 = vperm.slane %v3477, 0
      %v3592 = vperm.slane %v3478, 0
      %v3593 = vperm.slane %v3479, 0
      %v3594 = vperm.slane %v3480, 0
      %v3595 = vperm.slane %v3481, 0
      %v3596 = vperm.slane %v3482, 0
      %v3597 = vperm.slane %v3483, 0
      %v3598 = vperm.slane %v3456, 0
      %v3599 = vperm.slane %v3484, 0
      %v3600 = vperm.slane %v3485, 0
      %v3601 = vperm.slane %v3486, 0
      %v3602 = vperm.slane %v3487, 0
      %v3603 = vperm.slane %v3488, 0
      %v3604 = vperm.slane %v3489, 0
      %v3605 = vperm.slane %v3490, 0
      %v3606 = vperm.slane %v3457, 0
      %v3607 = vperm.slane %v3491, 0
      %v3608 = vperm.slane %v3492, 0
      %v3609 = vperm.slane %v3493, 0
      %v3610 = vperm.slane %v3494, 0
      %v3611 = vperm.slane %v3495, 0
      %v3612 = vperm.slane %v3496, 0
      %v3613 = vperm.slane %v3497, 0
      %v3614 = vperm.slane %v3458, 0
      %v3615 = vperm.slane %v3498, 0
      %v3616 = vperm.slane %v3499, 0
      %v3617 = vperm.slane %v3500, 0
      %v3618 = vperm.slane %v3501, 0
      %v3619 = vperm.slane %v3502, 0
      %v3620 = vperm.slane %v3503, 0
      %v3621 = vperm.slane %v3504, 0
      %v3622 = vperm.slane %v3459, 0
      %v3623 = vperm.slane %v3505, 0
      %v3624 = vperm.slane %v3506, 0
      %v3625 = vperm.slane %v3507, 0
      %v3626 = vperm.slane %v3508, 0
      %v3627 = vperm.slane %v3509, 0
      %v3628 = vperm.slane %v3510, 0
      %v3629 = vperm.slane %v3511, 0
      %v3630 = vperm.slane %v3460, 0
      %v3631 = vperm.slane %v3512, 0
      %v3632 = vperm.slane %v3513, 0
      %v3633 = vperm.slane %v3514, 0
      %v3634 = vperm.slane %v3515, 0
      %v3635 = vperm.slane %v3516, 0
      %v3636 = vperm.slane %v3517, 0
      %v3637 = vperm.slane %v3518, 0
      %v3638 = vperm.slane %v3461, 0
      %v3639 = vperm.slane %v3519, 0
      %v3640 = vperm.slane %v3520, 0
      %v3641 = vperm.slane %v3521, 0
      %v3642 = vperm.slane %v3522, 0
      %v3643 = vperm.slane %v3523, 0
      %v3644 = vperm.slane %v3524, 0
      %v3645 = vperm.slane %v3525, 0
      %3646 = vrot.lane.b32.xlu0 %v3582, 96
      %v3647 = vpop.permute.xlu0 %3646
      %3648 = vrot.lane.b32.xlu0 %v3583, 96
      %v3649 = vpop.permute.xlu0 %3648
      %3650 = vrot.lane.b32.xlu0 %v3584, 96
      %v3651 = vpop.permute.xlu0 %3650
      %3652 = vrot.lane.b32.xlu0 %v3585, 96
      %v3653 = vpop.permute.xlu0 %3652
      %3654 = vrot.lane.b32.xlu0 %v3586, 96
      %v3655 = vpop.permute.xlu0 %3654
      %3656 = vrot.lane.b32.xlu0 %v3587, 96
      %v3657 = vpop.permute.xlu0 %3656
      %3658 = vrot.lane.b32.xlu0 %v3588, 96
      %v3659 = vpop.permute.xlu0 %3658
      %3660 = vrot.lane.b32.xlu0 %v3589, 96
      %v3661 = vpop.permute.xlu0 %3660
      %3662 = vrot.lane.b32.xlu0 %v3590, 96
      %v3663 = vpop.permute.xlu0 %3662
      %3664 = vrot.lane.b32.xlu0 %v3591, 96
      %v3665 = vpop.permute.xlu0 %3664
      %3666 = vrot.lane.b32.xlu0 %v3592, 96
      %v3667 = vpop.permute.xlu0 %3666
      %3668 = vrot.lane.b32.xlu0 %v3593, 96
      %v3669 = vpop.permute.xlu0 %3668
      %3670 = vrot.lane.b32.xlu0 %v3594, 96
      %v3671 = vpop.permute.xlu0 %3670
      %3672 = vrot.lane.b32.xlu0 %v3595, 96
      %v3673 = vpop.permute.xlu0 %3672
      %3674 = vrot.lane.b32.xlu0 %v3596, 96
      %v3675 = vpop.permute.xlu0 %3674
      %3676 = vrot.lane.b32.xlu0 %v3597, 96
      %v3677 = vpop.permute.xlu0 %3676
      %3678 = vrot.lane.b32.xlu0 %v3598, 96
      %v3679 = vpop.permute.xlu0 %3678
      %3680 = vrot.lane.b32.xlu0 %v3599, 96
      %v3681 = vpop.permute.xlu0 %3680
      %3682 = vrot.lane.b32.xlu0 %v3600, 96
      %v3683 = vpop.permute.xlu0 %3682
      %3684 = vrot.lane.b32.xlu0 %v3601, 96
      %v3685 = vpop.permute.xlu0 %3684
      %3686 = vrot.lane.b32.xlu0 %v3602, 96
      %v3687 = vpop.permute.xlu0 %3686
      %3688 = vrot.lane.b32.xlu0 %v3603, 96
      %v3689 = vpop.permute.xlu0 %3688
      %3690 = vrot.lane.b32.xlu0 %v3604, 96
      %v3691 = vpop.permute.xlu0 %3690
      %3692 = vrot.lane.b32.xlu0 %v3605, 96
      %v3693 = vpop.permute.xlu0 %3692
      %3694 = vrot.lane.b32.xlu0 %v3606, 96
      %v3695 = vpop.permute.xlu0 %3694
      %3696 = vrot.lane.b32.xlu0 %v3607, 96
      %v3697 = vpop.permute.xlu0 %3696
      %3698 = vrot.lane.b32.xlu0 %v3608, 96
      %v3699 = vpop.permute.xlu0 %3698
      %3700 = vrot.lane.b32.xlu0 %v3609, 96
      %v3701 = vpop.permute.xlu0 %3700
      %3702 = vrot.lane.b32.xlu0 %v3610, 96
      %v3703 = vpop.permute.xlu0 %3702
      %3704 = vrot.lane.b32.xlu0 %v3611, 96
      %v3705 = vpop.permute.xlu0 %3704
      %3706 = vrot.lane.b32.xlu0 %v3612, 96
      %v3707 = vpop.permute.xlu0 %3706
      %3708 = vrot.lane.b32.xlu0 %v3613, 96
      %v3709 = vpop.permute.xlu0 %3708
      %3710 = vrot.lane.b32.xlu0 %v3614, 96
      %v3711 = vpop.permute.xlu0 %3710
      %3712 = vrot.lane.b32.xlu0 %v3615, 96
      %v3713 = vpop.permute.xlu0 %3712
      %3714 = vrot.lane.b32.xlu0 %v3616, 96
      %v3715 = vpop.permute.xlu0 %3714
      %3716 = vrot.lane.b32.xlu0 %v3617, 96
      %v3717 = vpop.permute.xlu0 %3716
      %3718 = vrot.lane.b32.xlu0 %v3618, 96
      %v3719 = vpop.permute.xlu0 %3718
      %3720 = vrot.lane.b32.xlu0 %v3619, 96
      %v3721 = vpop.permute.xlu0 %3720
      %3722 = vrot.lane.b32.xlu0 %v3620, 96
      %v3723 = vpop.permute.xlu0 %3722
      %3724 = vrot.lane.b32.xlu0 %v3621, 96
      %v3725 = vpop.permute.xlu0 %3724
      %3726 = vrot.lane.b32.xlu0 %v3622, 96
      %v3727 = vpop.permute.xlu0 %3726
      %3728 = vrot.lane.b32.xlu0 %v3623, 96
      %v3729 = vpop.permute.xlu0 %3728
      %3730 = vrot.lane.b32.xlu0 %v3624, 96
      %v3731 = vpop.permute.xlu0 %3730
      %3732 = vrot.lane.b32.xlu0 %v3625, 96
      %v3733 = vpop.permute.xlu0 %3732
      %3734 = vrot.lane.b32.xlu0 %v3626, 96
      %v3735 = vpop.permute.xlu0 %3734
      %3736 = vrot.lane.b32.xlu0 %v3627, 96
      %v3737 = vpop.permute.xlu0 %3736
      %3738 = vrot.lane.b32.xlu0 %v3628, 96
      %v3739 = vpop.permute.xlu0 %3738
      %3740 = vrot.lane.b32.xlu0 %v3629, 96
      %v3741 = vpop.permute.xlu0 %3740
      %3742 = vrot.lane.b32.xlu0 %v3630, 96
      %v3743 = vpop.permute.xlu0 %3742
      %3744 = vrot.lane.b32.xlu0 %v3631, 96
      %v3745 = vpop.permute.xlu0 %3744
      %3746 = vrot.lane.b32.xlu0 %v3632, 96
      %v3747 = vpop.permute.xlu0 %3746
      %3748 = vrot.lane.b32.xlu0 %v3633, 96
      %v3749 = vpop.permute.xlu0 %3748
      %3750 = vrot.lane.b32.xlu0 %v3634, 96
      %v3751 = vpop.permute.xlu0 %3750
      %3752 = vrot.lane.b32.xlu0 %v3635, 96
      %v3753 = vpop.permute.xlu0 %3752
      %3754 = vrot.lane.b32.xlu0 %v3636, 96
      %v3755 = vpop.permute.xlu0 %3754
      %3756 = vrot.lane.b32.xlu0 %v3637, 96
      %v3757 = vpop.permute.xlu0 %3756
      %3758 = vrot.lane.b32.xlu0 %v3638, 96
      %v3759 = vpop.permute.xlu0 %3758
      %3760 = vrot.lane.b32.xlu0 %v3639, 96
      %v3761 = vpop.permute.xlu0 %3760
      %3762 = vrot.lane.b32.xlu0 %v3640, 96
      %v3763 = vpop.permute.xlu0 %3762
      %3764 = vrot.lane.b32.xlu0 %v3641, 96
      %v3765 = vpop.permute.xlu0 %3764
      %3766 = vrot.lane.b32.xlu0 %v3642, 96
      %v3767 = vpop.permute.xlu0 %3766
      %3768 = vrot.lane.b32.xlu0 %v3643, 96
      %v3769 = vpop.permute.xlu0 %3768
      %3770 = vrot.lane.b32.xlu0 %v3644, 96
      %v3771 = vpop.permute.xlu0 %3770
      %3772 = vrot.lane.b32.xlu0 %v3645, 96
      %v3773 = vpop.permute.xlu0 %3772
      %v3838 = vsel %vm1098, %v3454, %v3647
      %v3839 = vsel %vm1098, %v3470, %v3649
      %v3840 = vsel %vm1098, %v3471, %v3651
      %v3841 = vsel %vm1098, %v3472, %v3653
      %v3842 = vsel %vm1098, %v3473, %v3655
      %v3843 = vsel %vm1098, %v3474, %v3657
      %v3844 = vsel %vm1098, %v3475, %v3659
      %v3845 = vsel %vm1098, %v3476, %v3661
      %v3846 = vsel %vm1098, %v3455, %v3663
      %v3847 = vsel %vm1098, %v3477, %v3665
      %v3848 = vsel %vm1098, %v3478, %v3667
      %v3849 = vsel %vm1098, %v3479, %v3669
      %v3850 = vsel %vm1098, %v3480, %v3671
      %v3851 = vsel %vm1098, %v3481, %v3673
      %v3852 = vsel %vm1098, %v3482, %v3675
      %v3853 = vsel %vm1098, %v3483, %v3677
      %v3854 = vsel %vm1098, %v3456, %v3679
      %v3855 = vsel %vm1098, %v3484, %v3681
      %v3856 = vsel %vm1098, %v3485, %v3683
      %v3857 = vsel %vm1098, %v3486, %v3685
      %v3858 = vsel %vm1098, %v3487, %v3687
      %v3859 = vsel %vm1098, %v3488, %v3689
      %v3860 = vsel %vm1098, %v3489, %v3691
      %v3861 = vsel %vm1098, %v3490, %v3693
      %v3862 = vsel %vm1098, %v3457, %v3695
      %v3863 = vsel %vm1098, %v3491, %v3697
      %v3864 = vsel %vm1098, %v3492, %v3699
      %v3865 = vsel %vm1098, %v3493, %v3701
      %v3866 = vsel %vm1098, %v3494, %v3703
      %v3867 = vsel %vm1098, %v3495, %v3705
      %v3868 = vsel %vm1098, %v3496, %v3707
      %v3869 = vsel %vm1098, %v3497, %v3709
      %v3870 = vsel %vm1098, %v3458, %v3711
      %v3871 = vsel %vm1098, %v3498, %v3713
      %v3872 = vsel %vm1098, %v3499, %v3715
      %v3873 = vsel %vm1098, %v3500, %v3717
      %v3874 = vsel %vm1098, %v3501, %v3719
      %v3875 = vsel %vm1098, %v3502, %v3721
      %v3876 = vsel %vm1098, %v3503, %v3723
      %v3877 = vsel %vm1098, %v3504, %v3725
      %v3878 = vsel %vm1098, %v3459, %v3727
      %v3879 = vsel %vm1098, %v3505, %v3729
      %v3880 = vsel %vm1098, %v3506, %v3731
      %v3881 = vsel %vm1098, %v3507, %v3733
      %v3882 = vsel %vm1098, %v3508, %v3735
      %v3883 = vsel %vm1098, %v3509, %v3737
      %v3884 = vsel %vm1098, %v3510, %v3739
      %v3885 = vsel %vm1098, %v3511, %v3741
      %v3886 = vsel %vm1098, %v3460, %v3743
      %v3887 = vsel %vm1098, %v3512, %v3745
      %v3888 = vsel %vm1098, %v3513, %v3747
      %v3889 = vsel %vm1098, %v3514, %v3749
      %v3890 = vsel %vm1098, %v3515, %v3751
      %v3891 = vsel %vm1098, %v3516, %v3753
      %v3892 = vsel %vm1098, %v3517, %v3755
      %v3893 = vsel %vm1098, %v3518, %v3757
      %v3894 = vsel %vm1098, %v3461, %v3759
      %v3895 = vsel %vm1098, %v3519, %v3761
      %v3896 = vsel %vm1098, %v3520, %v3763
      %v3897 = vsel %vm1098, %v3521, %v3765
      %v3898 = vsel %vm1098, %v3522, %v3767
      %v3899 = vsel %vm1098, %v3523, %v3769
      %v3900 = vsel %vm1098, %v3524, %v3771
      %v3901 = vsel %vm1098, %v3525, %v3773
      %s3966 = scalar_lea.vmem [#allocation1], 1
      %3967 = vst [vmem:[%s3966] ss:$4 sm:$0xff] %v3838
      %s3968 = scalar_lea.vmem [#allocation1], 2
      %3969 = vst [vmem:[%s3968] ss:$4 sm:$0xff] %v3839
      %s3970 = scalar_lea.vmem [#allocation1], 3
      %3971 = vst [vmem:[%s3970] ss:$4 sm:$0xff] %v3840
      %s3972 = scalar_lea.vmem [#allocation1], 32
      %3973 = vst [vmem:[%s3972] ss:$4 sm:$0xff] %v3841
      %s3974 = scalar_lea.vmem [#allocation1], 33
      %3975 = vst [vmem:[%s3974] ss:$4 sm:$0xff] %v3842
      %s3976 = scalar_lea.vmem [#allocation1], 34
      %3977 = vst [vmem:[%s3976] ss:$4 sm:$0xff] %v3843
      %s3978 = scalar_lea.vmem [#allocation1], 35
      %3979 = vst [vmem:[%s3978] ss:$4 sm:$0xff] %v3844
      %v3980 = vld.sshfl [vmem:[#allocation1] sm:$0xff pattern:$0x73625140]
      %v3981 = vld.sshfl [vmem:[#allocation1 + $0x20] sm:$0xff pattern:$0x73625140]
      %3982 = vst [vmem:[#allocation1] ss:$4 sm:$0xff] %v3845
      %v3983 = vld.sshfl [vmem:[#allocation1] sm:$0xff pattern:$0x73625140]
      %3984 = vst [vmem:[%s3974] ss:$4 sm:$0xff] %v3846
      %3985 = vst [vmem:[%s3976] ss:$4 sm:$0xff] %v3847
      %3986 = vst [vmem:[%s3978] ss:$4 sm:$0xff] %v3848
      %v3987 = vld.sshfl [vmem:[#allocation1 + $0x20] sm:$0xff pattern:$0x73625140]
      %3988 = vst [vmem:[#allocation1] ss:$4 sm:$0xff] %v3849
      %3989 = vst [vmem:[%s3966] ss:$4 sm:$0xff] %v3850
      %3990 = vst [vmem:[%s3968] ss:$4 sm:$0xff] %v3851
      %3991 = vst [vmem:[%s3970] ss:$4 sm:$0xff] %v3852
      %3992 = vst [vmem:[%s3972] ss:$4 sm:$0xff] %v3853
      %v3993 = vld.sshfl [vmem:[#allocation1] sm:$0xff pattern:$0x73625140]
      %v3994 = vld.sshfl [vmem:[#allocation1 + $0x20] sm:$0xff pattern:$0x73625140]
      %3995 = vst [vmem:[%s3966] ss:$4 sm:$0xff] %v3854
      %3996 = vst [vmem:[%s3968] ss:$4 sm:$0xff] %v3855
      %3997 = vst [vmem:[%s3970] ss:$4 sm:$0xff] %v3856
      %3998 = vst [vmem:[%s3972] ss:$4 sm:$0xff] %v3857
      %3999 = vst [vmem:[%s3974] ss:$4 sm:$0xff] %v3858
      %4000 = vst [vmem:[%s3976] ss:$4 sm:$0xff] %v3859
      %4001 = vst [vmem:[%s3978] ss:$4 sm:$0xff] %v3860
      %v4002 = vld.sshfl [vmem:[#allocation1] sm:$0xff pattern:$0x73625140]
      %v4003 = vld.sshfl [vmem:[#allocation1 + $0x20] sm:$0xff pattern:$0x73625140]
      %4004 = vst [vmem:[#allocation1] ss:$4 sm:$0xff] %v3861
      %v4005 = vld.sshfl [vmem:[#allocation1] sm:$0xff pattern:$0x73625140]
      %4006 = vst [vmem:[%s3974] ss:$4 sm:$0xff] %v3862
      %4007 = vst [vmem:[%s3976] ss:$4 sm:$0xff] %v3863
      %4008 = vst [vmem:[%s3978] ss:$4 sm:$0xff] %v3864
      %v4009 = vld.sshfl [vmem:[#allocation1 + $0x20] sm:$0xff pattern:$0x73625140]
      %4010 = vst [vmem:[#allocation1] ss:$4 sm:$0xff] %v3865
      %4011 = vst [vmem:[%s3966] ss:$4 sm:$0xff] %v3866
      %4012 = vst [vmem:[%s3968] ss:$4 sm:$0xff] %v3867
      %4013 = vst [vmem:[%s3970] ss:$4 sm:$0xff] %v3868
      %4014 = vst [vmem:[%s3972] ss:$4 sm:$0xff] %v3869
      %v4015 = vld.sshfl [vmem:[#allocation1] sm:$0xff pattern:$0x73625140]
      %v4016 = vld.sshfl [vmem:[#allocation1 + $0x20] sm:$0xff pattern:$0x73625140]
      %4017 = vst [vmem:[%s3966] ss:$4 sm:$0xff] %v3870
      %4018 = vst [vmem:[%s3968] ss:$4 sm:$0xff] %v3871
      %4019 = vst [vmem:[%s3970] ss:$4 sm:$0xff] %v3872
      %4020 = vst [vmem:[%s3972] ss:$4 sm:$0xff] %v3873
      %4021 = vst [vmem:[%s3974] ss:$4 sm:$0xff] %v3874
      %4022 = vst [vmem:[%s3976] ss:$4 sm:$0xff] %v3875
      %4023 = vst [vmem:[%s3978] ss:$4 sm:$0xff] %v3876
      %v4024 = vld.sshfl [vmem:[#allocation1] sm:$0xff pattern:$0x73625140]
      %v4025 = vld.sshfl [vmem:[#allocation1 + $0x20] sm:$0xff pattern:$0x73625140]
      %4026 = vst [vmem:[#allocation1] ss:$4 sm:$0xff] %v3877
      %v4027 = vld.sshfl [vmem:[#allocation1] sm:$0xff pattern:$0x73625140]
      %4028 = vst [vmem:[%s3974] ss:$4 sm:$0xff] %v3878
      %4029 = vst [vmem:[%s3976] ss:$4 sm:$0xff] %v3879
      %4030 = vst [vmem:[%s3978] ss:$4 sm:$0xff] %v3880
      %v4031 = vld.sshfl [vmem:[#allocation1 + $0x20] sm:$0xff pattern:$0x73625140]
      %4032 = vst [vmem:[#allocation1] ss:$4 sm:$0xff] %v3881
      %4033 = vst [vmem:[%s3966] ss:$4 sm:$0xff] %v3882
      %4034 = vst [vmem:[%s3968] ss:$4 sm:$0xff] %v3883
      %4035 = vst [vmem:[%s3970] ss:$4 sm:$0xff] %v3884
      %4036 = vst [vmem:[%s3972] ss:$4 sm:$0xff] %v3885
      %v4037 = vld.sshfl [vmem:[#allocation1] sm:$0xff pattern:$0x73625140]
      %v4038 = vld.sshfl [vmem:[#allocation1 + $0x20] sm:$0xff pattern:$0x73625140]
      %4039 = vst [vmem:[%s3966] ss:$4 sm:$0xff] %v3886
      %4040 = vst [vmem:[%s3968] ss:$4 sm:$0xff] %v3887
      %4041 = vst [vmem:[%s3970] ss:$4 sm:$0xff] %v3888
      %4042 = vst [vmem:[%s3972] ss:$4 sm:$0xff] %v3889
      %4043 = vst [vmem:[%s3974] ss:$4 sm:$0xff] %v3890
      %4044 = vst [vmem:[%s3976] ss:$4 sm:$0xff] %v3891
      %4045 = vst [vmem:[%s3978] ss:$4 sm:$0xff] %v3892
      %v4046 = vld.sshfl [vmem:[#allocation1] sm:$0xff pattern:$0x73625140]
      %v4047 = vld.sshfl [vmem:[#allocation1 + $0x20] sm:$0xff pattern:$0x73625140]
      %4048 = vst [vmem:[#allocation1] ss:$4 sm:$0xff] %v3893
      %v4049 = vld.sshfl [vmem:[#allocation1] sm:$0xff pattern:$0x73625140]
      %4050 = vst [vmem:[%s3974] ss:$4 sm:$0xff] %v3894
      %4051 = vst [vmem:[%s3976] ss:$4 sm:$0xff] %v3895
      %4052 = vst [vmem:[%s3978] ss:$4 sm:$0xff] %v3896
      %v4053 = vld.sshfl [vmem:[#allocation1 + $0x20] sm:$0xff pattern:$0x73625140]
      %4054 = vst [vmem:[#allocation1] ss:$4 sm:$0xff] %v3897
      %4055 = vst [vmem:[%s3966] ss:$4 sm:$0xff] %v3898
      %4056 = vst [vmem:[%s3968] ss:$4 sm:$0xff] %v3899
      %4057 = vst [vmem:[%s3970] ss:$4 sm:$0xff] %v3900
      %4058 = vst [vmem:[%s3972] ss:$4 sm:$0xff] %v3901
      %v4059 = vld.sshfl [vmem:[#allocation1] sm:$0xff pattern:$0x73625140]
      %v4060 = vld.sshfl [vmem:[#allocation1 + $0x20] sm:$0xff pattern:$0x73625140]
      %v4084 = vsel %vm1100, 0.0, %v3980
      %v4085 = vsel %vm1100, 0.0, %v3987
      %v4086 = vsel %vm1100, 0.0, %v4002
      %v4087 = vsel %vm1100, 0.0, %v4009
      %v4088 = vsel %vm1100, 0.0, %v4024
      %v4089 = vsel %vm1100, 0.0, %v4031
      %v4090 = vsel %vm1100, 0.0, %v4046
      %v4091 = vsel %vm1100, 0.0, %v4053
      %v4092 = vsel %vm1100, %v3983, 0.0
      %v4093 = vsel %vm1100, %v3994, 0.0
      %v4094 = vsel %vm1100, %v4005, 0.0
      %v4095 = vsel %vm1100, %v4016, 0.0
      %v4096 = vsel %vm1100, %v4027, 0.0
      %v4097 = vsel %vm1100, %v4038, 0.0
      %v4098 = vsel %vm1100, %v4049, 0.0
      %v4099 = vsel %vm1100, %v4060, 0.0
      %v4114 = vrot.slane %v4084, 1
      %v4115 = vrot.slane %v3981, 1
      %v4116 = vsel %vm1110, %v4114, %v4115
      %v4117 = vrot.slane %v4092, 1
      %v4118 = vsel %vm1110, %v4115, %v4117
      %v4119 = vrot.slane %v4085, 1
      %v4120 = vrot.slane %v3993, 1
      %v4121 = vsel %vm1110, %v4119, %v4120
      %v4122 = vrot.slane %v4093, 1
      %v4123 = vsel %vm1110, %v4120, %v4122
      %v4124 = vrot.slane %v4086, 1
      %v4125 = vrot.slane %v4003, 1
      %v4126 = vsel %vm1110, %v4124, %v4125
      %v4127 = vrot.slane %v4094, 1
      %v4128 = vsel %vm1110, %v4125, %v4127
      %v4129 = vrot.slane %v4087, 1
      %v4130 = vrot.slane %v4015, 1
      %v4131 = vsel %vm1110, %v4129, %v4130
      %v4132 = vrot.slane %v4095, 1
      %v4133 = vsel %vm1110, %v4130, %v4132
      %v4134 = vrot.slane %v4088, 1
      %v4135 = vrot.slane %v4025, 1
      %v4136 = vsel %vm1110, %v4134, %v4135
      %v4137 = vrot.slane %v4096, 1
      %v4138 = vsel %vm1110, %v4135, %v4137
      %v4139 = vrot.slane %v4089, 1
      %v4140 = vrot.slane %v4037, 1
      %v4141 = vsel %vm1110, %v4139, %v4140
      %v4142 = vrot.slane %v4097, 1
      %v4143 = vsel %vm1110, %v4140, %v4142
      %v4144 = vrot.slane %v4090, 1
      %v4145 = vrot.slane %v4047, 1
      %v4146 = vsel %vm1110, %v4144, %v4145
      %v4147 = vrot.slane %v4098, 1
      %v4148 = vsel %vm1110, %v4145, %v4147
      %4149 = vrot.lane.b32.xlu0 %v2969, 32
      %v4150 = vpop.permute.xlu0 %4149
      %4151 = vrot.lane.b32.xlu0 %v4116, 32
      %v4152 = vpop.permute.xlu0 %4151
      %4153 = vrot.lane.b32.xlu0 %v4118, 32
      %v4154 = vpop.permute.xlu0 %4153
      %4155 = vrot.lane.b32.xlu0 %v4121, 32
      %v4156 = vpop.permute.xlu0 %4155
      %4157 = vrot.lane.b32.xlu0 %v4123, 32
      %v4158 = vpop.permute.xlu0 %4157
      %4159 = vrot.lane.b32.xlu0 %v4126, 32
      %v4160 = vpop.permute.xlu0 %4159
      %4161 = vrot.lane.b32.xlu0 %v4128, 32
      %v4162 = vpop.permute.xlu0 %4161
      %4163 = vrot.lane.b32.xlu0 %v4131, 32
      %v4164 = vpop.permute.xlu0 %4163
      %4165 = vrot.lane.b32.xlu0 %v4133, 32
      %v4166 = vpop.permute.xlu0 %4165
      %4167 = vrot.lane.b32.xlu0 %v4136, 32
      %v4168 = vpop.permute.xlu0 %4167
      %4169 = vrot.lane.b32.xlu0 %v4138, 32
      %v4170 = vpop.permute.xlu0 %4169
      %4171 = vrot.lane.b32.xlu0 %v4141, 32
      %v4172 = vpop.permute.xlu0 %4171
      %4173 = vrot.lane.b32.xlu0 %v4143, 32
      %v4174 = vpop.permute.xlu0 %4173
      %4175 = vrot.lane.b32.xlu0 %v4146, 32
      %v4176 = vpop.permute.xlu0 %4175
      %4177 = vrot.lane.b32.xlu0 %v4148, 32
      %v4178 = vpop.permute.xlu0 %4177
      %v4194 = vrot.slane %v4084, 2
      %v4195 = vrot.slane %v3981, 2
      %v4196 = vsel %vm1108, %v4194, %v4195
      %v4197 = vrot.slane %v4092, 2
      %v4198 = vsel %vm1108, %v4195, %v4197
      %v4199 = vrot.slane %v4085, 2
      %v4200 = vrot.slane %v3993, 2
      %v4201 = vsel %vm1108, %v4199, %v4200
      %v4202 = vrot.slane %v4093, 2
      %v4203 = vsel %vm1108, %v4200, %v4202
      %v4204 = vrot.slane %v4086, 2
      %v4205 = vrot.slane %v4003, 2
      %v4206 = vsel %vm1108, %v4204, %v4205
      %v4207 = vrot.slane %v4094, 2
      %v4208 = vsel %vm1108, %v4205, %v4207
      %v4209 = vrot.slane %v4087, 2
      %v4210 = vrot.slane %v4015, 2
      %v4211 = vsel %vm1108, %v4209, %v4210
      %v4212 = vrot.slane %v4095, 2
      %v4213 = vsel %vm1108, %v4210, %v4212
      %v4214 = vrot.slane %v4088, 2
      %v4215 = vrot.slane %v4025, 2
      %v4216 = vsel %vm1108, %v4214, %v4215
      %v4217 = vrot.slane %v4096, 2
      %v4218 = vsel %vm1108, %v4215, %v4217
      %v4219 = vrot.slane %v4089, 2
      %v4220 = vrot.slane %v4037, 2
      %v4221 = vsel %vm1108, %v4219, %v4220
      %v4222 = vrot.slane %v4097, 2
      %v4223 = vsel %vm1108, %v4220, %v4222
      %v4224 = vrot.slane %v4090, 2
      %v4225 = vrot.slane %v4047, 2
      %v4226 = vsel %vm1108, %v4224, %v4225
      %v4227 = vrot.slane %v4098, 2
      %v4228 = vsel %vm1108, %v4225, %v4227
      %4229 = vrot.lane.b32.xlu0 %v3015, 64
      %v4230 = vpop.permute.xlu0 %4229
      %4231 = vrot.lane.b32.xlu0 %v4196, 64
      %v4232 = vpop.permute.xlu0 %4231
      %4233 = vrot.lane.b32.xlu0 %v4198, 64
      %v4234 = vpop.permute.xlu0 %4233
      %4235 = vrot.lane.b32.xlu0 %v4201, 64
      %v4236 = vpop.permute.xlu0 %4235
      %4237 = vrot.lane.b32.xlu0 %v4203, 64
      %v4238 = vpop.permute.xlu0 %4237
      %4239 = vrot.lane.b32.xlu0 %v4206, 64
      %v4240 = vpop.permute.xlu0 %4239
      %4241 = vrot.lane.b32.xlu0 %v4208, 64
      %v4242 = vpop.permute.xlu0 %4241
      %4243 = vrot.lane.b32.xlu0 %v4211, 64
      %v4244 = vpop.permute.xlu0 %4243
      %4245 = vrot.lane.b32.xlu0 %v4213, 64
      %v4246 = vpop.permute.xlu0 %4245
      %4247 = vrot.lane.b32.xlu0 %v4216, 64
      %v4248 = vpop.permute.xlu0 %4247
      %4249 = vrot.lane.b32.xlu0 %v4218, 64
      %v4250 = vpop.permute.xlu0 %4249
      %4251 = vrot.lane.b32.xlu0 %v4221, 64
      %v4252 = vpop.permute.xlu0 %4251
      %4253 = vrot.lane.b32.xlu0 %v4223, 64
      %v4254 = vpop.permute.xlu0 %4253
      %4255 = vrot.lane.b32.xlu0 %v4226, 64
      %v4256 = vpop.permute.xlu0 %4255
      %4257 = vrot.lane.b32.xlu0 %v4228, 64
      %v4258 = vpop.permute.xlu0 %4257
      %v4274 = vrot.slane 0.0, 3
      %v4275 = vsel %vm1106, %v4274, %v4274
      %v4276 = vrot.slane %v4084, 3
      %v4277 = vrot.slane %v3981, 3
      %v4278 = vsel %vm1106, %v4276, %v4277
      %v4279 = vrot.slane %v4092, 3
      %v4280 = vsel %vm1106, %v4277, %v4279
      %v4281 = vrot.slane %v4085, 3
      %v4282 = vrot.slane %v3993, 3
      %v4283 = vsel %vm1106, %v4281, %v4282
      %v4284 = vrot.slane %v4093, 3
      %v4285 = vsel %vm1106, %v4282, %v4284
      %v4286 = vrot.slane %v4086, 3
      %v4287 = vrot.slane %v4003, 3
      %v4288 = vsel %vm1106, %v4286, %v4287
      %v4289 = vrot.slane %v4094, 3
      %v4290 = vsel %vm1106, %v4287, %v4289
      %v4291 = vrot.slane %v4087, 3
      %v4292 = vrot.slane %v4015, 3
      %v4293 = vsel %vm1106, %v4291, %v4292
      %v4294 = vrot.slane %v4095, 3
      %v4295 = vsel %vm1106, %v4292, %v4294
      %v4296 = vrot.slane %v4088, 3
      %v4297 = vrot.slane %v4025, 3
      %v4298 = vsel %vm1106, %v4296, %v4297
      %v4299 = vrot.slane %v4096, 3
      %v4300 = vsel %vm1106, %v4297, %v4299
      %v4301 = vrot.slane %v4089, 3
      %v4302 = vrot.slane %v4037, 3
      %v4303 = vsel %vm1106, %v4301, %v4302
      %v4304 = vrot.slane %v4097, 3
      %v4305 = vsel %vm1106, %v4302, %v4304
      %v4306 = vrot.slane %v4090, 3
      %v4307 = vrot.slane %v4047, 3
      %v4308 = vsel %vm1106, %v4306, %v4307
      %v4309 = vrot.slane %v4098, 3
      %v4310 = vsel %vm1106, %v4307, %v4309
      %4311 = vrot.lane.b32.xlu0 %v4275, 96
      %v4312 = vpop.permute.xlu0 %4311
      %4313 = vrot.lane.b32.xlu0 %v4278, 96
      %v4314 = vpop.permute.xlu0 %4313
      %4315 = vrot.lane.b32.xlu0 %v4280, 96
      %v4316 = vpop.permute.xlu0 %4315
      %4317 = vrot.lane.b32.xlu0 %v4283, 96
      %v4318 = vpop.permute.xlu0 %4317
      %4319 = vrot.lane.b32.xlu0 %v4285, 96
      %v4320 = vpop.permute.xlu0 %4319
      %4321 = vrot.lane.b32.xlu0 %v4288, 96
      %v4322 = vpop.permute.xlu0 %4321
      %4323 = vrot.lane.b32.xlu0 %v4290, 96
      %v4324 = vpop.permute.xlu0 %4323
      %4325 = vrot.lane.b32.xlu0 %v4293, 96
      %v4326 = vpop.permute.xlu0 %4325
      %4327 = vrot.lane.b32.xlu0 %v4295, 96
      %v4328 = vpop.permute.xlu0 %4327
      %4329 = vrot.lane.b32.xlu0 %v4298, 96
      %v4330 = vpop.permute.xlu0 %4329
      %4331 = vrot.lane.b32.xlu0 %v4300, 96
      %v4332 = vpop.permute.xlu0 %4331
      %4333 = vrot.lane.b32.xlu0 %v4303, 96
      %v4334 = vpop.permute.xlu0 %4333
      %4335 = vrot.lane.b32.xlu0 %v4305, 96
      %v4336 = vpop.permute.xlu0 %4335
      %4337 = vrot.lane.b32.xlu0 %v4308, 96
      %v4338 = vpop.permute.xlu0 %4337
      %4339 = vrot.lane.b32.xlu0 %v4310, 96
      %v4340 = vpop.permute.xlu0 %4339
      %v4356 = vrot.slane 0.0, 4
      %v4357 = vsel %vm1104, %v4356, %v4356
      %v4358 = vrot.slane %v4084, 4
      %v4359 = vrot.slane %v3981, 4
      %v4360 = vsel %vm1104, %v4358, %v4359
      %v4361 = vrot.slane %v4092, 4
      %v4362 = vsel %vm1104, %v4359, %v4361
      %v4363 = vrot.slane %v4085, 4
      %v4364 = vrot.slane %v3993, 4
      %v4365 = vsel %vm1104, %v4363, %v4364
      %v4366 = vrot.slane %v4093, 4
      %v4367 = vsel %vm1104, %v4364, %v4366
      %v4368 = vrot.slane %v4086, 4
      %v4369 = vrot.slane %v4003, 4
      %v4370 = vsel %vm1104, %v4368, %v4369
      %v4371 = vrot.slane %v4094, 4
      %v4372 = vsel %vm1104, %v4369, %v4371
      %v4373 = vrot.slane %v4087, 4
      %v4374 = vrot.slane %v4015, 4
      %v4375 = vsel %vm1104, %v4373, %v4374
      %v4376 = vrot.slane %v4095, 4
      %v4377 = vsel %vm1104, %v4374, %v4376
      %v4378 = vrot.slane %v4088, 4
      %v4379 = vrot.slane %v4025, 4
      %v4380 = vsel %vm1104, %v4378, %v4379
      %v4381 = vrot.slane %v4096, 4
      %v4382 = vsel %vm1104, %v4379, %v4381
      %v4383 = vrot.slane %v4089, 4
      %v4384 = vrot.slane %v4037, 4
      %v4385 = vsel %vm1104, %v4383, %v4384
      %v4386 = vrot.slane %v4097, 4
      %v4387 = vsel %vm1104, %v4384, %v4386
      %v4388 = vrot.slane %v4090, 4
      %v4389 = vrot.slane %v4047, 4
      %v4390 = vsel %vm1104, %v4388, %v4389
      %v4391 = vrot.slane %v4098, 4
      %v4392 = vsel %vm1104, %v4389, %v4391
      %4409 = vrot.lane.b32.xlu0 %v4084, 32
      %v4410 = vpop.permute.xlu0 %4409
      %4411 = vrot.lane.b32.xlu0 %v3981, 32
      %v4412 = vpop.permute.xlu0 %4411
      %4413 = vrot.lane.b32.xlu0 %v4085, 32
      %v4414 = vpop.permute.xlu0 %4413
      %4415 = vrot.lane.b32.xlu0 %v3993, 32
      %v4416 = vpop.permute.xlu0 %4415
      %4417 = vrot.lane.b32.xlu0 %v4086, 32
      %v4418 = vpop.permute.xlu0 %4417
      %4419 = vrot.lane.b32.xlu0 %v4003, 32
      %v4420 = vpop.permute.xlu0 %4419
      %4421 = vrot.lane.b32.xlu0 %v4087, 32
      %v4422 = vpop.permute.xlu0 %4421
      %4423 = vrot.lane.b32.xlu0 %v4015, 32
      %v4424 = vpop.permute.xlu0 %4423
      %4425 = vrot.lane.b32.xlu0 %v4088, 32
      %v4426 = vpop.permute.xlu0 %4425
      %4427 = vrot.lane.b32.xlu0 %v4025, 32
      %v4428 = vpop.permute.xlu0 %4427
      %4429 = vrot.lane.b32.xlu0 %v4089, 32
      %v4430 = vpop.permute.xlu0 %4429
      %4431 = vrot.lane.b32.xlu0 %v4037, 32
      %v4432 = vpop.permute.xlu0 %4431
      %4433 = vrot.lane.b32.xlu0 %v4090, 32
      %v4434 = vpop.permute.xlu0 %4433
      %4435 = vrot.lane.b32.xlu0 %v4047, 32
      %v4436 = vpop.permute.xlu0 %4435
      %4437 = vrot.lane.b32.xlu0 %v4091, 32
      %v4438 = vpop.permute.xlu0 %4437
      %4439 = vrot.lane.b32.xlu0 %v4059, 32
      %v4440 = vpop.permute.xlu0 %4439
      %v4458 = vrot.slane %v4091, 1
      %v4459 = vrot.slane %v4059, 1
      %v4460 = vsel %vm1110, %v4458, %v4459
      %v4461 = vrot.slane %v4099, 1
      %v4462 = vsel %vm1110, %v4459, %v4461
      %4463 = vrot.lane.b32.xlu0 %v4116, 64
      %v4464 = vpop.permute.xlu0 %4463
      %4465 = vrot.lane.b32.xlu0 %v4118, 64
      %v4466 = vpop.permute.xlu0 %4465
      %4467 = vrot.lane.b32.xlu0 %v4121, 64
      %v4468 = vpop.permute.xlu0 %4467
      %4469 = vrot.lane.b32.xlu0 %v4123, 64
      %v4470 = vpop.permute.xlu0 %4469
      %4471 = vrot.lane.b32.xlu0 %v4126, 64
      %v4472 = vpop.permute.xlu0 %4471
      %4473 = vrot.lane.b32.xlu0 %v4128, 64
      %v4474 = vpop.permute.xlu0 %4473
      %4475 = vrot.lane.b32.xlu0 %v4131, 64
      %v4476 = vpop.permute.xlu0 %4475
      %4477 = vrot.lane.b32.xlu0 %v4133, 64
      %v4478 = vpop.permute.xlu0 %4477
      %4479 = vrot.lane.b32.xlu0 %v4136, 64
      %v4480 = vpop.permute.xlu0 %4479
      %4481 = vrot.lane.b32.xlu0 %v4138, 64
      %v4482 = vpop.permute.xlu0 %4481
      %4483 = vrot.lane.b32.xlu0 %v4141, 64
      %v4484 = vpop.permute.xlu0 %4483
      %4485 = vrot.lane.b32.xlu0 %v4143, 64
      %v4486 = vpop.permute.xlu0 %4485
      %4487 = vrot.lane.b32.xlu0 %v4146, 64
      %v4488 = vpop.permute.xlu0 %4487
      %4489 = vrot.lane.b32.xlu0 %v4148, 64
      %v4490 = vpop.permute.xlu0 %4489
      %4491 = vrot.lane.b32.xlu0 %v4460, 64
      %v4492 = vpop.permute.xlu0 %4491
      %4493 = vrot.lane.b32.xlu0 %v4462, 64
      %v4494 = vpop.permute.xlu0 %4493
      %v4511 = vrot.slane %v4091, 2
      %v4512 = vrot.slane %v4059, 2
      %v4513 = vsel %vm1108, %v4511, %v4512
      %v4514 = vrot.slane %v4099, 2
      %v4515 = vsel %vm1108, %v4512, %v4514
      %4516 = vrot.lane.b32.xlu0 %v4196, 96
      %v4517 = vpop.permute.xlu0 %4516
      %4518 = vrot.lane.b32.xlu0 %v4198, 96
      %v4519 = vpop.permute.xlu0 %4518
      %4520 = vrot.lane.b32.xlu0 %v4201, 96
      %v4521 = vpop.permute.xlu0 %4520
      %4522 = vrot.lane.b32.xlu0 %v4203, 96
      %v4523 = vpop.permute.xlu0 %4522
      %4524 = vrot.lane.b32.xlu0 %v4206, 96
      %v4525 = vpop.permute.xlu0 %4524
      %4526 = vrot.lane.b32.xlu0 %v4208, 96
      %v4527 = vpop.permute.xlu0 %4526
      %4528 = vrot.lane.b32.xlu0 %v4211, 96
      %v4529 = vpop.permute.xlu0 %4528
      %4530 = vrot.lane.b32.xlu0 %v4213, 96
      %v4531 = vpop.permute.xlu0 %4530
      %4532 = vrot.lane.b32.xlu0 %v4216, 96
      %v4533 = vpop.permute.xlu0 %4532
      %4534 = vrot.lane.b32.xlu0 %v4218, 96
      %v4535 = vpop.permute.xlu0 %4534
      %4536 = vrot.lane.b32.xlu0 %v4221, 96
      %v4537 = vpop.permute.xlu0 %4536
      %4538 = vrot.lane.b32.xlu0 %v4223, 96
      %v4539 = vpop.permute.xlu0 %4538
      %4540 = vrot.lane.b32.xlu0 %v4226, 96
      %v4541 = vpop.permute.xlu0 %4540
      %4542 = vrot.lane.b32.xlu0 %v4228, 96
      %v4543 = vpop.permute.xlu0 %4542
      %4544 = vrot.lane.b32.xlu0 %v4513, 96
      %v4545 = vpop.permute.xlu0 %4544
      %4546 = vrot.lane.b32.xlu0 %v4515, 96
      %v4547 = vpop.permute.xlu0 %4546
      %v4564 = vrot.slane %v4091, 3
      %v4565 = vrot.slane %v4059, 3
      %v4566 = vsel %vm1106, %v4564, %v4565
      %v4567 = vrot.slane %v4099, 3
      %v4568 = vsel %vm1106, %v4565, %v4567
      %v4585 = vrot.slane %v4091, 4
      %v4586 = vrot.slane %v4059, 4
      %v4587 = vsel %vm1104, %v4585, %v4586
      %v4588 = vrot.slane %v4099, 4
      %v4589 = vsel %vm1104, %v4586, %v4588
      %4590 = vrot.lane.b32.xlu0 %v4360, 32
      %v4591 = vpop.permute.xlu0 %4590
      %4592 = vrot.lane.b32.xlu0 %v4362, 32
      %v4593 = vpop.permute.xlu0 %4592
      %4594 = vrot.lane.b32.xlu0 %v4365, 32
      %v4595 = vpop.permute.xlu0 %4594
      %4596 = vrot.lane.b32.xlu0 %v4367, 32
      %v4597 = vpop.permute.xlu0 %4596
      %4598 = vrot.lane.b32.xlu0 %v4370, 32
      %v4599 = vpop.permute.xlu0 %4598
      %4600 = vrot.lane.b32.xlu0 %v4372, 32
      %v4601 = vpop.permute.xlu0 %4600
      %4602 = vrot.lane.b32.xlu0 %v4375, 32
      %v4603 = vpop.permute.xlu0 %4602
      %4604 = vrot.lane.b32.xlu0 %v4377, 32
      %v4605 = vpop.permute.xlu0 %4604
      %4606 = vrot.lane.b32.xlu0 %v4380, 32
      %v4607 = vpop.permute.xlu0 %4606
      %4608 = vrot.lane.b32.xlu0 %v4382, 32
      %v4609 = vpop.permute.xlu0 %4608
      %4610 = vrot.lane.b32.xlu0 %v4385, 32
      %v4611 = vpop.permute.xlu0 %4610
      %4612 = vrot.lane.b32.xlu0 %v4387, 32
      %v4613 = vpop.permute.xlu0 %4612
      %4614 = vrot.lane.b32.xlu0 %v4390, 32
      %v4615 = vpop.permute.xlu0 %4614
      %4616 = vrot.lane.b32.xlu0 %v4392, 32
      %v4617 = vpop.permute.xlu0 %4616
      %4618 = vrot.lane.b32.xlu0 %v4587, 32
      %v4619 = vpop.permute.xlu0 %4618
      %4620 = vrot.lane.b32.xlu0 %v4589, 32
      %v4621 = vpop.permute.xlu0 %4620
      %4638 = vrot.lane.b32.xlu0 %v4085, 64
      %v4639 = vpop.permute.xlu0 %4638
      %4640 = vrot.lane.b32.xlu0 %v3993, 64
      %v4641 = vpop.permute.xlu0 %4640
      %4642 = vrot.lane.b32.xlu0 %v4086, 64
      %v4643 = vpop.permute.xlu0 %4642
      %4644 = vrot.lane.b32.xlu0 %v4003, 64
      %v4645 = vpop.permute.xlu0 %4644
      %4646 = vrot.lane.b32.xlu0 %v4087, 64
      %v4647 = vpop.permute.xlu0 %4646
      %4648 = vrot.lane.b32.xlu0 %v4015, 64
      %v4649 = vpop.permute.xlu0 %4648
      %4650 = vrot.lane.b32.xlu0 %v4088, 64
      %v4651 = vpop.permute.xlu0 %4650
      %4652 = vrot.lane.b32.xlu0 %v4025, 64
      %v4653 = vpop.permute.xlu0 %4652
      %4654 = vrot.lane.b32.xlu0 %v4089, 64
      %v4655 = vpop.permute.xlu0 %4654
      %4656 = vrot.lane.b32.xlu0 %v4037, 64
      %v4657 = vpop.permute.xlu0 %4656
      %4658 = vrot.lane.b32.xlu0 %v4090, 64
      %v4659 = vpop.permute.xlu0 %4658
      %4660 = vrot.lane.b32.xlu0 %v4047, 64
      %v4661 = vpop.permute.xlu0 %4660
      %4662 = vrot.lane.b32.xlu0 %v4091, 64
      %v4663 = vpop.permute.xlu0 %4662
      %4664 = vrot.lane.b32.xlu0 %v4059, 64
      %v4665 = vpop.permute.xlu0 %4664
      %4666 = vrot.lane.b32.xlu0 0.0, 64
      %v4667 = vpop.permute.xlu0 %4666
      %4683 = vrot.lane.b32.xlu0 %v4121, 96
      %v4684 = vpop.permute.xlu0 %4683
      %4685 = vrot.lane.b32.xlu0 %v4123, 96
      %v4686 = vpop.permute.xlu0 %4685
      %4687 = vrot.lane.b32.xlu0 %v4126, 96
      %v4688 = vpop.permute.xlu0 %4687
      %4689 = vrot.lane.b32.xlu0 %v4128, 96
      %v4690 = vpop.permute.xlu0 %4689
      %4691 = vrot.lane.b32.xlu0 %v4131, 96
      %v4692 = vpop.permute.xlu0 %4691
      %4693 = vrot.lane.b32.xlu0 %v4133, 96
      %v4694 = vpop.permute.xlu0 %4693
      %4695 = vrot.lane.b32.xlu0 %v4136, 96
      %v4696 = vpop.permute.xlu0 %4695
      %4697 = vrot.lane.b32.xlu0 %v4138, 96
      %v4698 = vpop.permute.xlu0 %4697
      %4699 = vrot.lane.b32.xlu0 %v4141, 96
      %v4700 = vpop.permute.xlu0 %4699
      %4701 = vrot.lane.b32.xlu0 %v4143, 96
      %v4702 = vpop.permute.xlu0 %4701
      %4703 = vrot.lane.b32.xlu0 %v4146, 96
      %v4704 = vpop.permute.xlu0 %4703
      %4705 = vrot.lane.b32.xlu0 %v4148, 96
      %v4706 = vpop.permute.xlu0 %4705
      %4707 = vrot.lane.b32.xlu0 %v4460, 96
      %v4708 = vpop.permute.xlu0 %4707
      %4709 = vrot.lane.b32.xlu0 %v4462, 96
      %v4710 = vpop.permute.xlu0 %4709
      %4711 = vrot.lane.b32.xlu0 %v2969, 96
      %v4712 = vpop.permute.xlu0 %4711
      %4742 = vrot.lane.b32.xlu0 %v4283, 32
      %v4743 = vpop.permute.xlu0 %4742
      %4744 = vrot.lane.b32.xlu0 %v4285, 32
      %v4745 = vpop.permute.xlu0 %4744
      %4746 = vrot.lane.b32.xlu0 %v4288, 32
      %v4747 = vpop.permute.xlu0 %4746
      %4748 = vrot.lane.b32.xlu0 %v4290, 32
      %v4749 = vpop.permute.xlu0 %4748
      %4750 = vrot.lane.b32.xlu0 %v4293, 32
      %v4751 = vpop.permute.xlu0 %4750
      %4752 = vrot.lane.b32.xlu0 %v4295, 32
      %v4753 = vpop.permute.xlu0 %4752
      %4754 = vrot.lane.b32.xlu0 %v4298, 32
      %v4755 = vpop.permute.xlu0 %4754
      %4756 = vrot.lane.b32.xlu0 %v4300, 32
      %v4757 = vpop.permute.xlu0 %4756
      %4758 = vrot.lane.b32.xlu0 %v4303, 32
      %v4759 = vpop.permute.xlu0 %4758
      %4760 = vrot.lane.b32.xlu0 %v4305, 32
      %v4761 = vpop.permute.xlu0 %4760
      %4762 = vrot.lane.b32.xlu0 %v4308, 32
      %v4763 = vpop.permute.xlu0 %4762
      %4764 = vrot.lane.b32.xlu0 %v4310, 32
      %v4765 = vpop.permute.xlu0 %4764
      %4766 = vrot.lane.b32.xlu0 %v4566, 32
      %v4767 = vpop.permute.xlu0 %4766
      %4768 = vrot.lane.b32.xlu0 %v4568, 32
      %v4769 = vpop.permute.xlu0 %4768
      %4770 = vrot.lane.b32.xlu0 %v4275, 32
      %v4771 = vpop.permute.xlu0 %4770
      %4787 = vrot.lane.b32.xlu0 %v4365, 64
      %v4788 = vpop.permute.xlu0 %4787
      %4789 = vrot.lane.b32.xlu0 %v4367, 64
      %v4790 = vpop.permute.xlu0 %4789
      %4791 = vrot.lane.b32.xlu0 %v4370, 64
      %v4792 = vpop.permute.xlu0 %4791
      %4793 = vrot.lane.b32.xlu0 %v4372, 64
      %v4794 = vpop.permute.xlu0 %4793
      %4795 = vrot.lane.b32.xlu0 %v4375, 64
      %v4796 = vpop.permute.xlu0 %4795
      %4797 = vrot.lane.b32.xlu0 %v4377, 64
      %v4798 = vpop.permute.xlu0 %4797
      %4799 = vrot.lane.b32.xlu0 %v4380, 64
      %v4800 = vpop.permute.xlu0 %4799
      %4801 = vrot.lane.b32.xlu0 %v4382, 64
      %v4802 = vpop.permute.xlu0 %4801
      %4803 = vrot.lane.b32.xlu0 %v4385, 64
      %v4804 = vpop.permute.xlu0 %4803
      %4805 = vrot.lane.b32.xlu0 %v4387, 64
      %v4806 = vpop.permute.xlu0 %4805
      %4807 = vrot.lane.b32.xlu0 %v4390, 64
      %v4808 = vpop.permute.xlu0 %4807
      %4809 = vrot.lane.b32.xlu0 %v4392, 64
      %v4810 = vpop.permute.xlu0 %4809
      %4811 = vrot.lane.b32.xlu0 %v4587, 64
      %v4812 = vpop.permute.xlu0 %4811
      %4813 = vrot.lane.b32.xlu0 %v4589, 64
      %v4814 = vpop.permute.xlu0 %4813
      %4815 = vrot.lane.b32.xlu0 %v4357, 64
      %v4816 = vpop.permute.xlu0 %4815
      %v4832 = vsel %vm796, 0.0, %v4150
      %v4833 = vsel %vm796, %v4084, %v4152
      %v4834 = vsel %vm796, %v3981, %v4154
      %v4835 = vsel %vm796, %v4085, %v4156
      %v4836 = vsel %vm796, %v3993, %v4158
      %v4837 = vsel %vm796, %v4086, %v4160
      %v4838 = vsel %vm796, %v4003, %v4162
      %v4839 = vsel %vm796, %v4087, %v4164
      %v4840 = vsel %vm796, %v4015, %v4166
      %v4841 = vsel %vm796, %v4088, %v4168
      %v4842 = vsel %vm796, %v4025, %v4170
      %v4843 = vsel %vm796, %v4089, %v4172
      %v4844 = vsel %vm796, %v4037, %v4174
      %v4845 = vsel %vm796, %v4090, %v4176
      %v4846 = vsel %vm796, %v4047, %v4178
      %v4847 = vsel %vm1294, %v4832, %v4230
      %v4848 = vsel %vm1294, %v4833, %v4232
      %v4849 = vsel %vm1294, %v4834, %v4234
      %v4850 = vsel %vm1294, %v4835, %v4236
      %v4851 = vsel %vm1294, %v4836, %v4238
      %v4852 = vsel %vm1294, %v4837, %v4240
      %v4853 = vsel %vm1294, %v4838, %v4242
      %v4854 = vsel %vm1294, %v4839, %v4244
      %v4855 = vsel %vm1294, %v4840, %v4246
      %v4856 = vsel %vm1294, %v4841, %v4248
      %v4857 = vsel %vm1294, %v4842, %v4250
      %v4858 = vsel %vm1294, %v4843, %v4252
      %v4859 = vsel %vm1294, %v4844, %v4254
      %v4860 = vsel %vm1294, %v4845, %v4256
      %v4861 = vsel %vm1294, %v4846, %v4258
      %vm4862 = vcmask 785408
      %v4863 = vsel %vm4862, %v4847, %v4312
      %v4864 = vsel %vm4862, %v4848, %v4314
      %v4865 = vsel %vm4862, %v4849, %v4316
      %v4866 = vsel %vm4862, %v4850, %v4318
      %v4867 = vsel %vm4862, %v4851, %v4320
      %v4868 = vsel %vm4862, %v4852, %v4322
      %v4869 = vsel %vm4862, %v4853, %v4324
      %v4870 = vsel %vm4862, %v4854, %v4326
      %v4871 = vsel %vm4862, %v4855, %v4328
      %v4872 = vsel %vm4862, %v4856, %v4330
      %v4873 = vsel %vm4862, %v4857, %v4332
      %v4874 = vsel %vm4862, %v4858, %v4334
      %v4875 = vsel %vm4862, %v4859, %v4336
      %v4876 = vsel %vm4862, %v4860, %v4338
      %v4877 = vsel %vm4862, %v4861, %v4340
      %v4878 = vsel %vm796, %v4357, %v4410
      %v4879 = vsel %vm796, %v4357, %v4412
      %v4880 = vsel %vm796, %v4360, %v4414
      %v4881 = vsel %vm796, %v4362, %v4416
      %v4882 = vsel %vm796, %v4365, %v4418
      %v4883 = vsel %vm796, %v4367, %v4420
      %v4884 = vsel %vm796, %v4370, %v4422
      %v4885 = vsel %vm796, %v4372, %v4424
      %v4886 = vsel %vm796, %v4375, %v4426
      %v4887 = vsel %vm796, %v4377, %v4428
      %v4888 = vsel %vm796, %v4380, %v4430
      %v4889 = vsel %vm796, %v4382, %v4432
      %v4890 = vsel %vm796, %v4385, %v4434
      %v4891 = vsel %vm796, %v4387, %v4436
      %v4892 = vsel %vm796, %v4390, %v4438
      %v4893 = vsel %vm796, %v4392, %v4440
      %v4894 = vsel %vm1294, %v4878, %v4464
      %v4895 = vsel %vm1294, %v4879, %v4466
      %v4896 = vsel %vm1294, %v4880, %v4468
      %v4897 = vsel %vm1294, %v4881, %v4470
      %v4898 = vsel %vm1294, %v4882, %v4472
      %v4899 = vsel %vm1294, %v4883, %v4474
      %v4900 = vsel %vm1294, %v4884, %v4476
      %v4901 = vsel %vm1294, %v4885, %v4478
      %v4902 = vsel %vm1294, %v4886, %v4480
      %v4903 = vsel %vm1294, %v4887, %v4482
      %v4904 = vsel %vm1294, %v4888, %v4484
      %v4905 = vsel %vm1294, %v4889, %v4486
      %v4906 = vsel %vm1294, %v4890, %v4488
      %v4907 = vsel %vm1294, %v4891, %v4490
      %v4908 = vsel %vm1294, %v4892, %v4492
      %v4909 = vsel %vm1294, %v4893, %v4494
      %v4910 = vsel %vm4862, %v4894, %v4517
      %v4911 = vsel %vm4862, %v4895, %v4519
      %v4912 = vsel %vm4862, %v4896, %v4521
      %v4913 = vsel %vm4862, %v4897, %v4523
      %v4914 = vsel %vm4862, %v4898, %v4525
      %v4915 = vsel %vm4862, %v4899, %v4527
      %v4916 = vsel %vm4862, %v4900, %v4529
      %v4917 = vsel %vm4862, %v4901, %v4531
      %v4918 = vsel %vm4862, %v4902, %v4533
      %v4919 = vsel %vm4862, %v4903, %v4535
      %v4920 = vsel %vm4862, %v4904, %v4537
      %v4921 = vsel %vm4862, %v4905, %v4539
      %v4922 = vsel %vm4862, %v4906, %v4541
      %v4923 = vsel %vm4862, %v4907, %v4543
      %v4924 = vsel %vm4862, %v4908, %v4545
      %v4925 = vsel %vm4862, %v4909, %v4547
      %v4926 = vsel %vm796, %v4278, %v4591
      %v4927 = vsel %vm796, %v4280, %v4593
      %v4928 = vsel %vm796, %v4283, %v4595
      %v4929 = vsel %vm796, %v4285, %v4597
      %v4930 = vsel %vm796, %v4288, %v4599
      %v4931 = vsel %vm796, %v4290, %v4601
      %v4932 = vsel %vm796, %v4293, %v4603
      %v4933 = vsel %vm796, %v4295, %v4605
      %v4934 = vsel %vm796, %v4298, %v4607
      %v4935 = vsel %vm796, %v4300, %v4609
      %v4936 = vsel %vm796, %v4303, %v4611
      %v4937 = vsel %vm796, %v4305, %v4613
      %v4938 = vsel %vm796, %v4308, %v4615
      %v4939 = vsel %vm796, %v4310, %v4617
      %v4940 = vsel %vm796, %v4566, %v4619
      %v4941 = vsel %vm796, %v4568, %v4621
      %v4942 = vsel %vm1294, %v4926, %v4639
      %v4943 = vsel %vm1294, %v4927, %v4641
      %v4944 = vsel %vm1294, %v4928, %v4643
      %v4945 = vsel %vm1294, %v4929, %v4645
      %v4946 = vsel %vm1294, %v4930, %v4647
      %v4947 = vsel %vm1294, %v4931, %v4649
      %v4948 = vsel %vm1294, %v4932, %v4651
      %v4949 = vsel %vm1294, %v4933, %v4653
      %v4950 = vsel %vm1294, %v4934, %v4655
      %v4951 = vsel %vm1294, %v4935, %v4657
      %v4952 = vsel %vm1294, %v4936, %v4659
      %v4953 = vsel %vm1294, %v4937, %v4661
      %v4954 = vsel %vm1294, %v4938, %v4663
      %v4955 = vsel %vm1294, %v4939, %v4665
      %v4956 = vsel %vm1294, %v4940, %v4667
      %v4957 = vsel %vm1294, %v4941, %v4667
      %v4958 = vsel %vm4862, %v4942, %v4684
      %v4959 = vsel %vm4862, %v4943, %v4686
      %v4960 = vsel %vm4862, %v4944, %v4688
      %v4961 = vsel %vm4862, %v4945, %v4690
      %v4962 = vsel %vm4862, %v4946, %v4692
      %v4963 = vsel %vm4862, %v4947, %v4694
      %v4964 = vsel %vm4862, %v4948, %v4696
      %v4965 = vsel %vm4862, %v4949, %v4698
      %v4966 = vsel %vm4862, %v4950, %v4700
      %v4967 = vsel %vm4862, %v4951, %v4702
      %v4968 = vsel %vm4862, %v4952, %v4704
      %v4969 = vsel %vm4862, %v4953, %v4706
      %v4970 = vsel %vm4862, %v4954, %v4708
      %v4971 = vsel %vm4862, %v4955, %v4710
      %v4972 = vsel %vm4862, %v4956, %v4712
      %v4973 = vsel %vm4862, %v4957, %v4712
      %v4974 = vsel %vm796, %v4201, %v4743
      %v4975 = vsel %vm796, %v4203, %v4745
      %v4976 = vsel %vm796, %v4206, %v4747
      %v4977 = vsel %vm796, %v4208, %v4749
      %v4978 = vsel %vm796, %v4211, %v4751
      %v4979 = vsel %vm796, %v4213, %v4753
      %v4980 = vsel %vm796, %v4216, %v4755
      %v4981 = vsel %vm796, %v4218, %v4757
      %v4982 = vsel %vm796, %v4221, %v4759
      %v4983 = vsel %vm796, %v4223, %v4761
      %v4984 = vsel %vm796, %v4226, %v4763
      %v4985 = vsel %vm796, %v4228, %v4765
      %v4986 = vsel %vm796, %v4513, %v4767
      %v4987 = vsel %vm796, %v4515, %v4769
      %v4988 = vsel %vm796, %v3015, %v4771
      %v4989 = vsel %vm1294, %v4974, %v4788
      %v4990 = vsel %vm1294, %v4975, %v4790
      %v4991 = vsel %vm1294, %v4976, %v4792
      %v4992 = vsel %vm1294, %v4977, %v4794
      %v4993 = vsel %vm1294, %v4978, %v4796
      %v4994 = vsel %vm1294, %v4979, %v4798
      %v4995 = vsel %vm1294, %v4980, %v4800
      %v4996 = vsel %vm1294, %v4981, %v4802
      %v4997 = vsel %vm1294, %v4982, %v4804
      %v4998 = vsel %vm1294, %v4983, %v4806
      %v4999 = vsel %vm1294, %v4984, %v4808
      %v5000 = vsel %vm1294, %v4985, %v4810
      %v5001 = vsel %vm1294, %v4986, %v4812
      %v5002 = vsel %vm1294, %v4987, %v4814
      %v5003 = vsel %vm1294, %v4988, %v4816
      %v5004 = vld [vmem:[%s16] sm:$0xff]
      %v5005 = vld [vmem:[%s17] sm:$0x3]
      %5007 = vset.pattern.permute.xlu0 0
      %5008 = vperm.xlu0 %5007, %v5005
      %v5009 = vpop.permute.xlu0 %5008
      %5012 = vst [vmem:[#allocation1] ss:$4 sm:$0xff] %v5004
      %v5013 = vld.sshfl [vmem:[#allocation1] sm:$0xff pattern:$0x73625140]
      %v5014 = vld.sshfl [vmem:[#allocation1 + $0x8] sm:$0xff pattern:$0x73625140]
      %v5015 = vld.sshfl [vmem:[#allocation1 + $0x10] sm:$0xff pattern:$0x73625140]
      %v5016 = vld.sshfl [vmem:[#allocation1 + $0x18] sm:$0xff pattern:$0x73625140]
      %v5020 = vsel %vm4862, %v5016, 0
      %v5023 = vsel %vm4862, %v4989, 0
      %v5026 = vsel %vm4862, %v4990, 0
      %v5029 = vsel %vm4862, %v4991, 0
      %v5032 = vsel %vm4862, %v4992, 0
      %v5035 = vsel %vm4862, %v4993, 0
      %v5038 = vsel %vm4862, %v4994, 0
      %v5041 = vsel %vm4862, %v4995, 0
      %v5044 = vsel %vm4862, %v4996, 0
      %v5047 = vsel %vm4862, %v4997, 0
      %v5050 = vsel %vm4862, %v4998, 0
      %v5053 = vsel %vm4862, %v4999, 0
      %v5056 = vsel %vm4862, %v5000, 0
      %v5059 = vsel %vm4862, %v5001, 0
      %v5062 = vsel %vm4862, %v5002, 0
      %v5065 = vsel %vm4862, %v5003, 0
      %5067 = vmatpush.xpose.msra.mxu0 %v4877
      %5068 = vmatpush.xpose.msra.mxu0 %v4876
      %5069 = vmatpush.xpose.msra.mxu0 %v4875
      %5070 = vmatpush.xpose.msra.mxu0 %v4874
      %5071 = vmatpush.xpose.msra.mxu0 %v4873
      %5072 = vmatpush.xpose.msra.mxu0 %v4872
      %5073 = vmatpush.xpose.msra.mxu0 %v4871
      %5074 = vmatpush.xpose.msra.mxu0 %v4870
      %5075 = vmatpush.xpose.msra.mxu0 %v4869
      %5076 = vmatpush.xpose.msra.mxu0 %v4868
      %5077 = vmatpush.xpose.msra.mxu0 %v4867
      %5078 = vmatpush.xpose.msra.mxu0 %v4866
      %5079 = vmatpush.xpose.msra.mxu0 %v4865
      %5080 = vmatpush.xpose.msra.mxu0 %v4864
      %5081 = vmatpush.xpose.msra.mxu0 %v4863
      %5082 = vmatpush.xpose.msra.mxu0 %v4863
      %5083 = vmatmul.f32.gmra.mxu0 %v5013
      %v5084 = vpop.f32.mrf.mxu0
      %v5085 = vadd.f32 %v5009, %v5084
      %5086 = vdwg.mxu0
      %5087 = vmatpush.xpose.msra.mxu0 %v4925
      %5088 = vmatpush.xpose.msra.mxu0 %v4924
      %5089 = vmatpush.xpose.msra.mxu0 %v4923
      %5090 = vmatpush.xpose.msra.mxu0 %v4922
      %5091 = vmatpush.xpose.msra.mxu0 %v4921
      %5092 = vmatpush.xpose.msra.mxu0 %v4920
      %5093 = vmatpush.xpose.msra.mxu0 %v4919
      %5094 = vmatpush.xpose.msra.mxu0 %v4918
      %5095 = vmatpush.xpose.msra.mxu0 %v4917
      %5096 = vmatpush.xpose.msra.mxu0 %v4916
      %5097 = vmatpush.xpose.msra.mxu0 %v4915
      %5098 = vmatpush.xpose.msra.mxu0 %v4914
      %5099 = vmatpush.xpose.msra.mxu0 %v4913
      %5100 = vmatpush.xpose.msra.mxu0 %v4912
      %5101 = vmatpush.xpose.msra.mxu0 %v4911
      %5102 = vmatpush.xpose.msra.mxu0 %v4910
      %5103 = vmatmul.f32.gmra.mxu0 %v5014
      %v5104 = vpop.f32.mrf.mxu0
      %v5105 = vadd.f32 %v5085, %v5104
      %5106 = vdwg.mxu0
      %5107 = vmatpush.xpose.msra.mxu0 %v4973
      %5108 = vmatpush.xpose.msra.mxu0 %v4972
      %5109 = vmatpush.xpose.msra.mxu0 %v4971
      %5110 = vmatpush.xpose.msra.mxu0 %v4970
      %5111 = vmatpush.xpose.msra.mxu0 %v4969
      %5112 = vmatpush.xpose.msra.mxu0 %v4968
      %5113 = vmatpush.xpose.msra.mxu0 %v4967
      %5114 = vmatpush.xpose.msra.mxu0 %v4966
      %5115 = vmatpush.xpose.msra.mxu0 %v4965
      %5116 = vmatpush.xpose.msra.mxu0 %v4964
      %5117 = vmatpush.xpose.msra.mxu0 %v4963
      %5118 = vmatpush.xpose.msra.mxu0 %v4962
      %5119 = vmatpush.xpose.msra.mxu0 %v4961
      %5120 = vmatpush.xpose.msra.mxu0 %v4960
      %5121 = vmatpush.xpose.msra.mxu0 %v4959
      %5122 = vmatpush.xpose.msra.mxu0 %v4958
      %5123 = vmatmul.f32.gmra.mxu0 %v5015
      %v5124 = vpop.f32.mrf.mxu0
      %v5125 = vadd.f32 %v5105, %v5124
      %5126 = vdwg.mxu0
      %5127 = vmatpush.xpose.msra.mxu0 %v5065
      %5128 = vmatpush.xpose.msra.mxu0 %v5065
      %5129 = vmatpush.xpose.msra.mxu0 %v5062
      %5130 = vmatpush.xpose.msra.mxu0 %v5059
      %5131 = vmatpush.xpose.msra.mxu0 %v5056
      %5132 = vmatpush.xpose.msra.mxu0 %v5053
      %5133 = vmatpush.xpose.msra.mxu0 %v5050
      %5134 = vmatpush.xpose.msra.mxu0 %v5047
      %5135 = vmatpush.xpose.msra.mxu0 %v5044
      %5136 = vmatpush.xpose.msra.mxu0 %v5041
      %5137 = vmatpush.xpose.msra.mxu0 %v5038
      %5138 = vmatpush.xpose.msra.mxu0 %v5035
      %5139 = vmatpush.xpose.msra.mxu0 %v5032
      %5140 = vmatpush.xpose.msra.mxu0 %v5029
      %5141 = vmatpush.xpose.msra.mxu0 %v5026
      %5142 = vmatpush.xpose.msra.mxu0 %v5023
      %5143 = vmatmul.f32.gmra.mxu0 %v5020
      %v5144 = vpop.f32.mrf.mxu0
      %v5145 = vadd.f32 %v5125, %v5144
      %5146 = vdwg.mxu0
      %5147 = vst [vmem:[%s581] sm:$0x3] %v5145
      %p5148 = scmp.lt.s32.totalorder %s29, 1
      %s5149 = scalar_select %p5148, %s29, 1
      %s5150 = smul.addr %s5149, 2
      %s5151 = scalar_lea.vmem %s18, %s5150
      // Predicated region
      $region93: #{decoder_forward.1} parent=91 // pred_check
        %p5152 = pneg %p435
      $region94: #{decoder_forward.1} parent=91 // pred_check_branch
        %5154 = sbr.rel (%p5152) target = $region96
      $region95: #{decoder_forward.1} parent=91 // pred_region
        _
      $region96: #{decoder_forward.1} parent=91 // pred_fallthru
        _
    $region92: #{decoder_forward.1} parent=5 // pred_fallthru
      _
    %p5155 = scmp.le.s32.totalorder 2, %s24
    // Predicated region
    $region97: #{decoder_forward.1} parent=5 // pred_check
      %p5156 = pneg %p5155
    $region98: #{decoder_forward.1} parent=5 // pred_check_branch
      %5158 = sbr.rel (%p5156) target = $region100
    $region99: #{decoder_forward.1} parent=5 // pred_region
      %s5159 = ssub.s32 %s24, 2
      // Predicated region
      $region101: #{decoder_forward.1} parent=99 // pred_check
        %p5160 = pneg %p441
      $region102: #{decoder_forward.1} parent=99 // pred_check_branch
        %5162 = sbr.rel (%p5160) target = $region104
      $region103: #{decoder_forward.1} parent=99 // pred_region
        %p5163 = scmp.lt.s32.totalorder %s30, 1
        %s5164 = scalar_select %p5163, %s30, 1
        %s5165 = smul.addr %s5164, 2
        %s5166 = scalar_lea.vmem %s18, %s5165
      $region104: #{decoder_forward.1} parent=99 // pred_fallthru
        _
    $region100: #{decoder_forward.1} parent=5 // pred_fallthru
      _
  $region6: #{decoder_forward.1} parent=0 // loop_footer
    %s28 = sadd.s32 1, %s24
  $region7: #{decoder_forward.1} parent=0 // loop_footer_branch
    %23 = sbr.rel target = $region3
  $region8: #{decoder_forward.1} parent=0 // loop_exit
    _

</llo_original>
